<compile_context>
chip_gen: v7x
topology: tpu7x:2x2x1
jax: 0.10.0
libtpu: 0.0.40
codegen_flags: <defaults>
</compile_context>

<pallas_src>
import numpy as np
import jax
import jax.numpy as jnp
from jax import lax
from jax.experimental import pallas as pl
from jax.experimental.pallas import tpu as pltpu

_SHIFT1 = (0, 1, 8, 9)                      # conv1 shifts (a,c) in {0,1}^2 -> a*8+c
_SHIFT2 = (0, 1, 2, 8, 9, 10, 16, 17, 18)   # conv2 shifts (c,d) in {0,1,2}^2 -> c*8+d


# ---------------------------------------------------------------------------
# The fused kernel (one batch tile of G images per grid step)
# ---------------------------------------------------------------------------
def _make_kernel(G):
    L1 = 56 * G     # pool1 rows produced: uv = u*8+v in 0..55, batch-minor
    L2 = 40 * G     # pool2 rows produced: s*8+t  in 0..39, batch-minor

    def kernel(x_ref, w1_ref, b1_ref, w2_ref, b2_ref,
               f1_ref, g1_ref, f2_ref, g2_ref, f3_ref, g3_ref,
               o_ref, p1_ref, p2_ref):
        # ---- conv1 + bias + ReLU + 2x2 max-pool ------------------------------
        acc1 = None
        for k, d in enumerate(_SHIFT1):
            xs = x_ref[0, d * G:d * G + L1, :]                    # (L1, 16) bf16
            wk = w1_ref[k * 16:(k + 1) * 16, :]                   # (16, 96) bf16
            t = jnp.dot(xs, wk, preferred_element_type=jnp.float32)
            acc1 = t if acc1 is None else acc1 + t                # (L1, 96) f32
        # lanes = dd*24 + (p*2+q)*6 + oc ; max over the 4 window offsets dd
        pool1 = jnp.maximum(jnp.maximum(acc1[:, 0:24], acc1[:, 24:48]),
                            jnp.maximum(acc1[:, 48:72], acc1[:, 72:96]))
        pool1 = jnp.maximum(pool1 + b1_ref[...], 0.0)             # bias shared in window
        p1_ref[0:L1, :] = pool1.astype(p1_ref.dtype)
        p1_ref[L1:64 * G, :] = jnp.zeros((8 * G, 24), p1_ref.dtype)   # finite pad rows

        # ---- conv2 + bias + ReLU + 2x2 max-pool ------------------------------
        acc2 = None
        for m, d in enumerate(_SHIFT2):
            ys = p1_ref[d * G:d * G + L2, :]                      # (L2, 24) bf16
            wm = w2_ref[m * 24:(m + 1) * 24, :]                   # (24, 64) bf16
            t = jnp.dot(ys, wm, preferred_element_type=jnp.float32)
            acc2 = t if acc2 is None else acc2 + t                # (L2, 64) f32
        pool2 = jnp.maximum(jnp.maximum(acc2[:, 0:16], acc2[:, 16:32]),
                            jnp.maximum(acc2[:, 32:48], acc2[:, 48:64]))
        pool2 = jnp.maximum(pool2 + b2_ref[...], 0.0)
        p2_ref[...] = pool2.astype(p2_ref.dtype)                  # (L2, 16) bf16

        # ---- fc1 (+ReLU) over the 25 valid spatial positions -----------------
        h = None
        for st in range(25):
            row = (st // 5) * 8 + (st % 5)
            xs = p2_ref[row * G:row * G + G, :]                   # (G, 16) bf16
            wst = f1_ref[st * 16:(st + 1) * 16, :]                # (16, 120) bf16
            t = jnp.dot(xs, wst, preferred_element_type=jnp.float32)
            h = t if h is None else h + t
        h = jnp.maximum(h + g1_ref[...], 0.0).astype(jnp.bfloat16)

        # ---- fc2 (+ReLU), fc3 -------------------------------------------------
        h = jnp.dot(h, f2_ref[...], preferred_element_type=jnp.float32) + g2_ref[...]
        h = jnp.maximum(h, 0.0).astype(jnp.bfloat16)
        out = jnp.dot(h, f3_ref[...], preferred_element_type=jnp.float32) + g3_ref[...]
        o_ref[0] = out.astype(o_ref.dtype)                        # (G, 10)

    return kernel


def _lenet_call(G, nt):
    bcast = lambda i: (0, 0)
    return pl.pallas_call(
        _make_kernel(G),
        out_shape=jax.ShapeDtypeStruct((nt, G, 10), jnp.float32),
        grid=(nt,),
        in_specs=[
            pl.BlockSpec((1, 72 * G, 16), lambda i: (i, 0, 0)),   # phase-plane input
            pl.BlockSpec((64, 96), bcast),     # conv1 shifted weights
            pl.BlockSpec((1, 24), bcast),      # conv1 bias (tiled per pool phase)
            pl.BlockSpec((216, 64), bcast),    # conv2 shifted weights
            pl.BlockSpec((1, 16), bcast),      # conv2 bias
            pl.BlockSpec((400, 120), bcast),   # fc1 (spatial-major row order)
            pl.BlockSpec((1, 120), bcast),
            pl.BlockSpec((120, 84), bcast),    # fc2
            pl.BlockSpec((1, 84), bcast),
            pl.BlockSpec((84, 10), bcast),     # fc3
            pl.BlockSpec((1, 10), bcast),
        ],
        out_specs=pl.BlockSpec((1, G, 10), lambda i: (i, 0, 0)),
        scratch_shapes=[
            pltpu.VMEM((64 * G, 24), jnp.bfloat16),   # pool1 (parity planes)
            pltpu.VMEM((40 * G, 16), jnp.bfloat16),   # pool2
        ],
        compiler_params=pltpu.CompilerParams(dimension_semantics=("parallel",)),
    )


# ---------------------------------------------------------------------------
# Wrapper-side helpers (cheap, one relayout of the input, done once per call)
# ---------------------------------------------------------------------------
def _batch_tile(B):
    # >= 2 grid steps whenever B >= 2 (v7x dual-TC); G a multiple of 8 when possible.
    for g in (32, 16, 8):
        if B >= 2 * g:
            return g
    return max(1, B // 2)


def _prep_input(x, nt, G):
    """(nt*G, 32, 32) f32 -> (nt, 72*G, 16) bf16 mod-4 phase planes, batch-minor rows.

    Within a tile, row = (u*8+v)*G + g and lane = rr*4+ss hold x[g, 4u+rr, 4v+ss];
    rows with u == 7+ (uv >= 64) are zero padding so shifted reads stay finite.
    """
    B = nt * G
    x = x.reshape(B, 8, 4, 8, 4)                  # [g, u, rr, v, ss]
    x = jnp.transpose(x, (1, 3, 0, 2, 4))         # [u, v, g, rr, ss]
    x = x.reshape(64, B, 16)
    x = jnp.pad(x, ((0, 8), (0, 0), (0, 0)))      # uv rows 64..71 are zero
    x = x.reshape(72, nt, G, 16)
    x = jnp.transpose(x, (1, 0, 2, 3))            # [tile, uv, g, plane]
    return x.reshape(nt, 72 * G, 16).astype(jnp.bfloat16)


def net_forward(kp, x_nchw):
    B = x_nchw.shape[0]
    G = _batch_tile(B)
    nt = -(-B // G)
    Bp = nt * G
    x = x_nchw.astype(jnp.float32).reshape(B, 32, 32)     # single input channel
    if Bp != B:
        x = jnp.pad(x, ((0, Bp - B), (0, 0), (0, 0)))
    xp = _prep_input(x, nt, G)
    out = _lenet_call(G, nt)(
        xp, kp["w1k"], kp["b1k"], kp["w2k"], kp["b2k"],
        kp["fc1k"], kp["fb1"], kp["fc2k"], kp["fb2"], kp["fc3k"], kp["fb3"])
    return out.reshape(Bp, 10)[:B]


# ---------------------------------------------------------------------------
# Parameters: logical (PyTorch-like) init + one-time kernel-ready preparation
# ---------------------------------------------------------------------------
def init_params(key):
    ks = jax.random.split(key, 10)
    s = 0.1
    return {
        "conv1_w": s * jax.random.normal(ks[0], (6, 1, 5, 5), jnp.float32),
        "conv1_b": s * jax.random.normal(ks[1], (6,), jnp.float32),
        "conv2_w": s * jax.random.normal(ks[2], (16, 6, 5, 5), jnp.float32),
        "conv2_b": s * jax.random.normal(ks[3], (16,), jnp.float32),
        # fc1 rows follow PyTorch's NCHW flatten order: c*25 + h*5 + w
        "fc1_w": s * jax.random.normal(ks[4], (16 * 5 * 5, 120), jnp.float32),
        "fc1_b": s * jax.random.normal(ks[5], (120,), jnp.float32),
        "fc2_w": s * jax.random.normal(ks[6], (120, 84), jnp.float32),
        "fc2_b": s * jax.random.normal(ks[7], (84,), jnp.float32),
        "fc3_w": s * jax.random.normal(ks[8], (84, 10), jnp.float32),
        "fc3_b": s * jax.random.normal(ks[9], (10,), jnp.float32),
    }


def prepare_params(p):
    """One-time re-layout of weights into kernel-ready 'shifted' matrices."""
    w1 = np.asarray(p["conv1_w"], np.float32)      # (6, 1, 5, 5)
    w2 = np.asarray(p["conv2_w"], np.float32)      # (16, 6, 5, 5)
    fc1 = np.asarray(p["fc1_w"], np.float32)       # (400, 120), row = c*25 + s*5 + t

    # conv1: scatter taps onto input phase planes per shift (a,c) in {0,1}^2.
    #   rows  : k*16 + rr*4 + ss            (k = a*2+c, input phase plane)
    #   lanes : (dr*2+dc)*24 + (p*2+q)*6 + oc  (pool window offset / phase / channel)
    w1k = np.zeros((4 * 16, 96), np.float32)
    for k in range(4):
        a, c = divmod(k, 2)
        for rr in range(4):
            for ss in range(4):
                for dd in range(4):
                    dr, dc = divmod(dd, 2)
                    for pq in range(4):
                        pp, qq = divmod(pq, 2)
                        i = 4 * a + rr - (2 * pp + dr)
                        j = 4 * c + ss - (2 * qq + dc)
                        if 0 <= i <= 4 and 0 <= j <= 4:
                            w1k[k * 16 + rr * 4 + ss,
                                dd * 24 + pq * 6: dd * 24 + pq * 6 + 6] = w1[:, 0, i, j]

    # conv2: scatter taps onto pool1 parity planes per shift (c,d) in {0,1,2}^2.
    #   rows  : m*24 + (p*2+q)*6 + ic       (m = c*3+d)
    #   lanes : (e*2+f)*16 + oc2
    w2k = np.zeros((9 * 24, 64), np.float32)
    for m in range(9):
        c, d = divmod(m, 3)
        for pq in range(4):
            pp, qq = divmod(pq, 2)
            for ic in range(6):
                for ef in range(4):
                    e, f = divmod(ef, 2)
                    i = 2 * c + pp - e
                    j = 2 * d + qq - f
                    if 0 <= i <= 4 and 0 <= j <= 4:
                        w2k[m * 24 + pq * 6 + ic,
                            ef * 16:(ef + 1) * 16] = w2[:, ic, i, j]

    # fc1: kernel consumes pool2 as 25 per-spatial-position (16-channel) blocks
    # -> reorder rows from PyTorch order c*25 + st to st*16 + c.
    fc1k = np.zeros((400, 120), np.float32)
    for st in range(25):
        for cch in range(16):
            fc1k[st * 16 + cch] = fc1[cch * 25 + st]

    bf, f32 = jnp.bfloat16, jnp.float32
    return {
        "w1k": jnp.asarray(w1k, bf),
        "b1k": jnp.asarray(np.tile(np.asarray(p["conv1_b"], np.float32), 4).reshape(1, 24), f32),
        "w2k": jnp.asarray(w2k, bf),
        "b2k": jnp.asarray(np.asarray(p["conv2_b"], np.float32).reshape(1, 16), f32),
        "fc1k": jnp.asarray(fc1k, bf),
        "fb1": jnp.asarray(p["fc1_b"], f32).reshape(1, 120),
        "fc2k": jnp.asarray(p["fc2_w"], bf),
        "fb2": jnp.asarray(p["fc2_b"], f32).reshape(1, 84),
        "fc3k": jnp.asarray(p["fc3_w"], bf),
        "fb3": jnp.asarray(p["fc3_b"], f32).reshape(1, 10),
    }


# ---------------------------------------------------------------------------
# Pure-JAX reference (mirrors Net.forward) for a numerical sanity check
# ---------------------------------------------------------------------------
def _reference_forward(p, x_nchw):
    x = x_nchw.astype(jnp.float32)
    B = x.shape[0]
    c1 = lax.conv_general_dilated(x, p["conv1_w"], (1, 1), "VALID",
                                  dimension_numbers=("NCHW", "OIHW", "NCHW"))
    c1 = jnp.maximum(c1 + p["conv1_b"].reshape(1, 6, 1, 1), 0.0)
    p1 = c1.reshape(B, 6, 14, 2, 14, 2).max(axis=(3, 5))
    c2 = lax.conv_general_dilated(p1, p["conv2_w"], (1, 1), "VALID",
                                  dimension_numbers=("NCHW", "OIHW", "NCHW"))
    c2 = jnp.maximum(c2 + p["conv2_b"].reshape(1, 16, 1, 1), 0.0)
    p2 = c2.reshape(B, 16, 5, 2, 5, 2).max(axis=(3, 5))
    feats = p2.reshape(B, -1)
    h = jnp.maximum(feats @ p["fc1_w"] + p["fc1_b"], 0.0)
    h = jnp.maximum(h @ p["fc2_w"] + p["fc2_b"], 0.0)
    return h @ p["fc3_w"] + p["fc3_b"]


if __name__ == "__main__":
    key = jax.random.PRNGKey(0)
    pkey, xkey = jax.random.split(key)
    params = init_params(pkey)
    kparams = prepare_params(params)        # weight re-layouts done once, outside jit

    # LeNet expects 32x32 single-channel input so that fc1 sees 16*5*5 features.
    x = jax.random.normal(xkey, (2, 1, 32, 32), jnp.float32)   # NCHW, like PyTorch

    fwd = jax.jit(net_forward)
    out = jax.block_until_ready(fwd(kparams, x))
    assert out.shape == (2, 10), out.shape

    ref = jax.block_until_ready(_reference_forward(params, x))
    err = float(jnp.max(jnp.abs(out - ref)))
    assert err < 8e-2, f"max abs error vs reference: {err}"   # bf16-operand tolerance
    print("KERNEL_OK")
</pallas_src>

<mosaic_0001>
module attributes {stable_mosaic.version = 11 : i64} {
  func.func @kernel(%arg0: i32, %arg1: memref<1x72x16xbf16, #tpu.memory_space<vmem>>, %arg2: memref<64x96xbf16, #tpu.memory_space<vmem>>, %arg3: memref<1x24xf32, #tpu.memory_space<vmem>>, %arg4: memref<216x64xbf16, #tpu.memory_space<vmem>>, %arg5: memref<1x16xf32, #tpu.memory_space<vmem>>, %arg6: memref<400x120xbf16, #tpu.memory_space<vmem>>, %arg7: memref<1x120xf32, #tpu.memory_space<vmem>>, %arg8: memref<120x84xbf16, #tpu.memory_space<vmem>>, %arg9: memref<1x84xf32, #tpu.memory_space<vmem>>, %arg10: memref<84x10xbf16, #tpu.memory_space<vmem>>, %arg11: memref<1x10xf32, #tpu.memory_space<vmem>>, %arg12: memref<1x1x10xf32, #tpu.memory_space<vmem>>, %arg13: memref<64x24xbf16, #tpu.memory_space<vmem>>, %arg14: memref<40x16xbf16, #tpu.memory_space<vmem>>) attributes {dimension_semantics = [#tpu.dimension_semantics<parallel>], iteration_bounds = array<i64: 2>, scalar_prefetch = 0 : i64, scratch_operands = 2 : i64, tpu.core_type = #tpu.core_type<tc>, window_params = [{transform_indices = @transform_0, window_bounds = array<i64: 1, 72, 16>}, {pipeline_mode = #tpu.pipeline_mode<synchronous>, transform_indices = @transform_1, window_bounds = array<i64: 64, 96>}, {pipeline_mode = #tpu.pipeline_mode<synchronous>, transform_indices = @transform_2, window_bounds = array<i64: 1, 24>}, {pipeline_mode = #tpu.pipeline_mode<synchronous>, transform_indices = @transform_3, window_bounds = array<i64: 216, 64>}, {pipeline_mode = #tpu.pipeline_mode<synchronous>, transform_indices = @transform_4, window_bounds = array<i64: 1, 16>}, {pipeline_mode = #tpu.pipeline_mode<synchronous>, transform_indices = @transform_5, window_bounds = array<i64: 400, 120>}, {pipeline_mode = #tpu.pipeline_mode<synchronous>, transform_indices = @transform_6, window_bounds = array<i64: 1, 120>}, {pipeline_mode = #tpu.pipeline_mode<synchronous>, transform_indices = @transform_7, window_bounds = array<i64: 120, 84>}, {pipeline_mode = #tpu.pipeline_mode<synchronous>, transform_indices = @transform_8, window_bounds = array<i64: 1, 84>}, {pipeline_mode = #tpu.pipeline_mode<synchronous>, transform_indices = @transform_9, window_bounds = array<i64: 84, 10>}, {pipeline_mode = #tpu.pipeline_mode<synchronous>, transform_indices = @transform_10, window_bounds = array<i64: 1, 10>}, {transform_indices = @transform_11, window_bounds = array<i64: 1, 1, 10>}]} {
    %c0 = arith.constant 0 : index
    %c0_0 = arith.constant 0 : index
    %c0_1 = arith.constant 0 : index
    %0 = vector.load %arg1[%c0, %c0_0, %c0_1] : memref<1x72x16xbf16, #tpu.memory_space<vmem>>, vector<1x56x16xbf16>
    %1 = vector.shape_cast %0 : vector<1x56x16xbf16> to vector<56x16xbf16>
    %c0_2 = arith.constant 0 : index
    %c0_3 = arith.constant 0 : index
    %2 = vector.load %arg2[%c0_2, %c0_3] : memref<64x96xbf16, #tpu.memory_space<vmem>>, vector<16x96xbf16>
    %cst = arith.constant dense<0.000000e+00> : vector<56x96xf32>
    %3 = tpu.matmul %1, %2, %cst {dimension_numbers = #tpu.dot_dimension_numbers<[1], [0], [0], [1], [0, 0, 1, 1], [], []>} : vector<56x16xbf16>, vector<16x96xbf16>, vector<56x96xf32> -> vector<56x96xf32>
    %c0_4 = arith.constant 0 : index
    %c1 = arith.constant 1 : index
    %c0_5 = arith.constant 0 : index
    %4 = vector.load %arg1[%c0_4, %c1, %c0_5] : memref<1x72x16xbf16, #tpu.memory_space<vmem>>, vector<1x56x16xbf16>
    %5 = vector.shape_cast %4 : vector<1x56x16xbf16> to vector<56x16xbf16>
    %c16 = arith.constant 16 : index
    %c0_6 = arith.constant 0 : index
    %6 = vector.load %arg2[%c16, %c0_6] : memref<64x96xbf16, #tpu.memory_space<vmem>>, vector<16x96xbf16>
    %cst_7 = arith.constant dense<0.000000e+00> : vector<56x96xf32>
    %7 = tpu.matmul %5, %6, %cst_7 {dimension_numbers = #tpu.dot_dimension_numbers<[1], [0], [0], [1], [0, 0, 1, 1], [], []>} : vector<56x16xbf16>, vector<16x96xbf16>, vector<56x96xf32> -> vector<56x96xf32>
    %8 = arith.addf %3, %7 : vector<56x96xf32>
    %c0_8 = arith.constant 0 : index
    %c8 = arith.constant 8 : index
    %c0_9 = arith.constant 0 : index
    %9 = vector.load %arg1[%c0_8, %c8, %c0_9] : memref<1x72x16xbf16, #tpu.memory_space<vmem>>, vector<1x56x16xbf16>
    %10 = vector.shape_cast %9 : vector<1x56x16xbf16> to vector<56x16xbf16>
    %c32 = arith.constant 32 : index
    %c0_10 = arith.constant 0 : index
    %11 = vector.load %arg2[%c32, %c0_10] : memref<64x96xbf16, #tpu.memory_space<vmem>>, vector<16x96xbf16>
    %cst_11 = arith.constant dense<0.000000e+00> : vector<56x96xf32>
    %12 = tpu.matmul %10, %11, %cst_11 {dimension_numbers = #tpu.dot_dimension_numbers<[1], [0], [0], [1], [0, 0, 1, 1], [], []>} : vector<56x16xbf16>, vector<16x96xbf16>, vector<56x96xf32> -> vector<56x96xf32>
    %13 = arith.addf %8, %12 : vector<56x96xf32>
    %c0_12 = arith.constant 0 : index
    %c9 = arith.constant 9 : index
    %c0_13 = arith.constant 0 : index
    %14 = vector.load %arg1[%c0_12, %c9, %c0_13] : memref<1x72x16xbf16, #tpu.memory_space<vmem>>, vector<1x56x16xbf16>
    %15 = vector.shape_cast %14 : vector<1x56x16xbf16> to vector<56x16xbf16>
    %c48 = arith.constant 48 : index
    %c0_14 = arith.constant 0 : index
    %16 = vector.load %arg2[%c48, %c0_14] : memref<64x96xbf16, #tpu.memory_space<vmem>>, vector<16x96xbf16>
    %cst_15 = arith.constant dense<0.000000e+00> : vector<56x96xf32>
    %17 = tpu.matmul %15, %16, %cst_15 {dimension_numbers = #tpu.dot_dimension_numbers<[1], [0], [0], [1], [0, 0, 1, 1], [], []>} : vector<56x16xbf16>, vector<16x96xbf16>, vector<56x96xf32> -> vector<56x96xf32>
    %18 = arith.addf %13, %17 : vector<56x96xf32>
    %19 = vector.extract_strided_slice %18 {offsets = [0, 0], sizes = [56, 24], strides = [1, 1]} : vector<56x96xf32> to vector<56x24xf32>
    %20 = vector.extract_strided_slice %18 {offsets = [0, 24], sizes = [56, 24], strides = [1, 1]} : vector<56x96xf32> to vector<56x24xf32>
    %21 = arith.maximumf %19, %20 : vector<56x24xf32>
    %22 = vector.extract_strided_slice %18 {offsets = [0, 48], sizes = [56, 24], strides = [1, 1]} : vector<56x96xf32> to vector<56x24xf32>
    %23 = vector.extract_strided_slice %18 {offsets = [0, 72], sizes = [56, 24], strides = [1, 1]} : vector<56x96xf32> to vector<56x24xf32>
    %24 = arith.maximumf %22, %23 : vector<56x24xf32>
    %25 = arith.maximumf %21, %24 : vector<56x24xf32>
    %c0_16 = arith.constant 0 : index
    %c0_17 = arith.constant 0 : index
    %26 = vector.load %arg3[%c0_16, %c0_17] : memref<1x24xf32, #tpu.memory_space<vmem>>, vector<1x24xf32>
    %27 = vector.broadcast %26 : vector<1x24xf32> to vector<56x24xf32>
    %28 = arith.addf %25, %27 : vector<56x24xf32>
    %cst_18 = arith.constant 0.000000e+00 : f32
    %29 = vector.broadcast %cst_18 : f32 to vector<56x24xf32>
    %30 = arith.maximumf %28, %29 : vector<56x24xf32>
    %31 = arith.truncf %30 : vector<56x24xf32> to vector<56x24xbf16>
    %c0_19 = arith.constant 0 : index
    %c0_20 = arith.constant 0 : index
    %32 = vector.load %arg13[%c0_19, %c0_20] : memref<64x24xbf16, #tpu.memory_space<vmem>>, vector<56x24xbf16>
    tpu.vector_store %arg13[%c0_19, %c0_20], %31 {strides = array<i32>} : memref<64x24xbf16, #tpu.memory_space<vmem>>, vector<56x24xbf16>,
    %cst_21 = arith.constant 0.000000e+00 : bf16
    %33 = vector.broadcast %cst_21 : bf16 to vector<8x24xbf16>
    %c56 = arith.constant 56 : index
    %c0_22 = arith.constant 0 : index
    %34 = vector.load %arg13[%c56, %c0_22] : memref<64x24xbf16, #tpu.memory_space<vmem>>, vector<8x24xbf16>
    tpu.vector_store %arg13[%c56, %c0_22], %33 {strides = array<i32>} : memref<64x24xbf16, #tpu.memory_space<vmem>>, vector<8x24xbf16>,
    %c0_23 = arith.constant 0 : index
    %c0_24 = arith.constant 0 : index
    %35 = vector.load %arg13[%c0_23, %c0_24] : memref<64x24xbf16, #tpu.memory_space<vmem>>, vector<40x24xbf16>
    %c0_25 = arith.constant 0 : index
    %c0_26 = arith.constant 0 : index
    %36 = vector.load %arg4[%c0_25, %c0_26] : memref<216x64xbf16, #tpu.memory_space<vmem>>, vector<24x64xbf16>
    %cst_27 = arith.constant dense<0.000000e+00> : vector<40x64xf32>
    %37 = tpu.matmul %35, %36, %cst_27 {dimension_numbers = #tpu.dot_dimension_numbers<[1], [0], [0], [1], [0, 0, 1, 1], [], []>} : vector<40x24xbf16>, vector<24x64xbf16>, vector<40x64xf32> -> vector<40x64xf32>
    %c1_28 = arith.constant 1 : index
    %c0_29 = arith.constant 0 : index
    %38 = vector.load %arg13[%c1_28, %c0_29] : memref<64x24xbf16, #tpu.memory_space<vmem>>, vector<40x24xbf16>
    %c24 = arith.constant 24 : index
    %c0_30 = arith.constant 0 : index
    %39 = vector.load %arg4[%c24, %c0_30] : memref<216x64xbf16, #tpu.memory_space<vmem>>, vector<24x64xbf16>
    %cst_31 = arith.constant dense<0.000000e+00> : vector<40x64xf32>
    %40 = tpu.matmul %38, %39, %cst_31 {dimension_numbers = #tpu.dot_dimension_numbers<[1], [0], [0], [1], [0, 0, 1, 1], [], []>} : vector<40x24xbf16>, vector<24x64xbf16>, vector<40x64xf32> -> vector<40x64xf32>
    %41 = arith.addf %37, %40 : vector<40x64xf32>
    %c2 = arith.constant 2 : index
    %c0_32 = arith.constant 0 : index
    %42 = vector.load %arg13[%c2, %c0_32] : memref<64x24xbf16, #tpu.memory_space<vmem>>, vector<40x24xbf16>
    %c48_33 = arith.constant 48 : index
    %c0_34 = arith.constant 0 : index
    %43 = vector.load %arg4[%c48_33, %c0_34] : memref<216x64xbf16, #tpu.memory_space<vmem>>, vector<24x64xbf16>
    %cst_35 = arith.constant dense<0.000000e+00> : vector<40x64xf32>
    %44 = tpu.matmul %42, %43, %cst_35 {dimension_numbers = #tpu.dot_dimension_numbers<[1], [0], [0], [1], [0, 0, 1, 1], [], []>} : vector<40x24xbf16>, vector<24x64xbf16>, vector<40x64xf32> -> vector<40x64xf32>
    %45 = arith.addf %41, %44 : vector<40x64xf32>
    %c8_36 = arith.constant 8 : index
    %c0_37 = arith.constant 0 : index
    %46 = vector.load %arg13[%c8_36, %c0_37] : memref<64x24xbf16, #tpu.memory_space<vmem>>, vector<40x24xbf16>
    %c72 = arith.constant 72 : index
    %c0_38 = arith.constant 0 : index
    %47 = vector.load %arg4[%c72, %c0_38] : memref<216x64xbf16, #tpu.memory_space<vmem>>, vector<24x64xbf16>
    %cst_39 = arith.constant dense<0.000000e+00> : vector<40x64xf32>
    %48 = tpu.matmul %46, %47, %cst_39 {dimension_numbers = #tpu.dot_dimension_numbers<[1], [0], [0], [1], [0, 0, 1, 1], [], []>} : vector<40x24xbf16>, vector<24x64xbf16>, vector<40x64xf32> -> vector<40x64xf32>
    %49 = arith.addf %45, %48 : vector<40x64xf32>
    %c9_40 = arith.constant 9 : index
    %c0_41 = arith.constant 0 : index
    %50 = vector.load %arg13[%c9_40, %c0_41] : memref<64x24xbf16, #tpu.memory_space<vmem>>, vector<40x24xbf16>
    %c96 = arith.constant 96 : index
    %c0_42 = arith.constant 0 : index
    %51 = vector.load %arg4[%c96, %c0_42] : memref<216x64xbf16, #tpu.memory_space<vmem>>, vector<24x64xbf16>
    %cst_43 = arith.constant dense<0.000000e+00> : vector<40x64xf32>
    %52 = tpu.matmul %50, %51, %cst_43 {dimension_numbers = #tpu.dot_dimension_numbers<[1], [0], [0], [1], [0, 0, 1, 1], [], []>} : vector<40x24xbf16>, vector<24x64xbf16>, vector<40x64xf32> -> vector<40x64xf32>
    %53 = arith.addf %49, %52 : vector<40x64xf32>
    %c10 = arith.constant 10 : index
    %c0_44 = arith.constant 0 : index
    %54 = vector.load %arg13[%c10, %c0_44] : memref<64x24xbf16, #tpu.memory_space<vmem>>, vector<40x24xbf16>
    %c120 = arith.constant 120 : index
    %c0_45 = arith.constant 0 : index
    %55 = vector.load %arg4[%c120, %c0_45] : memref<216x64xbf16, #tpu.memory_space<vmem>>, vector<24x64xbf16>
    %cst_46 = arith.constant dense<0.000000e+00> : vector<40x64xf32>
    %56 = tpu.matmul %54, %55, %cst_46 {dimension_numbers = #tpu.dot_dimension_numbers<[1], [0], [0], [1], [0, 0, 1, 1], [], []>} : vector<40x24xbf16>, vector<24x64xbf16>, vector<40x64xf32> -> vector<40x64xf32>
    %57 = arith.addf %53, %56 : vector<40x64xf32>
    %c16_47 = arith.constant 16 : index
    %c0_48 = arith.constant 0 : index
    %58 = vector.load %arg13[%c16_47, %c0_48] : memref<64x24xbf16, #tpu.memory_space<vmem>>, vector<40x24xbf16>
    %c144 = arith.constant 144 : index
    %c0_49 = arith.constant 0 : index
    %59 = vector.load %arg4[%c144, %c0_49] : memref<216x64xbf16, #tpu.memory_space<vmem>>, vector<24x64xbf16>
    %cst_50 = arith.constant dense<0.000000e+00> : vector<40x64xf32>
    %60 = tpu.matmul %58, %59, %cst_50 {dimension_numbers = #tpu.dot_dimension_numbers<[1], [0], [0], [1], [0, 0, 1, 1], [], []>} : vector<40x24xbf16>, vector<24x64xbf16>, vector<40x64xf32> -> vector<40x64xf32>
    %61 = arith.addf %57, %60 : vector<40x64xf32>
    %c17 = arith.constant 17 : index
    %c0_51 = arith.constant 0 : index
    %62 = vector.load %arg13[%c17, %c0_51] : memref<64x24xbf16, #tpu.memory_space<vmem>>, vector<40x24xbf16>
    %c168 = arith.constant 168 : index
    %c0_52 = arith.constant 0 : index
    %63 = vector.load %arg4[%c168, %c0_52] : memref<216x64xbf16, #tpu.memory_space<vmem>>, vector<24x64xbf16>
    %cst_53 = arith.constant dense<0.000000e+00> : vector<40x64xf32>
    %64 = tpu.matmul %62, %63, %cst_53 {dimension_numbers = #tpu.dot_dimension_numbers<[1], [0], [0], [1], [0, 0, 1, 1], [], []>} : vector<40x24xbf16>, vector<24x64xbf16>, vector<40x64xf32> -> vector<40x64xf32>
    %65 = arith.addf %61, %64 : vector<40x64xf32>
    %c18 = arith.constant 18 : index
    %c0_54 = arith.constant 0 : index
    %66 = vector.load %arg13[%c18, %c0_54] : memref<64x24xbf16, #tpu.memory_space<vmem>>, vector<40x24xbf16>
    %c192 = arith.constant 192 : index
    %c0_55 = arith.constant 0 : index
    %67 = vector.load %arg4[%c192, %c0_55] : memref<216x64xbf16, #tpu.memory_space<vmem>>, vector<24x64xbf16>
    %cst_56 = arith.constant dense<0.000000e+00> : vector<40x64xf32>
    %68 = tpu.matmul %66, %67, %cst_56 {dimension_numbers = #tpu.dot_dimension_numbers<[1], [0], [0], [1], [0, 0, 1, 1], [], []>} : vector<40x24xbf16>, vector<24x64xbf16>, vector<40x64xf32> -> vector<40x64xf32>
    %69 = arith.addf %65, %68 : vector<40x64xf32>
    %70 = vector.extract_strided_slice %69 {offsets = [0, 0], sizes = [40, 16], strides = [1, 1]} : vector<40x64xf32> to vector<40x16xf32>
    %71 = vector.extract_strided_slice %69 {offsets = [0, 16], sizes = [40, 16], strides = [1, 1]} : vector<40x64xf32> to vector<40x16xf32>
    %72 = arith.maximumf %70, %71 : vector<40x16xf32>
    %73 = vector.extract_strided_slice %69 {offsets = [0, 32], sizes = [40, 16], strides = [1, 1]} : vector<40x64xf32> to vector<40x16xf32>
    %74 = vector.extract_strided_slice %69 {offsets = [0, 48], sizes = [40, 16], strides = [1, 1]} : vector<40x64xf32> to vector<40x16xf32>
    %75 = arith.maximumf %73, %74 : vector<40x16xf32>
    %76 = arith.maximumf %72, %75 : vector<40x16xf32>
    %c0_57 = arith.constant 0 : index
    %c0_58 = arith.constant 0 : index
    %77 = vector.load %arg5[%c0_57, %c0_58] : memref<1x16xf32, #tpu.memory_space<vmem>>, vector<1x16xf32>
    %78 = vector.broadcast %77 : vector<1x16xf32> to vector<40x16xf32>
    %79 = arith.addf %76, %78 : vector<40x16xf32>
    %cst_59 = arith.constant 0.000000e+00 : f32
    %80 = vector.broadcast %cst_59 : f32 to vector<40x16xf32>
    %81 = arith.maximumf %79, %80 : vector<40x16xf32>
    %82 = arith.truncf %81 : vector<40x16xf32> to vector<40x16xbf16>
    %c0_60 = arith.constant 0 : index
    %c0_61 = arith.constant 0 : index
    %83 = vector.load %arg14[%c0_60, %c0_61] : memref<40x16xbf16, #tpu.memory_space<vmem>>, vector<40x16xbf16>
    tpu.vector_store %arg14[%c0_60, %c0_61], %82 {strides = array<i32>} : memref<40x16xbf16, #tpu.memory_space<vmem>>, vector<40x16xbf16>,
    %c0_62 = arith.constant 0 : index
    %c0_63 = arith.constant 0 : index
    %84 = vector.load %arg14[%c0_62, %c0_63] : memref<40x16xbf16, #tpu.memory_space<vmem>>, vector<1x16xbf16>
    %c0_64 = arith.constant 0 : index
    %c0_65 = arith.constant 0 : index
    %85 = vector.load %arg6[%c0_64, %c0_65] : memref<400x120xbf16, #tpu.memory_space<vmem>>, vector<16x120xbf16>
    %cst_66 = arith.constant dense<0.000000e+00> : vector<1x120xf32>
    %86 = tpu.matmul %84, %85, %cst_66 {dimension_numbers = #tpu.dot_dimension_numbers<[1], [0], [0], [1], [0, 0, 1, 1], [], []>} : vector<1x16xbf16>, vector<16x120xbf16>, vector<1x120xf32> -> vector<1x120xf32>
    %c1_67 = arith.constant 1 : index
    %c0_68 = arith.constant 0 : index
    %87 = vector.load %arg14[%c1_67, %c0_68] : memref<40x16xbf16, #tpu.memory_space<vmem>>, vector<1x16xbf16>
    %c16_69 = arith.constant 16 : index
    %c0_70 = arith.constant 0 : index
    %88 = vector.load %arg6[%c16_69, %c0_70] : memref<400x120xbf16, #tpu.memory_space<vmem>>, vector<16x120xbf16>
    %cst_71 = arith.constant dense<0.000000e+00> : vector<1x120xf32>
    %89 = tpu.matmul %87, %88, %cst_71 {dimension_numbers = #tpu.dot_dimension_numbers<[1], [0], [0], [1], [0, 0, 1, 1], [], []>} : vector<1x16xbf16>, vector<16x120xbf16>, vector<1x120xf32> -> vector<1x120xf32>
    %90 = arith.addf %86, %89 : vector<1x120xf32>
    %c2_72 = arith.constant 2 : index
    %c0_73 = arith.constant 0 : index
    %91 = vector.load %arg14[%c2_72, %c0_73] : memref<40x16xbf16, #tpu.memory_space<vmem>>, vector<1x16xbf16>
    %c32_74 = arith.constant 32 : index
    %c0_75 = arith.constant 0 : index
    %92 = vector.load %arg6[%c32_74, %c0_75] : memref<400x120xbf16, #tpu.memory_space<vmem>>, vector<16x120xbf16>
    %cst_76 = arith.constant dense<0.000000e+00> : vector<1x120xf32>
    %93 = tpu.matmul %91, %92, %cst_76 {dimension_numbers = #tpu.dot_dimension_numbers<[1], [0], [0], [1], [0, 0, 1, 1], [], []>} : vector<1x16xbf16>, vector<16x120xbf16>, vector<1x120xf32> -> vector<1x120xf32>
    %94 = arith.addf %90, %93 : vector<1x120xf32>
    %c3 = arith.constant 3 : index
    %c0_77 = arith.constant 0 : index
    %95 = vector.load %arg14[%c3, %c0_77] : memref<40x16xbf16, #tpu.memory_space<vmem>>, vector<1x16xbf16>
    %c48_78 = arith.constant 48 : index
    %c0_79 = arith.constant 0 : index
    %96 = vector.load %arg6[%c48_78, %c0_79] : memref<400x120xbf16, #tpu.memory_space<vmem>>, vector<16x120xbf16>
    %cst_80 = arith.constant dense<0.000000e+00> : vector<1x120xf32>
    %97 = tpu.matmul %95, %96, %cst_80 {dimension_numbers = #tpu.dot_dimension_numbers<[1], [0], [0], [1], [0, 0, 1, 1], [], []>} : vector<1x16xbf16>, vector<16x120xbf16>, vector<1x120xf32> -> vector<1x120xf32>
    %98 = arith.addf %94, %97 : vector<1x120xf32>
    %c4 = arith.constant 4 : index
    %c0_81 = arith.constant 0 : index
    %99 = vector.load %arg14[%c4, %c0_81] : memref<40x16xbf16, #tpu.memory_space<vmem>>, vector<1x16xbf16>
    %c64 = arith.constant 64 : index
    %c0_82 = arith.constant 0 : index
    %100 = vector.load %arg6[%c64, %c0_82] : memref<400x120xbf16, #tpu.memory_space<vmem>>, vector<16x120xbf16>
    %cst_83 = arith.constant dense<0.000000e+00> : vector<1x120xf32>
    %101 = tpu.matmul %99, %100, %cst_83 {dimension_numbers = #tpu.dot_dimension_numbers<[1], [0], [0], [1], [0, 0, 1, 1], [], []>} : vector<1x16xbf16>, vector<16x120xbf16>, vector<1x120xf32> -> vector<1x120xf32>
    %102 = arith.addf %98, %101 : vector<1x120xf32>
    %c8_84 = arith.constant 8 : index
    %c0_85 = arith.constant 0 : index
    %103 = vector.load %arg14[%c8_84, %c0_85] : memref<40x16xbf16, #tpu.memory_space<vmem>>, vector<1x16xbf16>
    %c80 = arith.constant 80 : index
    %c0_86 = arith.constant 0 : index
    %104 = vector.load %arg6[%c80, %c0_86] : memref<400x120xbf16, #tpu.memory_space<vmem>>, vector<16x120xbf16>
    %cst_87 = arith.constant dense<0.000000e+00> : vector<1x120xf32>
    %105 = tpu.matmul %103, %104, %cst_87 {dimension_numbers = #tpu.dot_dimension_numbers<[1], [0], [0], [1], [0, 0, 1, 1], [], []>} : vector<1x16xbf16>, vector<16x120xbf16>, vector<1x120xf32> -> vector<1x120xf32>
    %106 = arith.addf %102, %105 : vector<1x120xf32>
    %c9_88 = arith.constant 9 : index
    %c0_89 = arith.constant 0 : index
    %107 = vector.load %arg14[%c9_88, %c0_89] : memref<40x16xbf16, #tpu.memory_space<vmem>>, vector<1x16xbf16>
    %c96_90 = arith.constant 96 : index
    %c0_91 = arith.constant 0 : index
    %108 = vector.load %arg6[%c96_90, %c0_91] : memref<400x120xbf16, #tpu.memory_space<vmem>>, vector<16x120xbf16>
    %cst_92 = arith.constant dense<0.000000e+00> : vector<1x120xf32>
    %109 = tpu.matmul %107, %108, %cst_92 {dimension_numbers = #tpu.dot_dimension_numbers<[1], [0], [0], [1], [0, 0, 1, 1], [], []>} : vector<1x16xbf16>, vector<16x120xbf16>, vector<1x120xf32> -> vector<1x120xf32>
    %110 = arith.addf %106, %109 : vector<1x120xf32>
    %c10_93 = arith.constant 10 : index
    %c0_94 = arith.constant 0 : index
    %111 = vector.load %arg14[%c10_93, %c0_94] : memref<40x16xbf16, #tpu.memory_space<vmem>>, vector<1x16xbf16>
    %c112 = arith.constant 112 : index
    %c0_95 = arith.constant 0 : index
    %112 = vector.load %arg6[%c112, %c0_95] : memref<400x120xbf16, #tpu.memory_space<vmem>>, vector<16x120xbf16>
    %cst_96 = arith.constant dense<0.000000e+00> : vector<1x120xf32>
    %113 = tpu.matmul %111, %112, %cst_96 {dimension_numbers = #tpu.dot_dimension_numbers<[1], [0], [0], [1], [0, 0, 1, 1], [], []>} : vector<1x16xbf16>, vector<16x120xbf16>, vector<1x120xf32> -> vector<1x120xf32>
    %114 = arith.addf %110, %113 : vector<1x120xf32>
    %c11 = arith.constant 11 : index
    %c0_97 = arith.constant 0 : index
    %115 = vector.load %arg14[%c11, %c0_97] : memref<40x16xbf16, #tpu.memory_space<vmem>>, vector<1x16xbf16>
    %c128 = arith.constant 128 : index
    %c0_98 = arith.constant 0 : index
    %116 = vector.load %arg6[%c128, %c0_98] : memref<400x120xbf16, #tpu.memory_space<vmem>>, vector<16x120xbf16>
    %cst_99 = arith.constant dense<0.000000e+00> : vector<1x120xf32>
    %117 = tpu.matmul %115, %116, %cst_99 {dimension_numbers = #tpu.dot_dimension_numbers<[1], [0], [0], [1], [0, 0, 1, 1], [], []>} : vector<1x16xbf16>, vector<16x120xbf16>, vector<1x120xf32> -> vector<1x120xf32>
    %118 = arith.addf %114, %117 : vector<1x120xf32>
    %c12 = arith.constant 12 : index
    %c0_100 = arith.constant 0 : index
    %119 = vector.load %arg14[%c12, %c0_100] : memref<40x16xbf16, #tpu.memory_space<vmem>>, vector<1x16xbf16>
    %c144_101 = arith.constant 144 : index
    %c0_102 = arith.constant 0 : index
    %120 = vector.load %arg6[%c144_101, %c0_102] : memref<400x120xbf16, #tpu.memory_space<vmem>>, vector<16x120xbf16>
    %cst_103 = arith.constant dense<0.000000e+00> : vector<1x120xf32>
    %121 = tpu.matmul %119, %120, %cst_103 {dimension_numbers = #tpu.dot_dimension_numbers<[1], [0], [0], [1], [0, 0, 1, 1], [], []>} : vector<1x16xbf16>, vector<16x120xbf16>, vector<1x120xf32> -> vector<1x120xf32>
    %122 = arith.addf %118, %121 : vector<1x120xf32>
    %c16_104 = arith.constant 16 : index
    %c0_105 = arith.constant 0 : index
    %123 = vector.load %arg14[%c16_104, %c0_105] : memref<40x16xbf16, #tpu.memory_space<vmem>>, vector<1x16xbf16>
    %c160 = arith.constant 160 : index
    %c0_106 = arith.constant 0 : index
    %124 = vector.load %arg6[%c160, %c0_106] : memref<400x120xbf16, #tpu.memory_space<vmem>>, vector<16x120xbf16>
    %cst_107 = arith.constant dense<0.000000e+00> : vector<1x120xf32>
    %125 = tpu.matmul %123, %124, %cst_107 {dimension_numbers = #tpu.dot_dimension_numbers<[1], [0], [0], [1], [0, 0, 1, 1], [], []>} : vector<1x16xbf16>, vector<16x120xbf16>, vector<1x120xf32> -> vector<1x120xf32>
    %126 = arith.addf %122, %125 : vector<1x120xf32>
    %c17_108 = arith.constant 17 : index
    %c0_109 = arith.constant 0 : index
    %127 = vector.load %arg14[%c17_108, %c0_109] : memref<40x16xbf16, #tpu.memory_space<vmem>>, vector<1x16xbf16>
    %c176 = arith.constant 176 : index
    %c0_110 = arith.constant 0 : index
    %128 = vector.load %arg6[%c176, %c0_110] : memref<400x120xbf16, #tpu.memory_space<vmem>>, vector<16x120xbf16>
    %cst_111 = arith.constant dense<0.000000e+00> : vector<1x120xf32>
    %129 = tpu.matmul %127, %128, %cst_111 {dimension_numbers = #tpu.dot_dimension_numbers<[1], [0], [0], [1], [0, 0, 1, 1], [], []>} : vector<1x16xbf16>, vector<16x120xbf16>, vector<1x120xf32> -> vector<1x120xf32>
    %130 = arith.addf %126, %129 : vector<1x120xf32>
    %c18_112 = arith.constant 18 : index
    %c0_113 = arith.constant 0 : index
    %131 = vector.load %arg14[%c18_112, %c0_113] : memref<40x16xbf16, #tpu.memory_space<vmem>>, vector<1x16xbf16>
    %c192_114 = arith.constant 192 : index
    %c0_115 = arith.constant 0 : index
    %132 = vector.load %arg6[%c192_114, %c0_115] : memref<400x120xbf16, #tpu.memory_space<vmem>>, vector<16x120xbf16>
    %cst_116 = arith.constant dense<0.000000e+00> : vector<1x120xf32>
    %133 = tpu.matmul %131, %132, %cst_116 {dimension_numbers = #tpu.dot_dimension_numbers<[1], [0], [0], [1], [0, 0, 1, 1], [], []>} : vector<1x16xbf16>, vector<16x120xbf16>, vector<1x120xf32> -> vector<1x120xf32>
    %134 = arith.addf %130, %133 : vector<1x120xf32>
    %c19 = arith.constant 19 : index
    %c0_117 = arith.constant 0 : index
    %135 = vector.load %arg14[%c19, %c0_117] : memref<40x16xbf16, #tpu.memory_space<vmem>>, vector<1x16xbf16>
    %c208 = arith.constant 208 : index
    %c0_118 = arith.constant 0 : index
    %136 = vector.load %arg6[%c208, %c0_118] : memref<400x120xbf16, #tpu.memory_space<vmem>>, vector<16x120xbf16>
    %cst_119 = arith.constant dense<0.000000e+00> : vector<1x120xf32>
    %137 = tpu.matmul %135, %136, %cst_119 {dimension_numbers = #tpu.dot_dimension_numbers<[1], [0], [0], [1], [0, 0, 1, 1], [], []>} : vector<1x16xbf16>, vector<16x120xbf16>, vector<1x120xf32> -> vector<1x120xf32>
    %138 = arith.addf %134, %137 : vector<1x120xf32>
    %c20 = arith.constant 20 : index
    %c0_120 = arith.constant 0 : index
    %139 = vector.load %arg14[%c20, %c0_120] : memref<40x16xbf16, #tpu.memory_space<vmem>>, vector<1x16xbf16>
    %c224 = arith.constant 224 : index
    %c0_121 = arith.constant 0 : index
    %140 = vector.load %arg6[%c224, %c0_121] : memref<400x120xbf16, #tpu.memory_space<vmem>>, vector<16x120xbf16>
    %cst_122 = arith.constant dense<0.000000e+00> : vector<1x120xf32>
    %141 = tpu.matmul %139, %140, %cst_122 {dimension_numbers = #tpu.dot_dimension_numbers<[1], [0], [0], [1], [0, 0, 1, 1], [], []>} : vector<1x16xbf16>, vector<16x120xbf16>, vector<1x120xf32> -> vector<1x120xf32>
    %142 = arith.addf %138, %141 : vector<1x120xf32>
    %c24_123 = arith.constant 24 : index
    %c0_124 = arith.constant 0 : index
    %143 = vector.load %arg14[%c24_123, %c0_124] : memref<40x16xbf16, #tpu.memory_space<vmem>>, vector<1x16xbf16>
    %c240 = arith.constant 240 : index
    %c0_125 = arith.constant 0 : index
    %144 = vector.load %arg6[%c240, %c0_125] : memref<400x120xbf16, #tpu.memory_space<vmem>>, vector<16x120xbf16>
    %cst_126 = arith.constant dense<0.000000e+00> : vector<1x120xf32>
    %145 = tpu.matmul %143, %144, %cst_126 {dimension_numbers = #tpu.dot_dimension_numbers<[1], [0], [0], [1], [0, 0, 1, 1], [], []>} : vector<1x16xbf16>, vector<16x120xbf16>, vector<1x120xf32> -> vector<1x120xf32>
    %146 = arith.addf %142, %145 : vector<1x120xf32>
    %c25 = arith.constant 25 : index
    %c0_127 = arith.constant 0 : index
    %147 = vector.load %arg14[%c25, %c0_127] : memref<40x16xbf16, #tpu.memory_space<vmem>>, vector<1x16xbf16>
    %c256 = arith.constant 256 : index
    %c0_128 = arith.constant 0 : index
    %148 = vector.load %arg6[%c256, %c0_128] : memref<400x120xbf16, #tpu.memory_space<vmem>>, vector<16x120xbf16>
    %cst_129 = arith.constant dense<0.000000e+00> : vector<1x120xf32>
    %149 = tpu.matmul %147, %148, %cst_129 {dimension_numbers = #tpu.dot_dimension_numbers<[1], [0], [0], [1], [0, 0, 1, 1], [], []>} : vector<1x16xbf16>, vector<16x120xbf16>, vector<1x120xf32> -> vector<1x120xf32>
    %150 = arith.addf %146, %149 : vector<1x120xf32>
    %c26 = arith.constant 26 : index
    %c0_130 = arith.constant 0 : index
    %151 = vector.load %arg14[%c26, %c0_130] : memref<40x16xbf16, #tpu.memory_space<vmem>>, vector<1x16xbf16>
    %c272 = arith.constant 272 : index
    %c0_131 = arith.constant 0 : index
    %152 = vector.load %arg6[%c272, %c0_131] : memref<400x120xbf16, #tpu.memory_space<vmem>>, vector<16x120xbf16>
    %cst_132 = arith.constant dense<0.000000e+00> : vector<1x120xf32>
    %153 = tpu.matmul %151, %152, %cst_132 {dimension_numbers = #tpu.dot_dimension_numbers<[1], [0], [0], [1], [0, 0, 1, 1], [], []>} : vector<1x16xbf16>, vector<16x120xbf16>, vector<1x120xf32> -> vector<1x120xf32>
    %154 = arith.addf %150, %153 : vector<1x120xf32>
    %c27 = arith.constant 27 : index
    %c0_133 = arith.constant 0 : index
    %155 = vector.load %arg14[%c27, %c0_133] : memref<40x16xbf16, #tpu.memory_space<vmem>>, vector<1x16xbf16>
    %c288 = arith.constant 288 : index
    %c0_134 = arith.constant 0 : index
    %156 = vector.load %arg6[%c288, %c0_134] : memref<400x120xbf16, #tpu.memory_space<vmem>>, vector<16x120xbf16>
    %cst_135 = arith.constant dense<0.000000e+00> : vector<1x120xf32>
    %157 = tpu.matmul %155, %156, %cst_135 {dimension_numbers = #tpu.dot_dimension_numbers<[1], [0], [0], [1], [0, 0, 1, 1], [], []>} : vector<1x16xbf16>, vector<16x120xbf16>, vector<1x120xf32> -> vector<1x120xf32>
    %158 = arith.addf %154, %157 : vector<1x120xf32>
    %c28 = arith.constant 28 : index
    %c0_136 = arith.constant 0 : index
    %159 = vector.load %arg14[%c28, %c0_136] : memref<40x16xbf16, #tpu.memory_space<vmem>>, vector<1x16xbf16>
    %c304 = arith.constant 304 : index
    %c0_137 = arith.constant 0 : index
    %160 = vector.load %arg6[%c304, %c0_137] : memref<400x120xbf16, #tpu.memory_space<vmem>>, vector<16x120xbf16>
    %cst_138 = arith.constant dense<0.000000e+00> : vector<1x120xf32>
    %161 = tpu.matmul %159, %160, %cst_138 {dimension_numbers = #tpu.dot_dimension_numbers<[1], [0], [0], [1], [0, 0, 1, 1], [], []>} : vector<1x16xbf16>, vector<16x120xbf16>, vector<1x120xf32> -> vector<1x120xf32>
    %162 = arith.addf %158, %161 : vector<1x120xf32>
    %c32_139 = arith.constant 32 : index
    %c0_140 = arith.constant 0 : index
    %163 = vector.load %arg14[%c32_139, %c0_140] : memref<40x16xbf16, #tpu.memory_space<vmem>>, vector<1x16xbf16>
    %c320 = arith.constant 320 : index
    %c0_141 = arith.constant 0 : index
    %164 = vector.load %arg6[%c320, %c0_141] : memref<400x120xbf16, #tpu.memory_space<vmem>>, vector<16x120xbf16>
    %cst_142 = arith.constant dense<0.000000e+00> : vector<1x120xf32>
    %165 = tpu.matmul %163, %164, %cst_142 {dimension_numbers = #tpu.dot_dimension_numbers<[1], [0], [0], [1], [0, 0, 1, 1], [], []>} : vector<1x16xbf16>, vector<16x120xbf16>, vector<1x120xf32> -> vector<1x120xf32>
    %166 = arith.addf %162, %165 : vector<1x120xf32>
    %c33 = arith.constant 33 : index
    %c0_143 = arith.constant 0 : index
    %167 = vector.load %arg14[%c33, %c0_143] : memref<40x16xbf16, #tpu.memory_space<vmem>>, vector<1x16xbf16>
    %c336 = arith.constant 336 : index
    %c0_144 = arith.constant 0 : index
    %168 = vector.load %arg6[%c336, %c0_144] : memref<400x120xbf16, #tpu.memory_space<vmem>>, vector<16x120xbf16>
    %cst_145 = arith.constant dense<0.000000e+00> : vector<1x120xf32>
    %169 = tpu.matmul %167, %168, %cst_145 {dimension_numbers = #tpu.dot_dimension_numbers<[1], [0], [0], [1], [0, 0, 1, 1], [], []>} : vector<1x16xbf16>, vector<16x120xbf16>, vector<1x120xf32> -> vector<1x120xf32>
    %170 = arith.addf %166, %169 : vector<1x120xf32>
    %c34 = arith.constant 34 : index
    %c0_146 = arith.constant 0 : index
    %171 = vector.load %arg14[%c34, %c0_146] : memref<40x16xbf16, #tpu.memory_space<vmem>>, vector<1x16xbf16>
    %c352 = arith.constant 352 : index
    %c0_147 = arith.constant 0 : index
    %172 = vector.load %arg6[%c352, %c0_147] : memref<400x120xbf16, #tpu.memory_space<vmem>>, vector<16x120xbf16>
    %cst_148 = arith.constant dense<0.000000e+00> : vector<1x120xf32>
    %173 = tpu.matmul %171, %172, %cst_148 {dimension_numbers = #tpu.dot_dimension_numbers<[1], [0], [0], [1], [0, 0, 1, 1], [], []>} : vector<1x16xbf16>, vector<16x120xbf16>, vector<1x120xf32> -> vector<1x120xf32>
    %174 = arith.addf %170, %173 : vector<1x120xf32>
    %c35 = arith.constant 35 : index
    %c0_149 = arith.constant 0 : index
    %175 = vector.load %arg14[%c35, %c0_149] : memref<40x16xbf16, #tpu.memory_space<vmem>>, vector<1x16xbf16>
    %c368 = arith.constant 368 : index
    %c0_150 = arith.constant 0 : index
    %176 = vector.load %arg6[%c368, %c0_150] : memref<400x120xbf16, #tpu.memory_space<vmem>>, vector<16x120xbf16>
    %cst_151 = arith.constant dense<0.000000e+00> : vector<1x120xf32>
    %177 = tpu.matmul %175, %176, %cst_151 {dimension_numbers = #tpu.dot_dimension_numbers<[1], [0], [0], [1], [0, 0, 1, 1], [], []>} : vector<1x16xbf16>, vector<16x120xbf16>, vector<1x120xf32> -> vector<1x120xf32>
    %178 = arith.addf %174, %177 : vector<1x120xf32>
    %c36 = arith.constant 36 : index
    %c0_152 = arith.constant 0 : index
    %179 = vector.load %arg14[%c36, %c0_152] : memref<40x16xbf16, #tpu.memory_space<vmem>>, vector<1x16xbf16>
    %c384 = arith.constant 384 : index
    %c0_153 = arith.constant 0 : index
    %180 = vector.load %arg6[%c384, %c0_153] : memref<400x120xbf16, #tpu.memory_space<vmem>>, vector<16x120xbf16>
    %cst_154 = arith.constant dense<0.000000e+00> : vector<1x120xf32>
    %181 = tpu.matmul %179, %180, %cst_154 {dimension_numbers = #tpu.dot_dimension_numbers<[1], [0], [0], [1], [0, 0, 1, 1], [], []>} : vector<1x16xbf16>, vector<16x120xbf16>, vector<1x120xf32> -> vector<1x120xf32>
    %182 = arith.addf %178, %181 : vector<1x120xf32>
    %c0_155 = arith.constant 0 : index
    %c0_156 = arith.constant 0 : index
    %183 = vector.load %arg7[%c0_155, %c0_156] : memref<1x120xf32, #tpu.memory_space<vmem>>, vector<1x120xf32>
    %184 = arith.addf %182, %183 : vector<1x120xf32>
    %cst_157 = arith.constant 0.000000e+00 : f32
    %185 = vector.broadcast %cst_157 : f32 to vector<1x120xf32>
    %186 = arith.maximumf %184, %185 : vector<1x120xf32>
    %187 = arith.truncf %186 : vector<1x120xf32> to vector<1x120xbf16>
    %c0_158 = arith.constant 0 : index
    %c0_159 = arith.constant 0 : index
    %188 = vector.load %arg8[%c0_158, %c0_159] : memref<120x84xbf16, #tpu.memory_space<vmem>>, vector<120x84xbf16>
    %cst_160 = arith.constant dense<0.000000e+00> : vector<1x84xf32>
    %189 = tpu.matmul %187, %188, %cst_160 {dimension_numbers = #tpu.dot_dimension_numbers<[1], [0], [0], [1], [0, 0, 1, 1], [], []>} : vector<1x120xbf16>, vector<120x84xbf16>, vector<1x84xf32> -> vector<1x84xf32>
    %c0_161 = arith.constant 0 : index
    %c0_162 = arith.constant 0 : index
    %190 = vector.load %arg9[%c0_161, %c0_162] : memref<1x84xf32, #tpu.memory_space<vmem>>, vector<1x84xf32>
    %191 = arith.addf %189, %190 : vector<1x84xf32>
    %cst_163 = arith.constant 0.000000e+00 : f32
    %192 = vector.broadcast %cst_163 : f32 to vector<1x84xf32>
    %193 = arith.maximumf %191, %192 : vector<1x84xf32>
    %194 = arith.truncf %193 : vector<1x84xf32> to vector<1x84xbf16>
    %c0_164 = arith.constant 0 : index
    %c0_165 = arith.constant 0 : index
    %195 = vector.load %arg10[%c0_164, %c0_165] : memref<84x10xbf16, #tpu.memory_space<vmem>>, vector<84x10xbf16>
    %cst_166 = arith.constant dense<0.000000e+00> : vector<1x10xf32>
    %196 = tpu.matmul %194, %195, %cst_166 {dimension_numbers = #tpu.dot_dimension_numbers<[1], [0], [0], [1], [0, 0, 1, 1], [], []>} : vector<1x84xbf16>, vector<84x10xbf16>, vector<1x10xf32> -> vector<1x10xf32>
    %c0_167 = arith.constant 0 : index
    %c0_168 = arith.constant 0 : index
    %197 = vector.load %arg11[%c0_167, %c0_168] : memref<1x10xf32, #tpu.memory_space<vmem>>, vector<1x10xf32>
    %198 = arith.addf %196, %197 : vector<1x10xf32>
    %c0_169 = arith.constant 0 : index
    %c0_170 = arith.constant 0 : index
    %c0_171 = arith.constant 0 : index
    %199 = vector.load %arg12[%c0_169, %c0_170, %c0_171] : memref<1x1x10xf32, #tpu.memory_space<vmem>>, vector<1x1x10xf32>
    %200 = vector.shape_cast %199 : vector<1x1x10xf32> to vector<1x10xf32>
    %201 = vector.shape_cast %198 : vector<1x10xf32> to vector<1x1x10xf32>
    tpu.vector_store %arg12[%c0_169, %c0_170, %c0_171], %201 {strides = array<i32>} : memref<1x1x10xf32, #tpu.memory_space<vmem>>, vector<1x1x10xf32>,
    return
  }
  func.func @transform_0(%arg0: i32) -> (i32, i32, i32) {
    %c0_i32 = arith.constant 0 : i32
    %c0_i32_0 = arith.constant 0 : i32
    %c0_i32_1 = arith.constant 0 : i32
    return %arg0, %c0_i32, %c0_i32_0 : i32, i32, i32
  }
  func.func @transform_1(%arg0: i32) -> (i32, i32) {
    %c0_i32 = arith.constant 0 : i32
    %c0_i32_0 = arith.constant 0 : i32
    %c0_i32_1 = arith.constant 0 : i32
    return %c0_i32, %c0_i32_0 : i32, i32
  }
  func.func @transform_2(%arg0: i32) -> (i32, i32) {
    %c0_i32 = arith.constant 0 : i32
    %c0_i32_0 = arith.constant 0 : i32
    %c0_i32_1 = arith.constant 0 : i32
    return %c0_i32, %c0_i32_0 : i32, i32
  }
  func.func @transform_3(%arg0: i32) -> (i32, i32) {
    %c0_i32 = arith.constant 0 : i32
    %c0_i32_0 = arith.constant 0 : i32
    %c0_i32_1 = arith.constant 0 : i32
    return %c0_i32, %c0_i32_0 : i32, i32
  }
  func.func @transform_4(%arg0: i32) -> (i32, i32) {
    %c0_i32 = arith.constant 0 : i32
    %c0_i32_0 = arith.constant 0 : i32
    %c0_i32_1 = arith.constant 0 : i32
    return %c0_i32, %c0_i32_0 : i32, i32
  }
  func.func @transform_5(%arg0: i32) -> (i32, i32) {
    %c0_i32 = arith.constant 0 : i32
    %c0_i32_0 = arith.constant 0 : i32
    %c0_i32_1 = arith.constant 0 : i32
    return %c0_i32, %c0_i32_0 : i32, i32
  }
  func.func @transform_6(%arg0: i32) -> (i32, i32) {
    %c0_i32 = arith.constant 0 : i32
    %c0_i32_0 = arith.constant 0 : i32
    %c0_i32_1 = arith.constant 0 : i32
    return %c0_i32, %c0_i32_0 : i32, i32
  }
  func.func @transform_7(%arg0: i32) -> (i32, i32) {
    %c0_i32 = arith.constant 0 : i32
    %c0_i32_0 = arith.constant 0 : i32
    %c0_i32_1 = arith.constant 0 : i32
    return %c0_i32, %c0_i32_0 : i32, i32
  }
  func.func @transform_8(%arg0: i32) -> (i32, i32) {
    %c0_i32 = arith.constant 0 : i32
    %c0_i32_0 = arith.constant 0 : i32
    %c0_i32_1 = arith.constant 0 : i32
    return %c0_i32, %c0_i32_0 : i32, i32
  }
  func.func @transform_9(%arg0: i32) -> (i32, i32) {
    %c0_i32 = arith.constant 0 : i32
    %c0_i32_0 = arith.constant 0 : i32
    %c0_i32_1 = arith.constant 0 : i32
    return %c0_i32, %c0_i32_0 : i32, i32
  }
  func.func @transform_10(%arg0: i32) -> (i32, i32) {
    %c0_i32 = arith.constant 0 : i32
    %c0_i32_0 = arith.constant 0 : i32
    %c0_i32_1 = arith.constant 0 : i32
    return %c0_i32, %c0_i32_0 : i32, i32
  }
  func.func @transform_11(%arg0: i32) -> (i32, i32, i32) {
    %c0_i32 = arith.constant 0 : i32
    %c0_i32_0 = arith.constant 0 : i32
    %c0_i32_1 = arith.constant 0 : i32
    return %arg0, %c0_i32, %c0_i32_0 : i32, i32, i32
  }
}

</mosaic_0001>

<llo_original>
// kernel: net_forward.1
$region0: #{net_forward.1}
  #allocation0 [shape = 'u32[]', space=smem, size = 0x4, offset = 0x4, fixed_abs, tag = 'smem constant byte address 0x4 - core index']
  #allocation1 [shape = 'u32[144,128]{1,0:T(1,128)}', space=vmem, size = 0x12000, scoped, tag = 'internal scratch']
  #allocation2 [shape = 'bf16[64,24]{1,0:T(16,128)(2,1)}', space=vmem, size = 0x4000, scoped, tag = 'scratch operand']
  #allocation3 [shape = 'bf16[40,16]{1,0:T(8,128)(2,1)}', space=vmem, size = 0x2800, scoped, tag = 'scratch operand']
  %s0 = inlined_call_operand.vmem [shape: bf16[2,72,16], index: 0, kind: input, shape index: {}]
  %s1 = inlined_call_operand.vmem [shape: bf16[64,96], index: 1, kind: input, shape index: {}]
  %s2 = inlined_call_operand.vmem [shape: f32[1,24], index: 2, kind: input, shape index: {}]
  %s3 = inlined_call_operand.vmem [shape: bf16[216,64], index: 3, kind: input, shape index: {}]
  %s4 = inlined_call_operand.vmem [shape: f32[1,16], index: 4, kind: input, shape index: {}]
  %s5 = inlined_call_operand.vmem [shape: bf16[400,120], index: 5, kind: input, shape index: {}]
  %s6 = inlined_call_operand.vmem [shape: f32[1,120], index: 6, kind: input, shape index: {}]
  %s7 = inlined_call_operand.vmem [shape: bf16[120,84], index: 7, kind: input, shape index: {}]
  %s8 = inlined_call_operand.vmem [shape: f32[1,84], index: 8, kind: input, shape index: {}]
  %s9 = inlined_call_operand.vmem [shape: bf16[84,10], index: 9, kind: input, shape index: {}]
  %s10 = inlined_call_operand.vmem [shape: f32[1,10], index: 10, kind: input, shape index: {}]
  %s11 = inlined_call_operand.hbm [shape: f32[2,1,10], index: 11, kind: output, shape index: {}]
  %s12 = sld [smem:[#allocation0]]
  $region77: #{net_forward.1} parent=0
    _
  %s14 = ssub.s32 1, %s12
  %s15 = scalar_select 0, %s14, %s12
  $region1: #{net_forward.1} parent=0
    #allocation4 [shape = 'u8[1024]{0}', space=vmem, size = 0x400, scoped, tag = 'output window, operand 0']
    #allocation5 [shape = 's32[2]{0}', space=sflag, size = 0x8, scoped, tag = 'scoped memory for net_forward.1']
    %16 = vsyncpa [#allocation5], 0
    %s17 = scalar_lea.sflag [#allocation5], 1
    %18 = vsyncpa %s17, 0
    loop: start=0, step=1, limit=4
    $region2: #{net_forward.1} parent=1 // loop_pre_header
      _
    $region3: #{net_forward.1} parent=1 // loop_header
      %s20 = sphi 0, %s24
      %p21 = scmp.ge.s32.totalorder %s20, 4
      %s30 = sphi 0, %s32
      %s33 = sphi 0, %s30
      %s34 = sphi 0, %s33
      %s50 = sphi 0, %s34
      %s54 = sphi 0, %s54
      %s56 = sphi 0, %s54
      %s57 = sphi 0, %s56
      %s71 = sphi 0, %s57
      %s75 = sphi 0, %s75
      %s77 = sphi 0, %s75
      %s78 = sphi 0, %s77
      %s92 = sphi 0, %s78
      %s96 = sphi 0, %s96
      %s98 = sphi 0, %s96
      %s99 = sphi 0, %s98
      %s113 = sphi 0, %s99
      %s117 = sphi 0, %s117
      %s119 = sphi 0, %s117
      %s120 = sphi 0, %s119
      %s134 = sphi 0, %s120
      %s138 = sphi 0, %s138
      %s140 = sphi 0, %s138
      %s141 = sphi 0, %s140
      %s155 = sphi 0, %s141
      %s159 = sphi 0, %s159
      %s161 = sphi 0, %s159
      %s162 = sphi 0, %s161
      %s176 = sphi 0, %s162
      %s180 = sphi 0, %s180
      %s182 = sphi 0, %s180
      %s183 = sphi 0, %s182
      %s197 = sphi 0, %s183
      %s201 = sphi 0, %s201
      %s203 = sphi 0, %s201
      %s204 = sphi 0, %s203
      %s218 = sphi 0, %s204
      %s222 = sphi 0, %s222
      %s224 = sphi 0, %s222
      %s225 = sphi 0, %s224
      %s239 = sphi 0, %s225
      %s243 = sphi 0, %s243
      %s245 = sphi 0, %s243
      %s246 = sphi 0, %s245
      %s260 = sphi 0, %s246
      %s266 = sphi 0, %s268
      %s269 = sphi 0, %s266
      %s270 = sphi 0, %s269
      %s286 = sphi 0, %s270
    $region4: #{net_forward.1} parent=1 // loop_header_branch
      %23 = sbr.rel (%p21) target = $region8
    $region5: #{net_forward.1} parent=1 // loop_body
      %s25 = ssub.s32 %s20, 1
      %s26 = ssub.s32 %s20, 2
      %s27 = sadd.s32 %s20, 1
      %s28 = ssub.s32 %s20, %s27
      %p29 = scmp.eq.s32.totalorder %s28, 0
      %s31 = sadd.s32 %s30, 1
      %s32 = scalar_select %p29, %s30, %s31
      %p35 = pneg %p29
      %p36 = scmp.eq.s32.totalorder %s20, 1
      %p37 = por %p35, %p36
      %p38 = scmp.ne.s32.totalorder %s30, %s33
      %p39 = scmp.eq.s32.totalorder %s20, 0
      %p40 = por %p38, %p39
      %p41 = scmp.ne.s32.totalorder %s30, %s33
      %p42 = scmp.eq.s32.totalorder %s25, 1
      %p43 = por %p41, %p42
      %p44 = scmp.ne.s32.totalorder %s33, %s34
      %p45 = scmp.eq.s32.totalorder %s25, 0
      %p46 = por %p44, %p45
      %p47 = scmp.ne.s32.totalorder %s33, %s34
      %p48 = scmp.eq.s32.totalorder %s26, 1
      %p49 = por %p47, %p48
      %p51 = scmp.ne.s32.totalorder %s34, %s50
      %p52 = scmp.eq.s32.totalorder %s26, 0
      %p53 = por %p51, %p52
      %s55 = sadd.s32 %s54, 1
      %p58 = scmp.eq.s32.totalorder %s20, 1
      %p59 = scmp.ne.s32.totalorder %s54, %s56
      %p60 = scmp.eq.s32.totalorder %s20, 0
      %p61 = por %p59, %p60
      %p62 = scmp.ne.s32.totalorder %s54, %s56
      %p63 = scmp.eq.s32.totalorder %s25, 1
      %p64 = por %p62, %p63
      %p65 = scmp.ne.s32.totalorder %s56, %s57
      %p66 = scmp.eq.s32.totalorder %s25, 0
      %p67 = por %p65, %p66
      %p68 = scmp.ne.s32.totalorder %s56, %s57
      %p69 = scmp.eq.s32.totalorder %s26, 1
      %p70 = por %p68, %p69
      %p72 = scmp.ne.s32.totalorder %s57, %s71
      %p73 = scmp.eq.s32.totalorder %s26, 0
      %p74 = por %p72, %p73
      %s76 = sadd.s32 %s75, 1
      %p79 = scmp.eq.s32.totalorder %s20, 1
      %p80 = scmp.ne.s32.totalorder %s75, %s77
      %p81 = scmp.eq.s32.totalorder %s20, 0
      %p82 = por %p80, %p81
      %p83 = scmp.ne.s32.totalorder %s75, %s77
      %p84 = scmp.eq.s32.totalorder %s25, 1
      %p85 = por %p83, %p84
      %p86 = scmp.ne.s32.totalorder %s77, %s78
      %p87 = scmp.eq.s32.totalorder %s25, 0
      %p88 = por %p86, %p87
      %p89 = scmp.ne.s32.totalorder %s77, %s78
      %p90 = scmp.eq.s32.totalorder %s26, 1
      %p91 = por %p89, %p90
      %p93 = scmp.ne.s32.totalorder %s78, %s92
      %p94 = scmp.eq.s32.totalorder %s26, 0
      %p95 = por %p93, %p94
      %s97 = sadd.s32 %s96, 1
      %p100 = scmp.eq.s32.totalorder %s20, 1
      %p101 = scmp.ne.s32.totalorder %s96, %s98
      %p102 = scmp.eq.s32.totalorder %s20, 0
      %p103 = por %p101, %p102
      %p104 = scmp.ne.s32.totalorder %s96, %s98
      %p105 = scmp.eq.s32.totalorder %s25, 1
      %p106 = por %p104, %p105
      %p107 = scmp.ne.s32.totalorder %s98, %s99
      %p108 = scmp.eq.s32.totalorder %s25, 0
      %p109 = por %p107, %p108
      %p110 = scmp.ne.s32.totalorder %s98, %s99
      %p111 = scmp.eq.s32.totalorder %s26, 1
      %p112 = por %p110, %p111
      %p114 = scmp.ne.s32.totalorder %s99, %s113
      %p115 = scmp.eq.s32.totalorder %s26, 0
      %p116 = por %p114, %p115
      %s118 = sadd.s32 %s117, 1
      %p121 = scmp.eq.s32.totalorder %s20, 1
      %p122 = scmp.ne.s32.totalorder %s117, %s119
      %p123 = scmp.eq.s32.totalorder %s20, 0
      %p124 = por %p122, %p123
      %p125 = scmp.ne.s32.totalorder %s117, %s119
      %p126 = scmp.eq.s32.totalorder %s25, 1
      %p127 = por %p125, %p126
      %p128 = scmp.ne.s32.totalorder %s119, %s120
      %p129 = scmp.eq.s32.totalorder %s25, 0
      %p130 = por %p128, %p129
      %p131 = scmp.ne.s32.totalorder %s119, %s120
      %p132 = scmp.eq.s32.totalorder %s26, 1
      %p133 = por %p131, %p132
      %p135 = scmp.ne.s32.totalorder %s120, %s134
      %p136 = scmp.eq.s32.totalorder %s26, 0
      %p137 = por %p135, %p136
      %s139 = sadd.s32 %s138, 1
      %p142 = scmp.eq.s32.totalorder %s20, 1
      %p143 = scmp.ne.s32.totalorder %s138, %s140
      %p144 = scmp.eq.s32.totalorder %s20, 0
      %p145 = por %p143, %p144
      %p146 = scmp.ne.s32.totalorder %s138, %s140
      %p147 = scmp.eq.s32.totalorder %s25, 1
      %p148 = por %p146, %p147
      %p149 = scmp.ne.s32.totalorder %s140, %s141
      %p150 = scmp.eq.s32.totalorder %s25, 0
      %p151 = por %p149, %p150
      %p152 = scmp.ne.s32.totalorder %s140, %s141
      %p153 = scmp.eq.s32.totalorder %s26, 1
      %p154 = por %p152, %p153
      %p156 = scmp.ne.s32.totalorder %s141, %s155
      %p157 = scmp.eq.s32.totalorder %s26, 0
      %p158 = por %p156, %p157
      %s160 = sadd.s32 %s159, 1
      %p163 = scmp.eq.s32.totalorder %s20, 1
      %p164 = scmp.ne.s32.totalorder %s159, %s161
      %p165 = scmp.eq.s32.totalorder %s20, 0
      %p166 = por %p164, %p165
      %p167 = scmp.ne.s32.totalorder %s159, %s161
      %p168 = scmp.eq.s32.totalorder %s25, 1
      %p169 = por %p167, %p168
      %p170 = scmp.ne.s32.totalorder %s161, %s162
      %p171 = scmp.eq.s32.totalorder %s25, 0
      %p172 = por %p170, %p171
      %p173 = scmp.ne.s32.totalorder %s161, %s162
      %p174 = scmp.eq.s32.totalorder %s26, 1
      %p175 = por %p173, %p174
      %p177 = scmp.ne.s32.totalorder %s162, %s176
      %p178 = scmp.eq.s32.totalorder %s26, 0
      %p179 = por %p177, %p178
      %s181 = sadd.s32 %s180, 1
      %p184 = scmp.eq.s32.totalorder %s20, 1
      %p185 = scmp.ne.s32.totalorder %s180, %s182
      %p186 = scmp.eq.s32.totalorder %s20, 0
      %p187 = por %p185, %p186
      %p188 = scmp.ne.s32.totalorder %s180, %s182
      %p189 = scmp.eq.s32.totalorder %s25, 1
      %p190 = por %p188, %p189
      %p191 = scmp.ne.s32.totalorder %s182, %s183
      %p192 = scmp.eq.s32.totalorder %s25, 0
      %p193 = por %p191, %p192
      %p194 = scmp.ne.s32.totalorder %s182, %s183
      %p195 = scmp.eq.s32.totalorder %s26, 1
      %p196 = por %p194, %p195
      %p198 = scmp.ne.s32.totalorder %s183, %s197
      %p199 = scmp.eq.s32.totalorder %s26, 0
      %p200 = por %p198, %p199
      %s202 = sadd.s32 %s201, 1
      %p205 = scmp.eq.s32.totalorder %s20, 1
      %p206 = scmp.ne.s32.totalorder %s201, %s203
      %p207 = scmp.eq.s32.totalorder %s20, 0
      %p208 = por %p206, %p207
      %p209 = scmp.ne.s32.totalorder %s201, %s203
      %p210 = scmp.eq.s32.totalorder %s25, 1
      %p211 = por %p209, %p210
      %p212 = scmp.ne.s32.totalorder %s203, %s204
      %p213 = scmp.eq.s32.totalorder %s25, 0
      %p214 = por %p212, %p213
      %p215 = scmp.ne.s32.totalorder %s203, %s204
      %p216 = scmp.eq.s32.totalorder %s26, 1
      %p217 = por %p215, %p216
      %p219 = scmp.ne.s32.totalorder %s204, %s218
      %p220 = scmp.eq.s32.totalorder %s26, 0
      %p221 = por %p219, %p220
      %s223 = sadd.s32 %s222, 1
      %p226 = scmp.eq.s32.totalorder %s20, 1
      %p227 = scmp.ne.s32.totalorder %s222, %s224
      %p228 = scmp.eq.s32.totalorder %s20, 0
      %p229 = por %p227, %p228
      %p230 = scmp.ne.s32.totalorder %s222, %s224
      %p231 = scmp.eq.s32.totalorder %s25, 1
      %p232 = por %p230, %p231
      %p233 = scmp.ne.s32.totalorder %s224, %s225
      %p234 = scmp.eq.s32.totalorder %s25, 0
      %p235 = por %p233, %p234
      %p236 = scmp.ne.s32.totalorder %s224, %s225
      %p237 = scmp.eq.s32.totalorder %s26, 1
      %p238 = por %p236, %p237
      %p240 = scmp.ne.s32.totalorder %s225, %s239
      %p241 = scmp.eq.s32.totalorder %s26, 0
      %p242 = por %p240, %p241
      %s244 = sadd.s32 %s243, 1
      %p247 = scmp.eq.s32.totalorder %s20, 1
      %p248 = scmp.ne.s32.totalorder %s243, %s245
      %p249 = scmp.eq.s32.totalorder %s20, 0
      %p250 = por %p248, %p249
      %p251 = scmp.ne.s32.totalorder %s243, %s245
      %p252 = scmp.eq.s32.totalorder %s25, 1
      %p253 = por %p251, %p252
      %p254 = scmp.ne.s32.totalorder %s245, %s246
      %p255 = scmp.eq.s32.totalorder %s25, 0
      %p256 = por %p254, %p255
      %p257 = scmp.ne.s32.totalorder %s245, %s246
      %p258 = scmp.eq.s32.totalorder %s26, 1
      %p259 = por %p257, %p258
      %p261 = scmp.ne.s32.totalorder %s246, %s260
      %p262 = scmp.eq.s32.totalorder %s26, 0
      %p263 = por %p261, %p262
      %s264 = ssub.s32 %s20, %s27
      %p265 = scmp.eq.s32.totalorder %s264, 0
      %s267 = sadd.s32 %s266, 1
      %s268 = scalar_select %p265, %s266, %s267
      %p271 = pneg %p265
      %p272 = scmp.eq.s32.totalorder %s20, 1
      %p273 = por %p271, %p272
      %p274 = scmp.ne.s32.totalorder %s266, %s269
      %p275 = scmp.eq.s32.totalorder %s20, 0
      %p276 = por %p274, %p275
      %p277 = scmp.ne.s32.totalorder %s266, %s269
      %p278 = scmp.eq.s32.totalorder %s25, 1
      %p279 = por %p277, %p278
      %p280 = scmp.ne.s32.totalorder %s269, %s270
      %p281 = scmp.eq.s32.totalorder %s25, 0
      %p282 = por %p280, %p281
      %p283 = scmp.ne.s32.totalorder %s269, %s270
      %p284 = scmp.eq.s32.totalorder %s26, 1
      %p285 = por %p283, %p284
      %p287 = scmp.ne.s32.totalorder %s270, %s286
      %p288 = scmp.eq.s32.totalorder %s26, 0
      %p289 = por %p287, %p288
      %p290 = scmp.le.s32.totalorder 1, %s20
      %p291 = scmp.lt.s32.totalorder %s20, 3
      %p292 = pnand %p290, %p291
      %p293 = pneg %p292
      // Predicated region
      $region9: #{net_forward.1} parent=5 // pred_check
        _
      $region10: #{net_forward.1} parent=5 // pred_check_branch
        %295 = sbr.rel (%p292) target = $region12
      $region11: #{net_forward.1} parent=5 // pred_region
        %s296 = ssub.s32 %s20, 1
        // Predicated region
        $region13: #{net_forward.1} parent=11 // pred_check
          %p297 = pneg %p67
        $region14: #{net_forward.1} parent=11 // pred_check_branch
          %299 = sbr.rel (%p297) target = $region16
        $region15: #{net_forward.1} parent=11 // pred_region
          _
        $region16: #{net_forward.1} parent=11 // pred_fallthru
          _
        // Predicated region
        $region17: #{net_forward.1} parent=11 // pred_check
          %p300 = pneg %p88
        $region18: #{net_forward.1} parent=11 // pred_check_branch
          %302 = sbr.rel (%p300) target = $region20
        $region19: #{net_forward.1} parent=11 // pred_region
          _
        $region20: #{net_forward.1} parent=11 // pred_fallthru
          _
        // Predicated region
        $region21: #{net_forward.1} parent=11 // pred_check
          %p303 = pneg %p109
        $region22: #{net_forward.1} parent=11 // pred_check_branch
          %305 = sbr.rel (%p303) target = $region24
        $region23: #{net_forward.1} parent=11 // pred_region
          _
        $region24: #{net_forward.1} parent=11 // pred_fallthru
          _
        // Predicated region
        $region25: #{net_forward.1} parent=11 // pred_check
          %p306 = pneg %p130
        $region26: #{net_forward.1} parent=11 // pred_check_branch
          %308 = sbr.rel (%p306) target = $region28
        $region27: #{net_forward.1} parent=11 // pred_region
          _
        $region28: #{net_forward.1} parent=11 // pred_fallthru
          _
        // Predicated region
        $region29: #{net_forward.1} parent=11 // pred_check
          %p309 = pneg %p151
        $region30: #{net_forward.1} parent=11 // pred_check_branch
          %311 = sbr.rel (%p309) target = $region32
        $region31: #{net_forward.1} parent=11 // pred_region
          _
        $region32: #{net_forward.1} parent=11 // pred_fallthru
          _
        // Predicated region
        $region33: #{net_forward.1} parent=11 // pred_check
          %p312 = pneg %p172
        $region34: #{net_forward.1} parent=11 // pred_check_branch
          %314 = sbr.rel (%p312) target = $region36
        $region35: #{net_forward.1} parent=11 // pred_region
          _
        $region36: #{net_forward.1} parent=11 // pred_fallthru
          _
        // Predicated region
        $region37: #{net_forward.1} parent=11 // pred_check
          %p315 = pneg %p193
        $region38: #{net_forward.1} parent=11 // pred_check_branch
          %317 = sbr.rel (%p315) target = $region40
        $region39: #{net_forward.1} parent=11 // pred_region
          _
        $region40: #{net_forward.1} parent=11 // pred_fallthru
          _
        // Predicated region
        $region41: #{net_forward.1} parent=11 // pred_check
          %p318 = pneg %p214
        $region42: #{net_forward.1} parent=11 // pred_check_branch
          %320 = sbr.rel (%p318) target = $region44
        $region43: #{net_forward.1} parent=11 // pred_region
          _
        $region44: #{net_forward.1} parent=11 // pred_fallthru
          _
        // Predicated region
        $region45: #{net_forward.1} parent=11 // pred_check
          %p321 = pneg %p235
        $region46: #{net_forward.1} parent=11 // pred_check_branch
          %323 = sbr.rel (%p321) target = $region48
        $region47: #{net_forward.1} parent=11 // pred_region
          _
        $region48: #{net_forward.1} parent=11 // pred_fallthru
          _
        // Predicated region
        $region49: #{net_forward.1} parent=11 // pred_check
          %p324 = pneg %p256
        $region50: #{net_forward.1} parent=11 // pred_check_branch
          %326 = sbr.rel (%p324) target = $region52
        $region51: #{net_forward.1} parent=11 // pred_region
          _
        $region52: #{net_forward.1} parent=11 // pred_fallthru
          _
      $region12: #{net_forward.1} parent=5 // pred_fallthru
        _
      %p327 = scmp.lt.s32.totalorder %s20, 2
      // Predicated region
      $region53: #{net_forward.1} parent=5 // pred_check
        %p328 = pneg %p327
      $region54: #{net_forward.1} parent=5 // pred_check_branch
        %330 = sbr.rel (%p328) target = $region56
      $region55: #{net_forward.1} parent=5 // pred_region
        // Predicated region
        $region57: #{net_forward.1} parent=55 // pred_check
          %p331 = pneg %p40
        $region58: #{net_forward.1} parent=55 // pred_check_branch
          %333 = sbr.rel (%p331) target = $region60
        $region59: #{net_forward.1} parent=55 // pred_region
          %p334 = scmp.lt.s32.totalorder %s20, 1
          %s335 = scalar_select %p334, %s20, 1
          %s336 = smul.addr %s335, 9
          %s337 = smul.addr %s336, 4
          %s338 = scalar_lea.vmem %s0, %s337
        $region60: #{net_forward.1} parent=55 // pred_fallthru
          _
      $region56: #{net_forward.1} parent=5 // pred_fallthru
        _
      %p339 = scmp.le.s32.totalorder 1, %s20
      %p340 = scmp.lt.s32.totalorder %s20, 3
      %p341 = pnand %p339, %p340
      %p342 = pneg %p341
      // Predicated region
      $region61: #{net_forward.1} parent=5 // pred_check
        _
      $region62: #{net_forward.1} parent=5 // pred_check_branch
        %344 = sbr.rel (%p341) target = $region64
      $region63: #{net_forward.1} parent=5 // pred_region
        %s345 = ssub.s32 %s20, 1
        %p346 = scmp.lt.s32.totalorder %s25, 1
        %s347 = scalar_select %p346, %s25, 1
        %s348 = smul.addr %s347, 9
        %s349 = smul.addr %s348, 4
        %s350 = scalar_lea.vmem %s0, %s349
        %p351 = pneg %p46
        %p352 = pneg %p43
        %p353 = pneg %p67
        %p354 = pneg %p64
        %p355 = pneg %p88
        %p356 = pneg %p85
        %p357 = pneg %p109
        %p358 = pneg %p106
        %p359 = pneg %p130
        %p360 = pneg %p127
        %p361 = pneg %p151
        %p362 = pneg %p148
        %p363 = pneg %p172
        %p364 = pneg %p169
        %p365 = pneg %p193
        %p366 = pneg %p190
        %p367 = pneg %p214
        %p368 = pneg %p211
        %p369 = pneg %p235
        %p370 = pneg %p232
        %p371 = pneg %p256
        %p372 = pneg %p253
        %p373 = pneg %p282
        %p374 = pneg %p279
        %s375 = sand.u32 %s269, 1
        %s376 = scalar_lea.sflag [#allocation5], %s375
        %s377 = sand.u32 %s269, 1
        %s378 = scalar_lea.vmem [#allocation4], %s377
        %p379 = scmp.lt.s32.totalorder %s25, 1
        %s380 = scalar_select %p379, %s25, 1
        %s381 = smul.addr %s380, 9
        %s382 = smul.addr %s381, 4
        %s383 = scalar_lea.vmem %s0, %s382
        %v385 = vld [vmem:[%s383] sm:$0xf]
        %v386 = vld [vmem:[%s383 + $0x4] sm:$0xf]
        %v387 = vld [vmem:[%s383 + $0x8] sm:$0xf]
        %v388 = vld [vmem:[%s383 + $0xc] sm:$0xf]
        %v389 = vld [vmem:[%s383 + $0x10] sm:$0xf]
        %v390 = vld [vmem:[%s383 + $0x14] sm:$0xf]
        %v391 = vld [vmem:[%s383 + $0x18] sm:$0xf]
        %v392 = vld [vmem:[%s1] sm:$0xf]
        %v393 = vld [vmem:[%s1 + $0x4] sm:$0xf]
        %v394 = vld [vmem:[%s383 + $0x1c] sm:$0x1]
        %v395 = vld [vmem:[%s1 + $0x8] sm:$0xf]
        %v396 = vld [vmem:[%s1 + $0xc] sm:$0xf]
        %v405 = vunpack.c.l.b16 %v385
        %v406 = vunpack.c.l.b16 %v386
        %v407 = vunpack.c.l.b16 %v387
        %v408 = vunpack.c.l.b16 %v388
        %v409 = vunpack.c.l.b16 %v389
        %v410 = vunpack.c.l.b16 %v390
        %v411 = vunpack.c.l.b16 %v391
        %v412 = vunpack.c.l.b16 %v394
        %v413 = vpack.c.b16 %v406, %v405
        %v414 = vpack.c.b16 %v408, %v407
        %v415 = vpack.c.b16 %v410, %v409
        %v416 = vpack.c.b16 %v412, %v411
        %vm417 = vsmask.f32 7424
        %v419 = vshrl.u32 %v413, 16
        %v421 = vshll.u32 %v413, 16
        %v423 = vrot.slane %v421, 1
        %v424 = vor.u32 %v419, %v423
        %v426 = vshll.u32 %v414, 16
        %v428 = vrot.slane %v426, 1
        %v429 = vsel %vm417, %v424, %v428
        %v430 = vshrl.u32 %v414, 16
        %v432 = vor.u32 %v430, %v428
        %v434 = vshll.u32 %v415, 16
        %v436 = vrot.slane %v434, 1
        %v437 = vsel %vm417, %v432, %v436
        %v438 = vshrl.u32 %v415, 16
        %v440 = vor.u32 %v438, %v436
        %v442 = vshll.u32 %v416, 16
        %v444 = vrot.slane %v442, 1
        %v445 = vsel %vm417, %v440, %v444
        %v446 = vshrl.u32 %v416, 16
        %v448 = vor.u32 %v446, %v444
        %v451 = vunpack.c.l.b16 %v395
        %v452 = vunpack.c.l.b16 %v396
        %v453 = vpack.c.b16 %v452, %v451
        %vm455 = vcmask 130048
        %v457 = vsel %vm455, %v429, 0
        %v460 = vsel %vm455, %v437, 0
        %v463 = vsel %vm455, %v445, 0
        %v466 = vsel %vm455, %v448, 0
        %468 = vmatprep.subr.bf16.mxu0 0
        %469 = vmatpush1.bf16.msra.mxu0 %v453
        %470 = vmatprep.subr.bf16.mxu0 0
        %471 = vmatpush1.bf16.msra.mxu0 0
        %472 = vmatprep.subr.bf16.mxu0 0
        %473 = vmatpush1.bf16.msra.mxu0 0
        %474 = vmatprep.subr.bf16.mxu0 0
        %475 = vmatpush1.bf16.msra.mxu0 0
        %476 = vmatprep.subr.bf16.mxu0 0
        %477 = vmatpush1.bf16.msra.mxu0 0
        %478 = vmatprep.subr.bf16.mxu0 0
        %479 = vmatpush1.bf16.msra.mxu0 0
        %480 = vmatprep.subr.bf16.mxu0 0
        %481 = vmatpush1.bf16.msra.mxu0 0
        %482 = vmatprep.subr.bf16.mxu0 0
        %483 = vmatpush1.bf16.msra.mxu0 0
        %484 = vmatprep.subr.bf16.mxu0 0
        %485 = vmatpush1.bf16.msra.mxu0 0
        %486 = vmatprep.subr.bf16.mxu0 0
        %487 = vmatpush1.bf16.msra.mxu0 0
        %488 = vmatprep.subr.bf16.mxu0 0
        %489 = vmatpush1.bf16.msra.mxu0 0
        %490 = vmatprep.subr.bf16.mxu0 0
        %491 = vmatpush1.bf16.msra.mxu0 0
        %492 = vmatprep.subr.bf16.mxu0 0
        %493 = vmatpush1.bf16.msra.mxu0 0
        %494 = vmatprep.subr.bf16.mxu0 0
        %495 = vmatpush1.bf16.msra.mxu0 0
        %496 = vmatprep.subr.bf16.mxu0 0
        %497 = vmatpush1.bf16.msra.mxu0 0
        %498 = vmatprep.subr.bf16.mxu0 0
        %499 = vmatpush1.bf16.msra.mxu0 0
        %500 = vmatprep.mubr.bf16.mxu0 0
        %501 = vmatmul.mubr.bf16.gmra.mrb[0].mxu0 %v457
        %v502 = vpop.f32.mrb[0].mxu0
        %v503 = vadd.f32 0.0, %v502
        %v504 = vpop.f32.mrb[0].mxu0
        %v505 = vpop.f32.mrb[0].mxu0
        %v506 = vadd.f32 0.0, %v505
        %v507 = vpop.f32.mrb[0].mxu0
        %508 = vmatprep.mubr.bf16.mxu0 0
        %509 = vmatmul.mubr.bf16.gmra.mrb[0].mxu0 %v460
        %v510 = vpop.f32.mrb[0].mxu0
        %v511 = vadd.f32 0.0, %v510
        %v512 = vpop.f32.mrb[0].mxu0
        %v513 = vpop.f32.mrb[0].mxu0
        %v514 = vadd.f32 0.0, %v513
        %v515 = vpop.f32.mrb[0].mxu0
        %516 = vmatprep.mubr.bf16.mxu0 0
        %517 = vmatmul.mubr.bf16.gmra.mrb[0].mxu0 %v463
        %v518 = vpop.f32.mrb[0].mxu0
        %v519 = vadd.f32 0.0, %v518
        %v520 = vpop.f32.mrb[0].mxu0
        %v521 = vpop.f32.mrb[0].mxu0
        %v522 = vadd.f32 0.0, %v521
        %v523 = vpop.f32.mrb[0].mxu0
        %524 = vmatprep.mubr.bf16.mxu0 0
        %525 = vmatmul.mubr.bf16.gmra.mrb[0].mxu0 %v466
        %v526 = vpop.f32.mrb[0].mxu0
        %v527 = vadd.f32 0.0, %v526
        %v528 = vpop.f32.mrb[0].mxu0
        %v529 = vpop.f32.mrb[0].mxu0
        %v530 = vpop.f32.mrb[0].mxu0
        %531 = vdwg.mxu0
        %v532 = vpack.c.b16 %v411, %v411
        %v535 = vunpack.c.l.b16 %v392
        %v536 = vunpack.c.l.b16 %v393
        %v537 = vpack.c.b16 %v536, %v535
        %v539 = vsel %vm455, %v413, 0
        %v541 = vsel %vm455, %v414, 0
        %v543 = vsel %vm455, %v415, 0
        %v546 = vsel %vm455, %v532, 0
        %548 = vmatprep.subr.bf16.mxu0 0
        %549 = vmatpush1.bf16.msra.mxu0 %v537
        %550 = vmatprep.subr.bf16.mxu0 0
        %551 = vmatpush1.bf16.msra.mxu0 0
        %552 = vmatprep.subr.bf16.mxu0 0
        %553 = vmatpush1.bf16.msra.mxu0 0
        %554 = vmatprep.subr.bf16.mxu0 0
        %555 = vmatpush1.bf16.msra.mxu0 0
        %556 = vmatprep.subr.bf16.mxu0 0
        %557 = vmatpush1.bf16.msra.mxu0 0
        %558 = vmatprep.subr.bf16.mxu0 0
        %559 = vmatpush1.bf16.msra.mxu0 0
        %560 = vmatprep.subr.bf16.mxu0 0
        %561 = vmatpush1.bf16.msra.mxu0 0
        %562 = vmatprep.subr.bf16.mxu0 0
        %563 = vmatpush1.bf16.msra.mxu0 0
        %564 = vmatprep.subr.bf16.mxu0 0
        %565 = vmatpush1.bf16.msra.mxu0 0
        %566 = vmatprep.subr.bf16.mxu0 0
        %567 = vmatpush1.bf16.msra.mxu0 0
        %568 = vmatprep.subr.bf16.mxu0 0
        %569 = vmatpush1.bf16.msra.mxu0 0
        %570 = vmatprep.subr.bf16.mxu0 0
        %571 = vmatpush1.bf16.msra.mxu0 0
        %572 = vmatprep.subr.bf16.mxu0 0
        %573 = vmatpush1.bf16.msra.mxu0 0
        %574 = vmatprep.subr.bf16.mxu0 0
        %575 = vmatpush1.bf16.msra.mxu0 0
        %576 = vmatprep.subr.bf16.mxu0 0
        %577 = vmatpush1.bf16.msra.mxu0 0
        %578 = vmatprep.subr.bf16.mxu0 0
        %579 = vmatpush1.bf16.msra.mxu0 0
        %580 = vmatprep.mubr.bf16.mxu0 0
        %581 = vmatmul.mubr.bf16.gmra.mrb[0].mxu0 %v539
        %v582 = vpop.f32.mrb[0].mxu0
        %v583 = vadd.f32 %v503, %v582
        %v584 = vpop.f32.mrb[0].mxu0
        %v585 = vpop.f32.mrb[0].mxu0
        %v586 = vadd.f32 %v506, %v585
        %v587 = vpop.f32.mrb[0].mxu0
        %588 = vmatprep.mubr.bf16.mxu0 0
        %589 = vmatmul.mubr.bf16.gmra.mrb[0].mxu0 %v541
        %v590 = vpop.f32.mrb[0].mxu0
        %v591 = vadd.f32 %v511, %v590
        %v592 = vpop.f32.mrb[0].mxu0
        %v593 = vpop.f32.mrb[0].mxu0
        %v594 = vadd.f32 %v514, %v593
        %v595 = vpop.f32.mrb[0].mxu0
        %596 = vmatprep.mubr.bf16.mxu0 0
        %597 = vmatmul.mubr.bf16.gmra.mrb[0].mxu0 %v543
        %v598 = vpop.f32.mrb[0].mxu0
        %v599 = vadd.f32 %v519, %v598
        %v600 = vpop.f32.mrb[0].mxu0
        %v601 = vpop.f32.mrb[0].mxu0
        %v602 = vadd.f32 %v522, %v601
        %v603 = vpop.f32.mrb[0].mxu0
        %604 = vmatprep.mubr.bf16.mxu0 0
        %605 = vmatmul.mubr.bf16.gmra.mrb[0].mxu0 %v546
        %v606 = vpop.f32.mrb[0].mxu0
        %v607 = vadd.f32 %v527, %v606
        %v608 = vpop.f32.mrb[0].mxu0
        %v609 = vpop.f32.mrb[0].mxu0
        %v610 = vpop.f32.mrb[0].mxu0
        %611 = vdwg.mxu0
        %v612 = vld [vmem:[%s383 + $0x1c] sm:$0xf]
        %v613 = vld [vmem:[%s1 + $0x10] sm:$0xf]
        %v614 = vld [vmem:[%s1 + $0x14] sm:$0xf]
        %v616 = vunpack.c.l.b16 %v612
        %v617 = vpack.c.b16 %v407, %v406
        %v618 = vpack.c.b16 %v409, %v408
        %v619 = vpack.c.b16 %v411, %v410
        %v620 = vpack.c.b16 %v616, %v616
        %v623 = vunpack.c.l.b16 %v613
        %v624 = vunpack.c.l.b16 %v614
        %v625 = vpack.c.b16 %v624, %v623
        %v628 = vsel %vm455, %v617, 0
        %v631 = vsel %vm455, %v618, 0
        %v634 = vsel %vm455, %v619, 0
        %v637 = vsel %vm455, %v620, 0
        %639 = vmatprep.subr.bf16.mxu0 0
        %640 = vmatpush1.bf16.msra.mxu0 %v625
        %641 = vmatprep.subr.bf16.mxu0 0
        %642 = vmatpush1.bf16.msra.mxu0 0
        %643 = vmatprep.subr.bf16.mxu0 0
        %644 = vmatpush1.bf16.msra.mxu0 0
        %645 = vmatprep.subr.bf16.mxu0 0
        %646 = vmatpush1.bf16.msra.mxu0 0
        %647 = vmatprep.subr.bf16.mxu0 0
        %648 = vmatpush1.bf16.msra.mxu0 0
        %649 = vmatprep.subr.bf16.mxu0 0
        %650 = vmatpush1.bf16.msra.mxu0 0
        %651 = vmatprep.subr.bf16.mxu0 0
        %652 = vmatpush1.bf16.msra.mxu0 0
        %653 = vmatprep.subr.bf16.mxu0 0
        %654 = vmatpush1.bf16.msra.mxu0 0
        %655 = vmatprep.subr.bf16.mxu0 0
        %656 = vmatpush1.bf16.msra.mxu0 0
        %657 = vmatprep.subr.bf16.mxu0 0
        %658 = vmatpush1.bf16.msra.mxu0 0
        %659 = vmatprep.subr.bf16.mxu0 0
        %660 = vmatpush1.bf16.msra.mxu0 0
        %661 = vmatprep.subr.bf16.mxu0 0
        %662 = vmatpush1.bf16.msra.mxu0 0
        %663 = vmatprep.subr.bf16.mxu0 0
        %664 = vmatpush1.bf16.msra.mxu0 0
        %665 = vmatprep.subr.bf16.mxu0 0
        %666 = vmatpush1.bf16.msra.mxu0 0
        %667 = vmatprep.subr.bf16.mxu0 0
        %668 = vmatpush1.bf16.msra.mxu0 0
        %669 = vmatprep.subr.bf16.mxu0 0
        %670 = vmatpush1.bf16.msra.mxu0 0
        %671 = vmatprep.mubr.bf16.mxu0 0
        %672 = vmatmul.mubr.bf16.gmra.mrb[0].mxu0 %v628
        %v673 = vpop.f32.mrb[0].mxu0
        %v674 = vadd.f32 0.0, %v673
        %v675 = vpop.f32.mrb[0].mxu0
        %v676 = vpop.f32.mrb[0].mxu0
        %v677 = vadd.f32 0.0, %v676
        %v678 = vpop.f32.mrb[0].mxu0
        %679 = vmatprep.mubr.bf16.mxu0 0
        %680 = vmatmul.mubr.bf16.gmra.mrb[0].mxu0 %v631
        %v681 = vpop.f32.mrb[0].mxu0
        %v682 = vadd.f32 0.0, %v681
        %v683 = vpop.f32.mrb[0].mxu0
        %v684 = vpop.f32.mrb[0].mxu0
        %v685 = vadd.f32 0.0, %v684
        %v686 = vpop.f32.mrb[0].mxu0
        %687 = vmatprep.mubr.bf16.mxu0 0
        %688 = vmatmul.mubr.bf16.gmra.mrb[0].mxu0 %v634
        %v689 = vpop.f32.mrb[0].mxu0
        %v690 = vadd.f32 0.0, %v689
        %v691 = vpop.f32.mrb[0].mxu0
        %v692 = vpop.f32.mrb[0].mxu0
        %v693 = vadd.f32 0.0, %v692
        %v694 = vpop.f32.mrb[0].mxu0
        %695 = vmatprep.mubr.bf16.mxu0 0
        %696 = vmatmul.mubr.bf16.gmra.mrb[0].mxu0 %v637
        %v697 = vpop.f32.mrb[0].mxu0
        %v698 = vadd.f32 0.0, %v697
        %v699 = vpop.f32.mrb[0].mxu0
        %v700 = vpop.f32.mrb[0].mxu0
        %v701 = vpop.f32.mrb[0].mxu0
        %702 = vdwg.mxu0
        %v703 = vadd.f32 %v583, %v674
        %v704 = vadd.f32 %v586, %v677
        %v705 = vadd.f32 %v591, %v682
        %v706 = vadd.f32 %v594, %v685
        %v707 = vadd.f32 %v599, %v690
        %v708 = vadd.f32 %v602, %v693
        %v709 = vadd.f32 %v607, %v698
        %v710 = vld [vmem:[%s383 + $0x4] sm:$0xf]
        %v711 = vld [vmem:[%s383 + $0x8] sm:$0xf]
        %v712 = vld [vmem:[%s383 + $0xc] sm:$0xf]
        %v713 = vld [vmem:[%s383 + $0x10] sm:$0xf]
        %v714 = vld [vmem:[%s383 + $0x14] sm:$0xf]
        %v715 = vld [vmem:[%s383 + $0x18] sm:$0xf]
        %v716 = vld [vmem:[%s383 + $0x1c] sm:$0xf]
        %v717 = vld [vmem:[%s383 + $0x20] sm:$0x1]
        %v718 = vld [vmem:[%s1 + $0x18] sm:$0xf]
        %v719 = vld [vmem:[%s1 + $0x1c] sm:$0xf]
        %v728 = vunpack.c.l.b16 %v710
        %v729 = vunpack.c.l.b16 %v711
        %v730 = vunpack.c.l.b16 %v712
        %v731 = vunpack.c.l.b16 %v713
        %v732 = vunpack.c.l.b16 %v714
        %v733 = vunpack.c.l.b16 %v715
        %v734 = vunpack.c.l.b16 %v716
        %v735 = vunpack.c.l.b16 %v717
        %v736 = vpack.c.b16 %v729, %v728
        %v737 = vpack.c.b16 %v731, %v730
        %v738 = vpack.c.b16 %v733, %v732
        %v739 = vpack.c.b16 %v735, %v734
        %v741 = vshrl.u32 %v736, 16
        %v743 = vshll.u32 %v736, 16
        %v745 = vrot.slane %v743, 1
        %v746 = vor.u32 %v741, %v745
        %v748 = vshll.u32 %v737, 16
        %v750 = vrot.slane %v748, 1
        %v751 = vsel %vm417, %v746, %v750
        %v752 = vshrl.u32 %v737, 16
        %v754 = vor.u32 %v752, %v750
        %v756 = vshll.u32 %v738, 16
        %v758 = vrot.slane %v756, 1
        %v759 = vsel %vm417, %v754, %v758
        %v760 = vshrl.u32 %v738, 16
        %v762 = vor.u32 %v760, %v758
        %v764 = vshll.u32 %v739, 16
        %v766 = vrot.slane %v764, 1
        %v767 = vsel %vm417, %v762, %v766
        %v768 = vshrl.u32 %v739, 16
        %v770 = vor.u32 %v768, %v766
        %v773 = vunpack.c.l.b16 %v718
        %v774 = vunpack.c.l.b16 %v719
        %v775 = vpack.c.b16 %v774, %v773
        %v778 = vsel %vm455, %v751, 0
        %v781 = vsel %vm455, %v759, 0
        %v784 = vsel %vm455, %v767, 0
        %v787 = vsel %vm455, %v770, 0
        %789 = vmatprep.subr.bf16.mxu0 0
        %790 = vmatpush1.bf16.msra.mxu0 %v775
        %791 = vmatprep.subr.bf16.mxu0 0
        %792 = vmatpush1.bf16.msra.mxu0 0
        %793 = vmatprep.subr.bf16.mxu0 0
        %794 = vmatpush1.bf16.msra.mxu0 0
        %795 = vmatprep.subr.bf16.mxu0 0
        %796 = vmatpush1.bf16.msra.mxu0 0
        %797 = vmatprep.subr.bf16.mxu0 0
        %798 = vmatpush1.bf16.msra.mxu0 0
        %799 = vmatprep.subr.bf16.mxu0 0
        %800 = vmatpush1.bf16.msra.mxu0 0
        %801 = vmatprep.subr.bf16.mxu0 0
        %802 = vmatpush1.bf16.msra.mxu0 0
        %803 = vmatprep.subr.bf16.mxu0 0
        %804 = vmatpush1.bf16.msra.mxu0 0
        %805 = vmatprep.subr.bf16.mxu0 0
        %806 = vmatpush1.bf16.msra.mxu0 0
        %807 = vmatprep.subr.bf16.mxu0 0
        %808 = vmatpush1.bf16.msra.mxu0 0
        %809 = vmatprep.subr.bf16.mxu0 0
        %810 = vmatpush1.bf16.msra.mxu0 0
        %811 = vmatprep.subr.bf16.mxu0 0
        %812 = vmatpush1.bf16.msra.mxu0 0
        %813 = vmatprep.subr.bf16.mxu0 0
        %814 = vmatpush1.bf16.msra.mxu0 0
        %815 = vmatprep.subr.bf16.mxu0 0
        %816 = vmatpush1.bf16.msra.mxu0 0
        %817 = vmatprep.subr.bf16.mxu0 0
        %818 = vmatpush1.bf16.msra.mxu0 0
        %819 = vmatprep.subr.bf16.mxu0 0
        %820 = vmatpush1.bf16.msra.mxu0 0
        %821 = vmatprep.mubr.bf16.mxu0 0
        %822 = vmatmul.mubr.bf16.gmra.mrb[0].mxu0 %v778
        %v823 = vpop.f32.mrb[0].mxu0
        %v824 = vadd.f32 0.0, %v823
        %v825 = vpop.f32.mrb[0].mxu0
        %v826 = vpop.f32.mrb[0].mxu0
        %v827 = vadd.f32 0.0, %v826
        %v828 = vpop.f32.mrb[0].mxu0
        %829 = vmatprep.mubr.bf16.mxu0 0
        %830 = vmatmul.mubr.bf16.gmra.mrb[0].mxu0 %v781
        %v831 = vpop.f32.mrb[0].mxu0
        %v832 = vadd.f32 0.0, %v831
        %v833 = vpop.f32.mrb[0].mxu0
        %v834 = vpop.f32.mrb[0].mxu0
        %v835 = vadd.f32 0.0, %v834
        %v836 = vpop.f32.mrb[0].mxu0
        %837 = vmatprep.mubr.bf16.mxu0 0
        %838 = vmatmul.mubr.bf16.gmra.mrb[0].mxu0 %v784
        %v839 = vpop.f32.mrb[0].mxu0
        %v840 = vadd.f32 0.0, %v839
        %v841 = vpop.f32.mrb[0].mxu0
        %v842 = vpop.f32.mrb[0].mxu0
        %v843 = vadd.f32 0.0, %v842
        %v844 = vpop.f32.mrb[0].mxu0
        %845 = vmatprep.mubr.bf16.mxu0 0
        %846 = vmatmul.mubr.bf16.gmra.mrb[0].mxu0 %v787
        %v847 = vpop.f32.mrb[0].mxu0
        %v848 = vadd.f32 0.0, %v847
        %v849 = vpop.f32.mrb[0].mxu0
        %v850 = vpop.f32.mrb[0].mxu0
        %v851 = vpop.f32.mrb[0].mxu0
        %852 = vdwg.mxu0
        %v853 = vadd.f32 %v703, %v824
        %v854 = vadd.f32 %v704, %v827
        %v855 = vadd.f32 %v705, %v832
        %v856 = vadd.f32 %v706, %v835
        %v857 = vadd.f32 %v707, %v840
        %v858 = vadd.f32 %v708, %v843
        %v859 = vadd.f32 %v709, %v848
        %867 = vrot.lane.b32.xlu0 %v853, 104
        %v868 = vpop.permute.xlu0 %867
        %869 = vrot.lane.b32.xlu0 %v854, 104
        %v870 = vpop.permute.xlu0 %869
        %871 = vrot.lane.b32.xlu0 %v855, 104
        %v872 = vpop.permute.xlu0 %871
        %873 = vrot.lane.b32.xlu0 %v856, 104
        %v874 = vpop.permute.xlu0 %873
        %875 = vrot.lane.b32.xlu0 %v857, 104
        %v876 = vpop.permute.xlu0 %875
        %877 = vrot.lane.b32.xlu0 %v858, 104
        %v878 = vpop.permute.xlu0 %877
        %879 = vrot.lane.b32.xlu0 %v859, 104
        %v880 = vpop.permute.xlu0 %879
        %v888 = vmax.f32 %v853, %v868
        %v889 = vmax.f32 %v854, %v870
        %v890 = vmax.f32 %v855, %v872
        %v891 = vmax.f32 %v856, %v874
        %v892 = vmax.f32 %v857, %v876
        %v893 = vmax.f32 %v858, %v878
        %v894 = vmax.f32 %v859, %v880
        %902 = vrot.lane.b32.xlu0 %v888, 80
        %v903 = vpop.permute.xlu0 %902
        %904 = vrot.lane.b32.xlu0 %v889, 80
        %v905 = vpop.permute.xlu0 %904
        %906 = vrot.lane.b32.xlu0 %v890, 80
        %v907 = vpop.permute.xlu0 %906
        %908 = vrot.lane.b32.xlu0 %v891, 80
        %v909 = vpop.permute.xlu0 %908
        %910 = vrot.lane.b32.xlu0 %v892, 80
        %v911 = vpop.permute.xlu0 %910
        %912 = vrot.lane.b32.xlu0 %v893, 80
        %v913 = vpop.permute.xlu0 %912
        %914 = vrot.lane.b32.xlu0 %v894, 80
        %v915 = vpop.permute.xlu0 %914
        %v923 = vmax.f32 %v888, %v903
        %v924 = vmax.f32 %v889, %v905
        %v925 = vmax.f32 %v890, %v907
        %v926 = vmax.f32 %v891, %v909
        %v927 = vmax.f32 %v892, %v911
        %v928 = vmax.f32 %v893, %v913
        %v929 = vmax.f32 %v894, %v915
        %v930 = vld [vmem:[%s2] sm:$0x1]
        %v932 = vlaneseq
        %v933 = vshrl.u32 %v932, 7
        %v934 = vsub.s32 0, %v933
        %v935 = vrot.slane %v930, %v934
        %v937 = vadd.f32 %v923, %v935
        %v938 = vadd.f32 %v924, %v935
        %v939 = vadd.f32 %v925, %v935
        %v940 = vadd.f32 %v926, %v935
        %v941 = vadd.f32 %v927, %v935
        %v942 = vadd.f32 %v928, %v935
        %v943 = vadd.f32 %v929, %v935
        %v944 = vmax.f32 %v937, 0.0
        %v945 = vmax.f32 %v938, 0.0
        %v946 = vmax.f32 %v939, 0.0
        %v947 = vmax.f32 %v940, 0.0
        %v948 = vmax.f32 %v941, 0.0
        %v949 = vmax.f32 %v942, 0.0
        %v950 = vmax.f32 %v943, 0.0
        %v951 = vpack.c.bf16 %v945, %v944
        %v952 = vpack.c.bf16 %v947, %v946
        %v953 = vpack.c.bf16 %v949, %v948
        %v954 = vpack.c.bf16 %v950, %v950
        %vm955 = vcmask 195584
        %956 = vst.msk [vmem:[#allocation2] sm:$0xff] %vm955, %v951
        %957 = vst.msk [vmem:[#allocation2 + $0x8] sm:$0xff] %vm955, %v952
        %958 = vst.msk [vmem:[#allocation2 + $0x10] sm:$0xff] %vm955, %v953
        %vm959 = vcmask 191488
        %960 = vst.msk [vmem:[#allocation2 + $0x18] sm:$0xf] %vm959, %v954
        %vm961 = vcmask 195588
        %962 = vst.msk [vmem:[#allocation2 + $0x18] sm:$0xf0] %vm961, 0
        %v963 = vld [vmem:[#allocation2] sm:$0xff]
        %v964 = vld [vmem:[#allocation2 + $0x8] sm:$0xff]
        %v965 = vld [vmem:[#allocation2 + $0x10] sm:$0xf]
        %v966 = vld [vmem:[%s3] sm:$0xf]
        %v967 = vld [vmem:[%s3 + $0x4] sm:$0xf]
        %v968 = vld [vmem:[%s3 + $0x8] sm:$0xf]
        %v969 = vld [vmem:[#allocation2 + $0x10] sm:$0x1f]
        %v970 = vld [vmem:[%s3 + $0xc] sm:$0xf]
        %v971 = vld [vmem:[%s3 + $0x10] sm:$0xf]
        %v972 = vld [vmem:[%s3 + $0x14] sm:$0xf]
        %v974 = vshrl.u32 %v963, 16
        %v976 = vshll.u32 %v963, 16
        %v978 = vrot.slane %v976, 1
        %v979 = vor.u32 %v974, %v978
        %v981 = vshll.u32 %v964, 16
        %v983 = vrot.slane %v981, 1
        %v984 = vsel %vm417, %v979, %v983
        %v985 = vshrl.u32 %v964, 16
        %v987 = vor.u32 %v985, %v983
        %v989 = vshll.u32 %v969, 16
        %v991 = vrot.slane %v989, 1
        %v992 = vsel %vm417, %v987, %v991
        %v993 = vshrl.u32 %v969, 16
        %v995 = vor.u32 %v993, %v991
        %v999 = vunpack.c.l.b16 %v970
        %v1000 = vunpack.c.l.b16 %v971
        %v1001 = vunpack.c.l.b16 %v972
        %v1002 = vpack.c.b16 %v1000, %v999
        %v1003 = vpack.c.b16 %v1001, %v1001
        %v1006 = vsel %vm955, %v984, 0
        %v1009 = vsel %vm955, %v992, 0
        %v1012 = vsel %vm955, %v995, 0
        %vm1014 = vcmask 1043456
        %v1016 = vsel %vm1014, %v1003, 0
        %1018 = vmatprep.subr.bf16.mxu0 0
        %1019 = vmatpush1.bf16.msra.mxu0 %v1002
        %1020 = vmatprep.subr.bf16.mxu0 0
        %1021 = vmatpush1.bf16.msra.mxu0 %v1016
        %1022 = vmatprep.subr.bf16.mxu0 0
        %1023 = vmatpush1.bf16.msra.mxu0 0
        %1024 = vmatprep.subr.bf16.mxu0 0
        %1025 = vmatpush1.bf16.msra.mxu0 0
        %1026 = vmatprep.subr.bf16.mxu0 0
        %1027 = vmatpush1.bf16.msra.mxu0 0
        %1028 = vmatprep.subr.bf16.mxu0 0
        %1029 = vmatpush1.bf16.msra.mxu0 0
        %1030 = vmatprep.subr.bf16.mxu0 0
        %1031 = vmatpush1.bf16.msra.mxu0 0
        %1032 = vmatprep.subr.bf16.mxu0 0
        %1033 = vmatpush1.bf16.msra.mxu0 0
        %1034 = vmatprep.subr.bf16.mxu0 0
        %1035 = vmatpush1.bf16.msra.mxu0 0
        %1036 = vmatprep.subr.bf16.mxu0 0
        %1037 = vmatpush1.bf16.msra.mxu0 0
        %1038 = vmatprep.subr.bf16.mxu0 0
        %1039 = vmatpush1.bf16.msra.mxu0 0
        %1040 = vmatprep.subr.bf16.mxu0 0
        %1041 = vmatpush1.bf16.msra.mxu0 0
        %1042 = vmatprep.subr.bf16.mxu0 0
        %1043 = vmatpush1.bf16.msra.mxu0 0
        %1044 = vmatprep.subr.bf16.mxu0 0
        %1045 = vmatpush1.bf16.msra.mxu0 0
        %1046 = vmatprep.subr.bf16.mxu0 0
        %1047 = vmatpush1.bf16.msra.mxu0 0
        %1048 = vmatprep.subr.bf16.mxu0 0
        %1049 = vmatpush1.bf16.msra.mxu0 0
        %1050 = vmatprep.mubr.bf16.mxu0 0
        %1051 = vmatmul.mubr.bf16.gmra.mrb[0].mxu0 %v1006
        %v1052 = vpop.f32.mrb[0].mxu0
        %v1053 = vadd.f32 0.0, %v1052
        %v1054 = vpop.f32.mrb[0].mxu0
        %v1055 = vpop.f32.mrb[0].mxu0
        %v1056 = vadd.f32 0.0, %v1055
        %v1057 = vpop.f32.mrb[0].mxu0
        %1058 = vmatprep.mubr.bf16.mxu0 0
        %1059 = vmatmul.mubr.bf16.gmra.mrb[0].mxu0 %v1009
        %v1060 = vpop.f32.mrb[0].mxu0
        %v1061 = vadd.f32 0.0, %v1060
        %v1062 = vpop.f32.mrb[0].mxu0
        %v1063 = vpop.f32.mrb[0].mxu0
        %v1064 = vadd.f32 0.0, %v1063
        %v1065 = vpop.f32.mrb[0].mxu0
        %1066 = vmatprep.mubr.bf16.mxu0 0
        %1067 = vmatmul.mubr.bf16.gmra.mrb[0].mxu0 %v1012
        %v1068 = vpop.f32.mrb[0].mxu0
        %v1069 = vadd.f32 0.0, %v1068
        %v1070 = vpop.f32.mrb[0].mxu0
        %v1071 = vpop.f32.mrb[0].mxu0
        %v1072 = vpop.f32.mrb[0].mxu0
        %1073 = vdwg.mxu0
        %v1077 = vunpack.c.l.b16 %v966
        %v1078 = vunpack.c.l.b16 %v967
        %v1079 = vunpack.c.l.b16 %v968
        %v1080 = vpack.c.b16 %v1078, %v1077
        %v1081 = vpack.c.b16 %v1079, %v1079
        %v1083 = vsel %vm955, %v963, 0
        %v1085 = vsel %vm955, %v964, 0
        %v1088 = vsel %vm955, %v965, 0
        %v1091 = vsel %vm1014, %v1081, 0
        %1093 = vmatprep.subr.bf16.mxu0 0
        %1094 = vmatpush1.bf16.msra.mxu0 %v1080
        %1095 = vmatprep.subr.bf16.mxu0 0
        %1096 = vmatpush1.bf16.msra.mxu0 %v1091
        %1097 = vmatprep.subr.bf16.mxu0 0
        %1098 = vmatpush1.bf16.msra.mxu0 0
        %1099 = vmatprep.subr.bf16.mxu0 0
        %1100 = vmatpush1.bf16.msra.mxu0 0
        %1101 = vmatprep.subr.bf16.mxu0 0
        %1102 = vmatpush1.bf16.msra.mxu0 0
        %1103 = vmatprep.subr.bf16.mxu0 0
        %1104 = vmatpush1.bf16.msra.mxu0 0
        %1105 = vmatprep.subr.bf16.mxu0 0
        %1106 = vmatpush1.bf16.msra.mxu0 0
        %1107 = vmatprep.subr.bf16.mxu0 0
        %1108 = vmatpush1.bf16.msra.mxu0 0
        %1109 = vmatprep.subr.bf16.mxu0 0
        %1110 = vmatpush1.bf16.msra.mxu0 0
        %1111 = vmatprep.subr.bf16.mxu0 0
        %1112 = vmatpush1.bf16.msra.mxu0 0
        %1113 = vmatprep.subr.bf16.mxu0 0
        %1114 = vmatpush1.bf16.msra.mxu0 0
        %1115 = vmatprep.subr.bf16.mxu0 0
        %1116 = vmatpush1.bf16.msra.mxu0 0
        %1117 = vmatprep.subr.bf16.mxu0 0
        %1118 = vmatpush1.bf16.msra.mxu0 0
        %1119 = vmatprep.subr.bf16.mxu0 0
        %1120 = vmatpush1.bf16.msra.mxu0 0
        %1121 = vmatprep.subr.bf16.mxu0 0
        %1122 = vmatpush1.bf16.msra.mxu0 0
        %1123 = vmatprep.subr.bf16.mxu0 0
        %1124 = vmatpush1.bf16.msra.mxu0 0
        %1125 = vmatprep.mubr.bf16.mxu0 0
        %1126 = vmatmul.mubr.bf16.gmra.mrb[0].mxu0 %v1083
        %v1127 = vpop.f32.mrb[0].mxu0
        %v1128 = vadd.f32 %v1053, %v1127
        %v1129 = vpop.f32.mrb[0].mxu0
        %v1130 = vpop.f32.mrb[0].mxu0
        %v1131 = vadd.f32 %v1056, %v1130
        %v1132 = vpop.f32.mrb[0].mxu0
        %1133 = vmatprep.mubr.bf16.mxu0 0
        %1134 = vmatmul.mubr.bf16.gmra.mrb[0].mxu0 %v1085
        %v1135 = vpop.f32.mrb[0].mxu0
        %v1136 = vadd.f32 %v1061, %v1135
        %v1137 = vpop.f32.mrb[0].mxu0
        %v1138 = vpop.f32.mrb[0].mxu0
        %v1139 = vadd.f32 %v1064, %v1138
        %v1140 = vpop.f32.mrb[0].mxu0
        %1141 = vmatprep.mubr.bf16.mxu0 0
        %1142 = vmatmul.mubr.bf16.gmra.mrb[0].mxu0 %v1088
        %v1143 = vpop.f32.mrb[0].mxu0
        %v1144 = vadd.f32 %v1069, %v1143
        %v1145 = vpop.f32.mrb[0].mxu0
        %v1146 = vpop.f32.mrb[0].mxu0
        %v1147 = vpop.f32.mrb[0].mxu0
        %1148 = vdwg.mxu0
        %v1149 = vld [vmem:[#allocation2] sm:$0xfe]
        %v1150 = vld [vmem:[%s3 + $0x18] sm:$0xf]
        %v1151 = vld [vmem:[%s3 + $0x1c] sm:$0xf]
        %v1152 = vld [vmem:[%s3 + $0x20] sm:$0xf]
        %vm1156 = vcmask 1046528
        %v1157 = vrot.slane %v1149, 1
        %v1158 = vrot.slane %v964, 1
        %v1159 = vsel %vm1156, %v1157, %v1158
        %v1160 = vrot.slane %v969, 1
        %v1161 = vsel %vm1156, %v1158, %v1160
        %v1165 = vunpack.c.l.b16 %v1150
        %v1166 = vunpack.c.l.b16 %v1151
        %v1167 = vunpack.c.l.b16 %v1152
        %v1168 = vpack.c.b16 %v1166, %v1165
        %v1169 = vpack.c.b16 %v1167, %v1167
        %v1172 = vsel %vm955, %v1159, 0
        %v1175 = vsel %vm955, %v1161, 0
        %v1178 = vsel %vm955, %v1160, 0
        %v1181 = vsel %vm1014, %v1169, 0
        %1183 = vmatprep.subr.bf16.mxu0 0
        %1184 = vmatpush1.bf16.msra.mxu0 %v1168
        %1185 = vmatprep.subr.bf16.mxu0 0
        %1186 = vmatpush1.bf16.msra.mxu0 %v1181
        %1187 = vmatprep.subr.bf16.mxu0 0
        %1188 = vmatpush1.bf16.msra.mxu0 0
        %1189 = vmatprep.subr.bf16.mxu0 0
        %1190 = vmatpush1.bf16.msra.mxu0 0
        %1191 = vmatprep.subr.bf16.mxu0 0
        %1192 = vmatpush1.bf16.msra.mxu0 0
        %1193 = vmatprep.subr.bf16.mxu0 0
        %1194 = vmatpush1.bf16.msra.mxu0 0
        %1195 = vmatprep.subr.bf16.mxu0 0
        %1196 = vmatpush1.bf16.msra.mxu0 0
        %1197 = vmatprep.subr.bf16.mxu0 0
        %1198 = vmatpush1.bf16.msra.mxu0 0
        %1199 = vmatprep.subr.bf16.mxu0 0
        %1200 = vmatpush1.bf16.msra.mxu0 0
        %1201 = vmatprep.subr.bf16.mxu0 0
        %1202 = vmatpush1.bf16.msra.mxu0 0
        %1203 = vmatprep.subr.bf16.mxu0 0
        %1204 = vmatpush1.bf16.msra.mxu0 0
        %1205 = vmatprep.subr.bf16.mxu0 0
        %1206 = vmatpush1.bf16.msra.mxu0 0
        %1207 = vmatprep.subr.bf16.mxu0 0
        %1208 = vmatpush1.bf16.msra.mxu0 0
        %1209 = vmatprep.subr.bf16.mxu0 0
        %1210 = vmatpush1.bf16.msra.mxu0 0
        %1211 = vmatprep.subr.bf16.mxu0 0
        %1212 = vmatpush1.bf16.msra.mxu0 0
        %1213 = vmatprep.subr.bf16.mxu0 0
        %1214 = vmatpush1.bf16.msra.mxu0 0
        %1215 = vmatprep.mubr.bf16.mxu0 0
        %1216 = vmatmul.mubr.bf16.gmra.mrb[0].mxu0 %v1172
        %v1217 = vpop.f32.mrb[0].mxu0
        %v1218 = vadd.f32 0.0, %v1217
        %v1219 = vpop.f32.mrb[0].mxu0
        %v1220 = vpop.f32.mrb[0].mxu0
        %v1221 = vadd.f32 0.0, %v1220
        %v1222 = vpop.f32.mrb[0].mxu0
        %1223 = vmatprep.mubr.bf16.mxu0 0
        %1224 = vmatmul.mubr.bf16.gmra.mrb[0].mxu0 %v1175
        %v1225 = vpop.f32.mrb[0].mxu0
        %v1226 = vadd.f32 0.0, %v1225
        %v1227 = vpop.f32.mrb[0].mxu0
        %v1228 = vpop.f32.mrb[0].mxu0
        %v1229 = vadd.f32 0.0, %v1228
        %v1230 = vpop.f32.mrb[0].mxu0
        %1231 = vmatprep.mubr.bf16.mxu0 0
        %1232 = vmatmul.mubr.bf16.gmra.mrb[0].mxu0 %v1178
        %v1233 = vpop.f32.mrb[0].mxu0
        %v1234 = vadd.f32 0.0, %v1233
        %v1235 = vpop.f32.mrb[0].mxu0
        %v1236 = vpop.f32.mrb[0].mxu0
        %v1237 = vpop.f32.mrb[0].mxu0
        %1238 = vdwg.mxu0
        %v1239 = vadd.f32 %v1128, %v1218
        %v1240 = vadd.f32 %v1131, %v1221
        %v1241 = vadd.f32 %v1136, %v1226
        %v1242 = vadd.f32 %v1139, %v1229
        %v1243 = vadd.f32 %v1144, %v1234
        %v1244 = vld [vmem:[#allocation2] sm:$0xf0]
        %v1245 = vld [vmem:[#allocation2 + $0x10] sm:$0xff]
        %v1246 = vld [vmem:[%s3 + $0x24] sm:$0xf]
        %v1247 = vld [vmem:[%s3 + $0x28] sm:$0xf]
        %v1248 = vld [vmem:[%s3 + $0x2c] sm:$0xf]
        %vm1251 = vcmask 1043456
        %v1252 = vrot.slane %v1244, 4
        %v1253 = vrot.slane %v964, 4
        %v1254 = vsel %vm1251, %v1252, %v1253
        %v1255 = vrot.slane %v1245, 4
        %v1256 = vsel %vm1251, %v1253, %v1255
        %v1260 = vunpack.c.l.b16 %v1246
        %v1261 = vunpack.c.l.b16 %v1247
        %v1262 = vunpack.c.l.b16 %v1248
        %v1263 = vpack.c.b16 %v1261, %v1260
        %v1264 = vpack.c.b16 %v1262, %v1262
        %v1267 = vsel %vm955, %v1254, 0
        %v1270 = vsel %vm955, %v1256, 0
        %v1273 = vsel %vm955, %v1255, 0
        %v1276 = vsel %vm1014, %v1264, 0
        %1278 = vmatprep.subr.bf16.mxu0 0
        %1279 = vmatpush1.bf16.msra.mxu0 %v1263
        %1280 = vmatprep.subr.bf16.mxu0 0
        %1281 = vmatpush1.bf16.msra.mxu0 %v1276
        %1282 = vmatprep.subr.bf16.mxu0 0
        %1283 = vmatpush1.bf16.msra.mxu0 0
        %1284 = vmatprep.subr.bf16.mxu0 0
        %1285 = vmatpush1.bf16.msra.mxu0 0
        %1286 = vmatprep.subr.bf16.mxu0 0
        %1287 = vmatpush1.bf16.msra.mxu0 0
        %1288 = vmatprep.subr.bf16.mxu0 0
        %1289 = vmatpush1.bf16.msra.mxu0 0
        %1290 = vmatprep.subr.bf16.mxu0 0
        %1291 = vmatpush1.bf16.msra.mxu0 0
        %1292 = vmatprep.subr.bf16.mxu0 0
        %1293 = vmatpush1.bf16.msra.mxu0 0
        %1294 = vmatprep.subr.bf16.mxu0 0
        %1295 = vmatpush1.bf16.msra.mxu0 0
        %1296 = vmatprep.subr.bf16.mxu0 0
        %1297 = vmatpush1.bf16.msra.mxu0 0
        %1298 = vmatprep.subr.bf16.mxu0 0
        %1299 = vmatpush1.bf16.msra.mxu0 0
        %1300 = vmatprep.subr.bf16.mxu0 0
        %1301 = vmatpush1.bf16.msra.mxu0 0
        %1302 = vmatprep.subr.bf16.mxu0 0
        %1303 = vmatpush1.bf16.msra.mxu0 0
        %1304 = vmatprep.subr.bf16.mxu0 0
        %1305 = vmatpush1.bf16.msra.mxu0 0
        %1306 = vmatprep.subr.bf16.mxu0 0
        %1307 = vmatpush1.bf16.msra.mxu0 0
        %1308 = vmatprep.subr.bf16.mxu0 0
        %1309 = vmatpush1.bf16.msra.mxu0 0
        %1310 = vmatprep.mubr.bf16.mxu0 0
        %1311 = vmatmul.mubr.bf16.gmra.mrb[0].mxu0 %v1267
        %v1312 = vpop.f32.mrb[0].mxu0
        %v1313 = vadd.f32 0.0, %v1312
        %v1314 = vpop.f32.mrb[0].mxu0
        %v1315 = vpop.f32.mrb[0].mxu0
        %v1316 = vadd.f32 0.0, %v1315
        %v1317 = vpop.f32.mrb[0].mxu0
        %1318 = vmatprep.mubr.bf16.mxu0 0
        %1319 = vmatmul.mubr.bf16.gmra.mrb[0].mxu0 %v1270
        %v1320 = vpop.f32.mrb[0].mxu0
        %v1321 = vadd.f32 0.0, %v1320
        %v1322 = vpop.f32.mrb[0].mxu0
        %v1323 = vpop.f32.mrb[0].mxu0
        %v1324 = vadd.f32 0.0, %v1323
        %v1325 = vpop.f32.mrb[0].mxu0
        %1326 = vmatprep.mubr.bf16.mxu0 0
        %1327 = vmatmul.mubr.bf16.gmra.mrb[0].mxu0 %v1273
        %v1328 = vpop.f32.mrb[0].mxu0
        %v1329 = vadd.f32 0.0, %v1328
        %v1330 = vpop.f32.mrb[0].mxu0
        %v1331 = vpop.f32.mrb[0].mxu0
        %v1332 = vpop.f32.mrb[0].mxu0
        %1333 = vdwg.mxu0
        %v1334 = vadd.f32 %v1239, %v1313
        %v1335 = vadd.f32 %v1240, %v1316
        %v1336 = vadd.f32 %v1241, %v1321
        %v1337 = vadd.f32 %v1242, %v1324
        %v1338 = vadd.f32 %v1243, %v1329
        %v1339 = vld [vmem:[#allocation2] sm:$0xf0]
        %v1340 = vld [vmem:[#allocation2 + $0x8] sm:$0xff]
        %v1341 = vld [vmem:[#allocation2 + $0x10] sm:$0xff]
        %v1342 = vld [vmem:[#allocation2 + $0x18] sm:$0x1]
        %v1343 = vld [vmem:[%s3 + $0x30] sm:$0xf]
        %v1344 = vld [vmem:[%s3 + $0x34] sm:$0xf]
        %v1345 = vld [vmem:[%s3 + $0x38] sm:$0xf]
        %vm1346 = vsmask.f32 3328
        %v1348 = vshrl.u32 %v1339, 16
        %v1350 = vrot.slane %v1348, 4
        %v1351 = vshll.u32 %v1339, 16
        %v1353 = vrot.slane %v1351, 5
        %v1354 = vor.u32 %v1350, %v1353
        %v1356 = vshrl.u32 %v1340, 16
        %v1358 = vrot.slane %v1356, 4
        %v1359 = vshll.u32 %v1340, 16
        %v1361 = vrot.slane %v1359, 5
        %v1362 = vor.u32 %v1358, %v1361
        %v1363 = vsel %vm1346, %v1354, %v1362
        %v1365 = vshrl.u32 %v1341, 16
        %v1367 = vrot.slane %v1365, 4
        %v1368 = vshll.u32 %v1341, 16
        %v1370 = vrot.slane %v1368, 5
        %v1371 = vor.u32 %v1367, %v1370
        %v1372 = vsel %vm1346, %v1362, %v1371
        %v1374 = vshll.u32 %v1342, 16
        %v1376 = vrot.slane %v1374, 5
        %v1377 = vsel %vm1346, %v1371, %v1376
        %v1381 = vunpack.c.l.b16 %v1343
        %v1382 = vunpack.c.l.b16 %v1344
        %v1383 = vunpack.c.l.b16 %v1345
        %v1384 = vpack.c.b16 %v1382, %v1381
        %v1385 = vpack.c.b16 %v1383, %v1383
        %v1388 = vsel %vm955, %v1363, 0
        %v1391 = vsel %vm955, %v1372, 0
        %v1394 = vsel %vm955, %v1377, 0
        %v1397 = vsel %vm1014, %v1385, 0
        %1399 = vmatprep.subr.bf16.mxu0 0
        %1400 = vmatpush1.bf16.msra.mxu0 %v1384
        %1401 = vmatprep.subr.bf16.mxu0 0
        %1402 = vmatpush1.bf16.msra.mxu0 %v1397
        %1403 = vmatprep.subr.bf16.mxu0 0
        %1404 = vmatpush1.bf16.msra.mxu0 0
        %1405 = vmatprep.subr.bf16.mxu0 0
        %1406 = vmatpush1.bf16.msra.mxu0 0
        %1407 = vmatprep.subr.bf16.mxu0 0
        %1408 = vmatpush1.bf16.msra.mxu0 0
        %1409 = vmatprep.subr.bf16.mxu0 0
        %1410 = vmatpush1.bf16.msra.mxu0 0
        %1411 = vmatprep.subr.bf16.mxu0 0
        %1412 = vmatpush1.bf16.msra.mxu0 0
        %1413 = vmatprep.subr.bf16.mxu0 0
        %1414 = vmatpush1.bf16.msra.mxu0 0
        %1415 = vmatprep.subr.bf16.mxu0 0
        %1416 = vmatpush1.bf16.msra.mxu0 0
        %1417 = vmatprep.subr.bf16.mxu0 0
        %1418 = vmatpush1.bf16.msra.mxu0 0
        %1419 = vmatprep.subr.bf16.mxu0 0
        %1420 = vmatpush1.bf16.msra.mxu0 0
        %1421 = vmatprep.subr.bf16.mxu0 0
        %1422 = vmatpush1.bf16.msra.mxu0 0
        %1423 = vmatprep.subr.bf16.mxu0 0
        %1424 = vmatpush1.bf16.msra.mxu0 0
        %1425 = vmatprep.subr.bf16.mxu0 0
        %1426 = vmatpush1.bf16.msra.mxu0 0
        %1427 = vmatprep.subr.bf16.mxu0 0
        %1428 = vmatpush1.bf16.msra.mxu0 0
        %1429 = vmatprep.subr.bf16.mxu0 0
        %1430 = vmatpush1.bf16.msra.mxu0 0
        %1431 = vmatprep.mubr.bf16.mxu0 0
        %1432 = vmatmul.mubr.bf16.gmra.mrb[0].mxu0 %v1388
        %v1433 = vpop.f32.mrb[0].mxu0
        %v1434 = vadd.f32 0.0, %v1433
        %v1435 = vpop.f32.mrb[0].mxu0
        %v1436 = vpop.f32.mrb[0].mxu0
        %v1437 = vadd.f32 0.0, %v1436
        %v1438 = vpop.f32.mrb[0].mxu0
        %1439 = vmatprep.mubr.bf16.mxu0 0
        %1440 = vmatmul.mubr.bf16.gmra.mrb[0].mxu0 %v1391
        %v1441 = vpop.f32.mrb[0].mxu0
        %v1442 = vadd.f32 0.0, %v1441
        %v1443 = vpop.f32.mrb[0].mxu0
        %v1444 = vpop.f32.mrb[0].mxu0
        %v1445 = vadd.f32 0.0, %v1444
        %v1446 = vpop.f32.mrb[0].mxu0
        %1447 = vmatprep.mubr.bf16.mxu0 0
        %1448 = vmatmul.mubr.bf16.gmra.mrb[0].mxu0 %v1394
        %v1449 = vpop.f32.mrb[0].mxu0
        %v1450 = vadd.f32 0.0, %v1449
        %v1451 = vpop.f32.mrb[0].mxu0
        %v1452 = vpop.f32.mrb[0].mxu0
        %v1453 = vpop.f32.mrb[0].mxu0
        %1454 = vdwg.mxu0
        %v1455 = vadd.f32 %v1334, %v1434
        %v1456 = vadd.f32 %v1335, %v1437
        %v1457 = vadd.f32 %v1336, %v1442
        %v1458 = vadd.f32 %v1337, %v1445
        %v1459 = vadd.f32 %v1338, %v1450
        %v1460 = vld [vmem:[#allocation2] sm:$0xe0]
        %v1461 = vld [vmem:[%s3 + $0x3c] sm:$0xf]
        %v1462 = vld [vmem:[%s3 + $0x40] sm:$0xf]
        %v1463 = vld [vmem:[%s3 + $0x44] sm:$0xf]
        %vm1468 = vcmask 1042432
        %v1469 = vrot.slane %v1460, 5
        %v1470 = vrot.slane %v1340, 5
        %v1471 = vsel %vm1468, %v1469, %v1470
        %v1472 = vrot.slane %v1341, 5
        %v1473 = vsel %vm1468, %v1470, %v1472
        %v1474 = vrot.slane %v1342, 5
        %v1475 = vsel %vm1468, %v1472, %v1474
        %v1479 = vunpack.c.l.b16 %v1461
        %v1480 = vunpack.c.l.b16 %v1462
        %v1481 = vunpack.c.l.b16 %v1463
        %v1482 = vpack.c.b16 %v1480, %v1479
        %v1483 = vpack.c.b16 %v1481, %v1481
        %v1486 = vsel %vm955, %v1471, 0
        %v1489 = vsel %vm955, %v1473, 0
        %v1492 = vsel %vm955, %v1475, 0
        %v1495 = vsel %vm1014, %v1483, 0
        %1497 = vmatprep.subr.bf16.mxu0 0
        %1498 = vmatpush1.bf16.msra.mxu0 %v1482
        %1499 = vmatprep.subr.bf16.mxu0 0
        %1500 = vmatpush1.bf16.msra.mxu0 %v1495
        %1501 = vmatprep.subr.bf16.mxu0 0
        %1502 = vmatpush1.bf16.msra.mxu0 0
        %1503 = vmatprep.subr.bf16.mxu0 0
        %1504 = vmatpush1.bf16.msra.mxu0 0
        %1505 = vmatprep.subr.bf16.mxu0 0
        %1506 = vmatpush1.bf16.msra.mxu0 0
        %1507 = vmatprep.subr.bf16.mxu0 0
        %1508 = vmatpush1.bf16.msra.mxu0 0
        %1509 = vmatprep.subr.bf16.mxu0 0
        %1510 = vmatpush1.bf16.msra.mxu0 0
        %1511 = vmatprep.subr.bf16.mxu0 0
        %1512 = vmatpush1.bf16.msra.mxu0 0
        %1513 = vmatprep.subr.bf16.mxu0 0
        %1514 = vmatpush1.bf16.msra.mxu0 0
        %1515 = vmatprep.subr.bf16.mxu0 0
        %1516 = vmatpush1.bf16.msra.mxu0 0
        %1517 = vmatprep.subr.bf16.mxu0 0
        %1518 = vmatpush1.bf16.msra.mxu0 0
        %1519 = vmatprep.subr.bf16.mxu0 0
        %1520 = vmatpush1.bf16.msra.mxu0 0
        %1521 = vmatprep.subr.bf16.mxu0 0
        %1522 = vmatpush1.bf16.msra.mxu0 0
        %1523 = vmatprep.subr.bf16.mxu0 0
        %1524 = vmatpush1.bf16.msra.mxu0 0
        %1525 = vmatprep.subr.bf16.mxu0 0
        %1526 = vmatpush1.bf16.msra.mxu0 0
        %1527 = vmatprep.subr.bf16.mxu0 0
        %1528 = vmatpush1.bf16.msra.mxu0 0
        %1529 = vmatprep.mubr.bf16.mxu0 0
        %1530 = vmatmul.mubr.bf16.gmra.mrb[0].mxu0 %v1486
        %v1531 = vpop.f32.mrb[0].mxu0
        %v1532 = vadd.f32 0.0, %v1531
        %v1533 = vpop.f32.mrb[0].mxu0
        %v1534 = vpop.f32.mrb[0].mxu0
        %v1535 = vadd.f32 0.0, %v1534
        %v1536 = vpop.f32.mrb[0].mxu0
        %1537 = vmatprep.mubr.bf16.mxu0 0
        %1538 = vmatmul.mubr.bf16.gmra.mrb[0].mxu0 %v1489
        %v1539 = vpop.f32.mrb[0].mxu0
        %v1540 = vadd.f32 0.0, %v1539
        %v1541 = vpop.f32.mrb[0].mxu0
        %v1542 = vpop.f32.mrb[0].mxu0
        %v1543 = vadd.f32 0.0, %v1542
        %v1544 = vpop.f32.mrb[0].mxu0
        %1545 = vmatprep.mubr.bf16.mxu0 0
        %1546 = vmatmul.mubr.bf16.gmra.mrb[0].mxu0 %v1492
        %v1547 = vpop.f32.mrb[0].mxu0
        %v1548 = vadd.f32 0.0, %v1547
        %v1549 = vpop.f32.mrb[0].mxu0
        %v1550 = vpop.f32.mrb[0].mxu0
        %v1551 = vpop.f32.mrb[0].mxu0
        %1552 = vdwg.mxu0
        %v1553 = vadd.f32 %v1455, %v1532
        %v1554 = vadd.f32 %v1456, %v1535
        %v1555 = vadd.f32 %v1457, %v1540
        %v1556 = vadd.f32 %v1458, %v1543
        %v1557 = vadd.f32 %v1459, %v1548
        %v1558 = vld [vmem:[#allocation2 + $0x18] sm:$0xf]
        %v1559 = vld [vmem:[%s3 + $0x48] sm:$0xf]
        %v1560 = vld [vmem:[%s3 + $0x4c] sm:$0xf]
        %v1561 = vld [vmem:[%s3 + $0x50] sm:$0xf]
        %v1565 = vunpack.c.l.b16 %v1559
        %v1566 = vunpack.c.l.b16 %v1560
        %v1567 = vunpack.c.l.b16 %v1561
        %v1568 = vpack.c.b16 %v1566, %v1565
        %v1569 = vpack.c.b16 %v1567, %v1567
        %v1571 = vsel %vm955, %v1340, 0
        %v1573 = vsel %vm955, %v1341, 0
        %v1576 = vsel %vm955, %v1558, 0
        %v1579 = vsel %vm1014, %v1569, 0
        %1581 = vmatprep.subr.bf16.mxu0 0
        %1582 = vmatpush1.bf16.msra.mxu0 %v1568
        %1583 = vmatprep.subr.bf16.mxu0 0
        %1584 = vmatpush1.bf16.msra.mxu0 %v1579
        %1585 = vmatprep.subr.bf16.mxu0 0
        %1586 = vmatpush1.bf16.msra.mxu0 0
        %1587 = vmatprep.subr.bf16.mxu0 0
        %1588 = vmatpush1.bf16.msra.mxu0 0
        %1589 = vmatprep.subr.bf16.mxu0 0
        %1590 = vmatpush1.bf16.msra.mxu0 0
        %1591 = vmatprep.subr.bf16.mxu0 0
        %1592 = vmatpush1.bf16.msra.mxu0 0
        %1593 = vmatprep.subr.bf16.mxu0 0
        %1594 = vmatpush1.bf16.msra.mxu0 0
        %1595 = vmatprep.subr.bf16.mxu0 0
        %1596 = vmatpush1.bf16.msra.mxu0 0
        %1597 = vmatprep.subr.bf16.mxu0 0
        %1598 = vmatpush1.bf16.msra.mxu0 0
        %1599 = vmatprep.subr.bf16.mxu0 0
        %1600 = vmatpush1.bf16.msra.mxu0 0
        %1601 = vmatprep.subr.bf16.mxu0 0
        %1602 = vmatpush1.bf16.msra.mxu0 0
        %1603 = vmatprep.subr.bf16.mxu0 0
        %1604 = vmatpush1.bf16.msra.mxu0 0
        %1605 = vmatprep.subr.bf16.mxu0 0
        %1606 = vmatpush1.bf16.msra.mxu0 0
        %1607 = vmatprep.subr.bf16.mxu0 0
        %1608 = vmatpush1.bf16.msra.mxu0 0
        %1609 = vmatprep.subr.bf16.mxu0 0
        %1610 = vmatpush1.bf16.msra.mxu0 0
        %1611 = vmatprep.subr.bf16.mxu0 0
        %1612 = vmatpush1.bf16.msra.mxu0 0
        %1613 = vmatprep.mubr.bf16.mxu0 0
        %1614 = vmatmul.mubr.bf16.gmra.mrb[0].mxu0 %v1571
        %v1615 = vpop.f32.mrb[0].mxu0
        %v1616 = vadd.f32 0.0, %v1615
        %v1617 = vpop.f32.mrb[0].mxu0
        %v1618 = vpop.f32.mrb[0].mxu0
        %v1619 = vadd.f32 0.0, %v1618
        %v1620 = vpop.f32.mrb[0].mxu0
        %1621 = vmatprep.mubr.bf16.mxu0 0
        %1622 = vmatmul.mubr.bf16.gmra.mrb[0].mxu0 %v1573
        %v1623 = vpop.f32.mrb[0].mxu0
        %v1624 = vadd.f32 0.0, %v1623
        %v1625 = vpop.f32.mrb[0].mxu0
        %v1626 = vpop.f32.mrb[0].mxu0
        %v1627 = vadd.f32 0.0, %v1626
        %v1628 = vpop.f32.mrb[0].mxu0
        %1629 = vmatprep.mubr.bf16.mxu0 0
        %1630 = vmatmul.mubr.bf16.gmra.mrb[0].mxu0 %v1576
        %v1631 = vpop.f32.mrb[0].mxu0
        %v1632 = vadd.f32 0.0, %v1631
        %v1633 = vpop.f32.mrb[0].mxu0
        %v1634 = vpop.f32.mrb[0].mxu0
        %v1635 = vpop.f32.mrb[0].mxu0
        %1636 = vdwg.mxu0
        %v1637 = vadd.f32 %v1553, %v1616
        %v1638 = vadd.f32 %v1554, %v1619
        %v1639 = vadd.f32 %v1555, %v1624
        %v1640 = vadd.f32 %v1556, %v1627
        %v1641 = vadd.f32 %v1557, %v1632
        %v1642 = vld [vmem:[#allocation2 + $0x18] sm:$0x1f]
        %v1643 = vld [vmem:[%s3 + $0x54] sm:$0xf]
        %v1644 = vld [vmem:[%s3 + $0x58] sm:$0xf]
        %v1645 = vld [vmem:[%s3 + $0x5c] sm:$0xf]
        %v1646 = vrot.slane %v1359, 1
        %v1647 = vor.u32 %v1356, %v1646
        %v1648 = vrot.slane %v1368, 1
        %v1649 = vsel %vm417, %v1647, %v1648
        %v1650 = vor.u32 %v1365, %v1648
        %v1652 = vshll.u32 %v1642, 16
        %v1654 = vrot.slane %v1652, 1
        %v1655 = vsel %vm417, %v1650, %v1654
        %v1656 = vshrl.u32 %v1642, 16
        %v1658 = vor.u32 %v1656, %v1654
        %v1662 = vunpack.c.l.b16 %v1643
        %v1663 = vunpack.c.l.b16 %v1644
        %v1664 = vunpack.c.l.b16 %v1645
        %v1665 = vpack.c.b16 %v1663, %v1662
        %v1666 = vpack.c.b16 %v1664, %v1664
        %v1669 = vsel %vm955, %v1649, 0
        %v1672 = vsel %vm955, %v1655, 0
        %v1675 = vsel %vm955, %v1658, 0
        %v1678 = vsel %vm1014, %v1666, 0
        %1680 = vmatprep.subr.bf16.mxu0 0
        %1681 = vmatpush1.bf16.msra.mxu0 %v1665
        %1682 = vmatprep.subr.bf16.mxu0 0
        %1683 = vmatpush1.bf16.msra.mxu0 %v1678
        %1684 = vmatprep.subr.bf16.mxu0 0
        %1685 = vmatpush1.bf16.msra.mxu0 0
        %1686 = vmatprep.subr.bf16.mxu0 0
        %1687 = vmatpush1.bf16.msra.mxu0 0
        %1688 = vmatprep.subr.bf16.mxu0 0
        %1689 = vmatpush1.bf16.msra.mxu0 0
        %1690 = vmatprep.subr.bf16.mxu0 0
        %1691 = vmatpush1.bf16.msra.mxu0 0
        %1692 = vmatprep.subr.bf16.mxu0 0
        %1693 = vmatpush1.bf16.msra.mxu0 0
        %1694 = vmatprep.subr.bf16.mxu0 0
        %1695 = vmatpush1.bf16.msra.mxu0 0
        %1696 = vmatprep.subr.bf16.mxu0 0
        %1697 = vmatpush1.bf16.msra.mxu0 0
        %1698 = vmatprep.subr.bf16.mxu0 0
        %1699 = vmatpush1.bf16.msra.mxu0 0
        %1700 = vmatprep.subr.bf16.mxu0 0
        %1701 = vmatpush1.bf16.msra.mxu0 0
        %1702 = vmatprep.subr.bf16.mxu0 0
        %1703 = vmatpush1.bf16.msra.mxu0 0
        %1704 = vmatprep.subr.bf16.mxu0 0
        %1705 = vmatpush1.bf16.msra.mxu0 0
        %1706 = vmatprep.subr.bf16.mxu0 0
        %1707 = vmatpush1.bf16.msra.mxu0 0
        %1708 = vmatprep.subr.bf16.mxu0 0
        %1709 = vmatpush1.bf16.msra.mxu0 0
        %1710 = vmatprep.subr.bf16.mxu0 0
        %1711 = vmatpush1.bf16.msra.mxu0 0
        %1712 = vmatprep.mubr.bf16.mxu0 0
        %1713 = vmatmul.mubr.bf16.gmra.mrb[0].mxu0 %v1669
        %v1714 = vpop.f32.mrb[0].mxu0
        %v1715 = vadd.f32 0.0, %v1714
        %v1716 = vpop.f32.mrb[0].mxu0
        %v1717 = vpop.f32.mrb[0].mxu0
        %v1718 = vadd.f32 0.0, %v1717
        %v1719 = vpop.f32.mrb[0].mxu0
        %1720 = vmatprep.mubr.bf16.mxu0 0
        %1721 = vmatmul.mubr.bf16.gmra.mrb[0].mxu0 %v1672
        %v1722 = vpop.f32.mrb[0].mxu0
        %v1723 = vadd.f32 0.0, %v1722
        %v1724 = vpop.f32.mrb[0].mxu0
        %v1725 = vpop.f32.mrb[0].mxu0
        %v1726 = vadd.f32 0.0, %v1725
        %v1727 = vpop.f32.mrb[0].mxu0
        %1728 = vmatprep.mubr.bf16.mxu0 0
        %1729 = vmatmul.mubr.bf16.gmra.mrb[0].mxu0 %v1675
        %v1730 = vpop.f32.mrb[0].mxu0
        %v1731 = vadd.f32 0.0, %v1730
        %v1732 = vpop.f32.mrb[0].mxu0
        %v1733 = vpop.f32.mrb[0].mxu0
        %v1734 = vpop.f32.mrb[0].mxu0
        %1735 = vdwg.mxu0
        %v1736 = vadd.f32 %v1637, %v1715
        %v1737 = vadd.f32 %v1638, %v1718
        %v1738 = vadd.f32 %v1639, %v1723
        %v1739 = vadd.f32 %v1640, %v1726
        %v1740 = vadd.f32 %v1641, %v1731
        %v1741 = vld [vmem:[#allocation2 + $0x8] sm:$0xfe]
        %v1742 = vld [vmem:[%s3 + $0x60] sm:$0xf]
        %v1743 = vld [vmem:[%s3 + $0x64] sm:$0xf]
        %v1744 = vld [vmem:[%s3 + $0x68] sm:$0xf]
        %v1747 = vrot.slane %v1741, 1
        %v1748 = vrot.slane %v1341, 1
        %v1749 = vsel %vm1156, %v1747, %v1748
        %v1750 = vrot.slane %v1642, 1
        %v1751 = vsel %vm1156, %v1748, %v1750
        %v1755 = vunpack.c.l.b16 %v1742
        %v1756 = vunpack.c.l.b16 %v1743
        %v1757 = vunpack.c.l.b16 %v1744
        %v1758 = vpack.c.b16 %v1756, %v1755
        %v1759 = vpack.c.b16 %v1757, %v1757
        %v1762 = vsel %vm955, %v1749, 0
        %v1765 = vsel %vm955, %v1751, 0
        %v1768 = vsel %vm955, %v1750, 0
        %v1771 = vsel %vm1014, %v1759, 0
        %1773 = vmatprep.subr.bf16.mxu0 0
        %1774 = vmatpush1.bf16.msra.mxu0 %v1758
        %1775 = vmatprep.subr.bf16.mxu0 0
        %1776 = vmatpush1.bf16.msra.mxu0 %v1771
        %1777 = vmatprep.subr.bf16.mxu0 0
        %1778 = vmatpush1.bf16.msra.mxu0 0
        %1779 = vmatprep.subr.bf16.mxu0 0
        %1780 = vmatpush1.bf16.msra.mxu0 0
        %1781 = vmatprep.subr.bf16.mxu0 0
        %1782 = vmatpush1.bf16.msra.mxu0 0
        %1783 = vmatprep.subr.bf16.mxu0 0
        %1784 = vmatpush1.bf16.msra.mxu0 0
        %1785 = vmatprep.subr.bf16.mxu0 0
        %1786 = vmatpush1.bf16.msra.mxu0 0
        %1787 = vmatprep.subr.bf16.mxu0 0
        %1788 = vmatpush1.bf16.msra.mxu0 0
        %1789 = vmatprep.subr.bf16.mxu0 0
        %1790 = vmatpush1.bf16.msra.mxu0 0
        %1791 = vmatprep.subr.bf16.mxu0 0
        %1792 = vmatpush1.bf16.msra.mxu0 0
        %1793 = vmatprep.subr.bf16.mxu0 0
        %1794 = vmatpush1.bf16.msra.mxu0 0
        %1795 = vmatprep.subr.bf16.mxu0 0
        %1796 = vmatpush1.bf16.msra.mxu0 0
        %1797 = vmatprep.subr.bf16.mxu0 0
        %1798 = vmatpush1.bf16.msra.mxu0 0
        %1799 = vmatprep.subr.bf16.mxu0 0
        %1800 = vmatpush1.bf16.msra.mxu0 0
        %1801 = vmatprep.subr.bf16.mxu0 0
        %1802 = vmatpush1.bf16.msra.mxu0 0
        %1803 = vmatprep.subr.bf16.mxu0 0
        %1804 = vmatpush1.bf16.msra.mxu0 0
        %1805 = vmatprep.mubr.bf16.mxu0 0
        %1806 = vmatmul.mubr.bf16.gmra.mrb[0].mxu0 %v1762
        %v1807 = vpop.f32.mrb[0].mxu0
        %v1808 = vadd.f32 0.0, %v1807
        %v1809 = vpop.f32.mrb[0].mxu0
        %v1810 = vpop.f32.mrb[0].mxu0
        %v1811 = vadd.f32 0.0, %v1810
        %v1812 = vpop.f32.mrb[0].mxu0
        %1813 = vmatprep.mubr.bf16.mxu0 0
        %1814 = vmatmul.mubr.bf16.gmra.mrb[0].mxu0 %v1765
        %v1815 = vpop.f32.mrb[0].mxu0
        %v1816 = vadd.f32 0.0, %v1815
        %v1817 = vpop.f32.mrb[0].mxu0
        %v1818 = vpop.f32.mrb[0].mxu0
        %v1819 = vadd.f32 0.0, %v1818
        %v1820 = vpop.f32.mrb[0].mxu0
        %1821 = vmatprep.mubr.bf16.mxu0 0
        %1822 = vmatmul.mubr.bf16.gmra.mrb[0].mxu0 %v1768
        %v1823 = vpop.f32.mrb[0].mxu0
        %v1824 = vadd.f32 0.0, %v1823
        %v1825 = vpop.f32.mrb[0].mxu0
        %v1826 = vpop.f32.mrb[0].mxu0
        %v1827 = vpop.f32.mrb[0].mxu0
        %1828 = vdwg.mxu0
        %v1829 = vadd.f32 %v1736, %v1808
        %v1830 = vadd.f32 %v1737, %v1811
        %v1831 = vadd.f32 %v1738, %v1816
        %v1832 = vadd.f32 %v1739, %v1819
        %v1833 = vadd.f32 %v1740, %v1824
        %1839 = vrot.lane.b32.xlu0 %v1829, 112
        %v1840 = vpop.permute.xlu0 %1839
        %1841 = vrot.lane.b32.xlu0 %v1830, 112
        %v1842 = vpop.permute.xlu0 %1841
        %1843 = vrot.lane.b32.xlu0 %v1831, 112
        %v1844 = vpop.permute.xlu0 %1843
        %1845 = vrot.lane.b32.xlu0 %v1832, 112
        %v1846 = vpop.permute.xlu0 %1845
        %1847 = vrot.lane.b32.xlu0 %v1833, 112
        %v1848 = vpop.permute.xlu0 %1847
        %v1854 = vmax.f32 %v1829, %v1840
        %v1855 = vmax.f32 %v1830, %v1842
        %v1856 = vmax.f32 %v1831, %v1844
        %v1857 = vmax.f32 %v1832, %v1846
        %v1858 = vmax.f32 %v1833, %v1848
        %1864 = vrot.lane.b32.xlu0 %v1854, 96
        %v1865 = vpop.permute.xlu0 %1864
        %1866 = vrot.lane.b32.xlu0 %v1855, 96
        %v1867 = vpop.permute.xlu0 %1866
        %1868 = vrot.lane.b32.xlu0 %v1856, 96
        %v1869 = vpop.permute.xlu0 %1868
        %1870 = vrot.lane.b32.xlu0 %v1857, 96
        %v1871 = vpop.permute.xlu0 %1870
        %1872 = vrot.lane.b32.xlu0 %v1858, 96
        %v1873 = vpop.permute.xlu0 %1872
        %v1879 = vmax.f32 %v1854, %v1865
        %v1880 = vmax.f32 %v1855, %v1867
        %v1881 = vmax.f32 %v1856, %v1869
        %v1882 = vmax.f32 %v1857, %v1871
        %v1883 = vmax.f32 %v1858, %v1873
        %v1884 = vld [vmem:[%s4] sm:$0x1]
        %v1886 = vlaneseq
        %v1887 = vshrl.u32 %v1886, 7
        %v1888 = vsub.s32 0, %v1887
        %v1889 = vrot.slane %v1884, %v1888
        %v1891 = vadd.f32 %v1879, %v1889
        %v1892 = vadd.f32 %v1880, %v1889
        %v1893 = vadd.f32 %v1881, %v1889
        %v1894 = vadd.f32 %v1882, %v1889
        %v1895 = vadd.f32 %v1883, %v1889
        %v1896 = vmax.f32 %v1891, 0.0
        %v1897 = vmax.f32 %v1892, 0.0
        %v1898 = vmax.f32 %v1893, 0.0
        %v1899 = vmax.f32 %v1894, 0.0
        %v1900 = vmax.f32 %v1895, 0.0
        %v1901 = vpack.c.bf16 %v1897, %v1896
        %v1902 = vpack.c.bf16 %v1899, %v1898
        %v1903 = vpack.c.bf16 %v1900, %v1900
        %v1907 = vunpack.c.l.b16 %v1901
        %v1908 = vunpack.c.h.b16 %v1901
        %v1909 = vunpack.c.l.b16 %v1902
        %v1910 = vunpack.c.h.b16 %v1902
        %v1911 = vunpack.c.l.b16 %v1903
        %v1912 = vpack.c.b16 %v1907, %v1907
        %v1913 = vpack.c.b16 %v1908, %v1908
        %v1914 = vpack.c.b16 %v1909, %v1909
        %v1915 = vpack.c.b16 %v1910, %v1910
        %v1916 = vpack.c.b16 %v1911, %v1911
        %vm1922 = vcmask 125952
        %1923 = vst.msk [vmem:[#allocation3] sm:$0xf] %vm1922, %v1912
        %1924 = vst.msk [vmem:[#allocation3 + $0x4] sm:$0xf] %vm1922, %v1913
        %1925 = vst.msk [vmem:[#allocation3 + $0x8] sm:$0xf] %vm1922, %v1914
        %1926 = vst.msk [vmem:[#allocation3 + $0xc] sm:$0xf] %vm1922, %v1915
        %1927 = vst.msk [vmem:[#allocation3 + $0x10] sm:$0xf] %vm1922, %v1916
        %v1928 = vld [vmem:[#allocation3] sm:$0x1]
        %v1929 = vld [vmem:[%s5] sm:$0xf]
        %v1930 = vld [vmem:[%s5 + $0x4] sm:$0xf]
        %v1931 = vld [vmem:[%s5 + $0x8] sm:$0xf]
        %v1932 = vld [vmem:[%s5 + $0xc] sm:$0xf]
        %v1934 = vunpack.c.l.b16 %v1928
        %v1935 = vpack.c.b16 %v1934, %v1934
        %v1937 = vshrl.u32 %v1935, 16
        %v1941 = vunpack.c.l.b16 %v1931
        %v1942 = vunpack.c.l.b16 %v1932
        %v1943 = vpack.c.b16 %v1942, %v1941
        %v1946 = vsel %vm455, %v1937, 0
        %1948 = vmatprep.subr.bf16.mxu0 0
        %1949 = vmatpush1.bf16.msra.mxu0 %v1943
        %1950 = vmatprep.subr.bf16.mxu0 0
        %1951 = vmatpush1.bf16.msra.mxu0 0
        %1952 = vmatprep.subr.bf16.mxu0 0
        %1953 = vmatpush1.bf16.msra.mxu0 0
        %1954 = vmatprep.subr.bf16.mxu0 0
        %1955 = vmatpush1.bf16.msra.mxu0 0
        %1956 = vmatprep.subr.bf16.mxu0 0
        %1957 = vmatpush1.bf16.msra.mxu0 0
        %1958 = vmatprep.subr.bf16.mxu0 0
        %1959 = vmatpush1.bf16.msra.mxu0 0
        %1960 = vmatprep.subr.bf16.mxu0 0
        %1961 = vmatpush1.bf16.msra.mxu0 0
        %1962 = vmatprep.subr.bf16.mxu0 0
        %1963 = vmatpush1.bf16.msra.mxu0 0
        %1964 = vmatprep.subr.bf16.mxu0 0
        %1965 = vmatpush1.bf16.msra.mxu0 0
        %1966 = vmatprep.subr.bf16.mxu0 0
        %1967 = vmatpush1.bf16.msra.mxu0 0
        %1968 = vmatprep.subr.bf16.mxu0 0
        %1969 = vmatpush1.bf16.msra.mxu0 0
        %1970 = vmatprep.subr.bf16.mxu0 0
        %1971 = vmatpush1.bf16.msra.mxu0 0
        %1972 = vmatprep.subr.bf16.mxu0 0
        %1973 = vmatpush1.bf16.msra.mxu0 0
        %1974 = vmatprep.subr.bf16.mxu0 0
        %1975 = vmatpush1.bf16.msra.mxu0 0
        %1976 = vmatprep.subr.bf16.mxu0 0
        %1977 = vmatpush1.bf16.msra.mxu0 0
        %1978 = vmatprep.subr.bf16.mxu0 0
        %1979 = vmatpush1.bf16.msra.mxu0 0
        %1980 = vmatprep.mubr.bf16.mxu0 0
        %1981 = vmatmul.mubr.bf16.gmra.mrb[0].mxu0 %v1946
        %v1982 = vpop.f32.mrb[0].mxu0
        %v1983 = vadd.f32 0.0, %v1982
        %v1984 = vpop.f32.mrb[0].mxu0
        %v1985 = vpop.f32.mrb[0].mxu0
        %v1986 = vpop.f32.mrb[0].mxu0
        %1987 = vdwg.mxu0
        %v1990 = vunpack.c.l.b16 %v1929
        %v1991 = vunpack.c.l.b16 %v1930
        %v1992 = vpack.c.b16 %v1991, %v1990
        %v1995 = vsel %vm455, %v1928, 0
        %1997 = vmatprep.subr.bf16.mxu0 0
        %1998 = vmatpush1.bf16.msra.mxu0 %v1992
        %1999 = vmatprep.subr.bf16.mxu0 0
        %2000 = vmatpush1.bf16.msra.mxu0 0
        %2001 = vmatprep.subr.bf16.mxu0 0
        %2002 = vmatpush1.bf16.msra.mxu0 0
        %2003 = vmatprep.subr.bf16.mxu0 0
        %2004 = vmatpush1.bf16.msra.mxu0 0
        %2005 = vmatprep.subr.bf16.mxu0 0
        %2006 = vmatpush1.bf16.msra.mxu0 0
        %2007 = vmatprep.subr.bf16.mxu0 0
        %2008 = vmatpush1.bf16.msra.mxu0 0
        %2009 = vmatprep.subr.bf16.mxu0 0
        %2010 = vmatpush1.bf16.msra.mxu0 0
        %2011 = vmatprep.subr.bf16.mxu0 0
        %2012 = vmatpush1.bf16.msra.mxu0 0
        %2013 = vmatprep.subr.bf16.mxu0 0
        %2014 = vmatpush1.bf16.msra.mxu0 0
        %2015 = vmatprep.subr.bf16.mxu0 0
        %2016 = vmatpush1.bf16.msra.mxu0 0
        %2017 = vmatprep.subr.bf16.mxu0 0
        %2018 = vmatpush1.bf16.msra.mxu0 0
        %2019 = vmatprep.subr.bf16.mxu0 0
        %2020 = vmatpush1.bf16.msra.mxu0 0
        %2021 = vmatprep.subr.bf16.mxu0 0
        %2022 = vmatpush1.bf16.msra.mxu0 0
        %2023 = vmatprep.subr.bf16.mxu0 0
        %2024 = vmatpush1.bf16.msra.mxu0 0
        %2025 = vmatprep.subr.bf16.mxu0 0
        %2026 = vmatpush1.bf16.msra.mxu0 0
        %2027 = vmatprep.subr.bf16.mxu0 0
        %2028 = vmatpush1.bf16.msra.mxu0 0
        %2029 = vmatprep.mubr.bf16.mxu0 0
        %2030 = vmatmul.mubr.bf16.gmra.mrb[0].mxu0 %v1995
        %v2031 = vpop.f32.mrb[0].mxu0
        %v2032 = vadd.f32 %v1983, %v2031
        %v2033 = vpop.f32.mrb[0].mxu0
        %v2034 = vpop.f32.mrb[0].mxu0
        %v2035 = vpop.f32.mrb[0].mxu0
        %2036 = vdwg.mxu0
        %v2037 = vld [vmem:[#allocation3] sm:$0x2]
        %v2038 = vld [vmem:[%s5 + $0x10] sm:$0xf]
        %v2039 = vld [vmem:[%s5 + $0x14] sm:$0xf]
        %v2041 = vunpack.c.l.b16 %v2037
        %v2042 = vpack.c.b16 %v2041, %v2041
        %v2043 = vrot.slane %v2042, 1
        %v2046 = vunpack.c.l.b16 %v2038
        %v2047 = vunpack.c.l.b16 %v2039
        %v2048 = vpack.c.b16 %v2047, %v2046
        %v2051 = vsel %vm455, %v2043, 0
        %2053 = vmatprep.subr.bf16.mxu0 0
        %2054 = vmatpush1.bf16.msra.mxu0 %v2048
        %2055 = vmatprep.subr.bf16.mxu0 0
        %2056 = vmatpush1.bf16.msra.mxu0 0
        %2057 = vmatprep.subr.bf16.mxu0 0
        %2058 = vmatpush1.bf16.msra.mxu0 0
        %2059 = vmatprep.subr.bf16.mxu0 0
        %2060 = vmatpush1.bf16.msra.mxu0 0
        %2061 = vmatprep.subr.bf16.mxu0 0
        %2062 = vmatpush1.bf16.msra.mxu0 0
        %2063 = vmatprep.subr.bf16.mxu0 0
        %2064 = vmatpush1.bf16.msra.mxu0 0
        %2065 = vmatprep.subr.bf16.mxu0 0
        %2066 = vmatpush1.bf16.msra.mxu0 0
        %2067 = vmatprep.subr.bf16.mxu0 0
        %2068 = vmatpush1.bf16.msra.mxu0 0
        %2069 = vmatprep.subr.bf16.mxu0 0
        %2070 = vmatpush1.bf16.msra.mxu0 0
        %2071 = vmatprep.subr.bf16.mxu0 0
        %2072 = vmatpush1.bf16.msra.mxu0 0
        %2073 = vmatprep.subr.bf16.mxu0 0
        %2074 = vmatpush1.bf16.msra.mxu0 0
        %2075 = vmatprep.subr.bf16.mxu0 0
        %2076 = vmatpush1.bf16.msra.mxu0 0
        %2077 = vmatprep.subr.bf16.mxu0 0
        %2078 = vmatpush1.bf16.msra.mxu0 0
        %2079 = vmatprep.subr.bf16.mxu0 0
        %2080 = vmatpush1.bf16.msra.mxu0 0
        %2081 = vmatprep.subr.bf16.mxu0 0
        %2082 = vmatpush1.bf16.msra.mxu0 0
        %2083 = vmatprep.subr.bf16.mxu0 0
        %2084 = vmatpush1.bf16.msra.mxu0 0
        %2085 = vmatprep.mubr.bf16.mxu0 0
        %2086 = vmatmul.mubr.bf16.gmra.mrb[0].mxu0 %v2051
        %v2087 = vpop.f32.mrb[0].mxu0
        %v2088 = vadd.f32 0.0, %v2087
        %v2089 = vpop.f32.mrb[0].mxu0
        %v2090 = vpop.f32.mrb[0].mxu0
        %v2091 = vpop.f32.mrb[0].mxu0
        %2092 = vdwg.mxu0
        %v2093 = vadd.f32 %v2032, %v2088
        %v2094 = vld [vmem:[%s5 + $0x18] sm:$0xf]
        %v2095 = vld [vmem:[%s5 + $0x1c] sm:$0xf]
        %v2097 = vshrl.u32 %v2042, 16
        %v2099 = vrot.slane %v2097, 1
        %v2102 = vunpack.c.l.b16 %v2094
        %v2103 = vunpack.c.l.b16 %v2095
        %v2104 = vpack.c.b16 %v2103, %v2102
        %v2107 = vsel %vm455, %v2099, 0
        %2109 = vmatprep.subr.bf16.mxu0 0
        %2110 = vmatpush1.bf16.msra.mxu0 %v2104
        %2111 = vmatprep.subr.bf16.mxu0 0
        %2112 = vmatpush1.bf16.msra.mxu0 0
        %2113 = vmatprep.subr.bf16.mxu0 0
        %2114 = vmatpush1.bf16.msra.mxu0 0
        %2115 = vmatprep.subr.bf16.mxu0 0
        %2116 = vmatpush1.bf16.msra.mxu0 0
        %2117 = vmatprep.subr.bf16.mxu0 0
        %2118 = vmatpush1.bf16.msra.mxu0 0
        %2119 = vmatprep.subr.bf16.mxu0 0
        %2120 = vmatpush1.bf16.msra.mxu0 0
        %2121 = vmatprep.subr.bf16.mxu0 0
        %2122 = vmatpush1.bf16.msra.mxu0 0
        %2123 = vmatprep.subr.bf16.mxu0 0
        %2124 = vmatpush1.bf16.msra.mxu0 0
        %2125 = vmatprep.subr.bf16.mxu0 0
        %2126 = vmatpush1.bf16.msra.mxu0 0
        %2127 = vmatprep.subr.bf16.mxu0 0
        %2128 = vmatpush1.bf16.msra.mxu0 0
        %2129 = vmatprep.subr.bf16.mxu0 0
        %2130 = vmatpush1.bf16.msra.mxu0 0
        %2131 = vmatprep.subr.bf16.mxu0 0
        %2132 = vmatpush1.bf16.msra.mxu0 0
        %2133 = vmatprep.subr.bf16.mxu0 0
        %2134 = vmatpush1.bf16.msra.mxu0 0
        %2135 = vmatprep.subr.bf16.mxu0 0
        %2136 = vmatpush1.bf16.msra.mxu0 0
        %2137 = vmatprep.subr.bf16.mxu0 0
        %2138 = vmatpush1.bf16.msra.mxu0 0
        %2139 = vmatprep.subr.bf16.mxu0 0
        %2140 = vmatpush1.bf16.msra.mxu0 0
        %2141 = vmatprep.mubr.bf16.mxu0 0
        %2142 = vmatmul.mubr.bf16.gmra.mrb[0].mxu0 %v2107
        %v2143 = vpop.f32.mrb[0].mxu0
        %v2144 = vadd.f32 0.0, %v2143
        %v2145 = vpop.f32.mrb[0].mxu0
        %v2146 = vpop.f32.mrb[0].mxu0
        %v2147 = vpop.f32.mrb[0].mxu0
        %2148 = vdwg.mxu0
        %v2149 = vadd.f32 %v2093, %v2144
        %v2150 = vld [vmem:[#allocation3] sm:$0x4]
        %v2151 = vld [vmem:[%s5 + $0x20] sm:$0xf]
        %v2152 = vld [vmem:[%s5 + $0x24] sm:$0xf]
        %v2154 = vunpack.c.l.b16 %v2150
        %v2155 = vpack.c.b16 %v2154, %v2154
        %v2156 = vrot.slane %v2155, 2
        %v2159 = vunpack.c.l.b16 %v2151
        %v2160 = vunpack.c.l.b16 %v2152
        %v2161 = vpack.c.b16 %v2160, %v2159
        %v2164 = vsel %vm455, %v2156, 0
        %2166 = vmatprep.subr.bf16.mxu0 0
        %2167 = vmatpush1.bf16.msra.mxu0 %v2161
        %2168 = vmatprep.subr.bf16.mxu0 0
        %2169 = vmatpush1.bf16.msra.mxu0 0
        %2170 = vmatprep.subr.bf16.mxu0 0
        %2171 = vmatpush1.bf16.msra.mxu0 0
        %2172 = vmatprep.subr.bf16.mxu0 0
        %2173 = vmatpush1.bf16.msra.mxu0 0
        %2174 = vmatprep.subr.bf16.mxu0 0
        %2175 = vmatpush1.bf16.msra.mxu0 0
        %2176 = vmatprep.subr.bf16.mxu0 0
        %2177 = vmatpush1.bf16.msra.mxu0 0
        %2178 = vmatprep.subr.bf16.mxu0 0
        %2179 = vmatpush1.bf16.msra.mxu0 0
        %2180 = vmatprep.subr.bf16.mxu0 0
        %2181 = vmatpush1.bf16.msra.mxu0 0
        %2182 = vmatprep.subr.bf16.mxu0 0
        %2183 = vmatpush1.bf16.msra.mxu0 0
        %2184 = vmatprep.subr.bf16.mxu0 0
        %2185 = vmatpush1.bf16.msra.mxu0 0
        %2186 = vmatprep.subr.bf16.mxu0 0
        %2187 = vmatpush1.bf16.msra.mxu0 0
        %2188 = vmatprep.subr.bf16.mxu0 0
        %2189 = vmatpush1.bf16.msra.mxu0 0
        %2190 = vmatprep.subr.bf16.mxu0 0
        %2191 = vmatpush1.bf16.msra.mxu0 0
        %2192 = vmatprep.subr.bf16.mxu0 0
        %2193 = vmatpush1.bf16.msra.mxu0 0
        %2194 = vmatprep.subr.bf16.mxu0 0
        %2195 = vmatpush1.bf16.msra.mxu0 0
        %2196 = vmatprep.subr.bf16.mxu0 0
        %2197 = vmatpush1.bf16.msra.mxu0 0
        %2198 = vmatprep.mubr.bf16.mxu0 0
        %2199 = vmatmul.mubr.bf16.gmra.mrb[0].mxu0 %v2164
        %v2200 = vpop.f32.mrb[0].mxu0
        %v2201 = vadd.f32 0.0, %v2200
        %v2202 = vpop.f32.mrb[0].mxu0
        %v2203 = vpop.f32.mrb[0].mxu0
        %v2204 = vpop.f32.mrb[0].mxu0
        %2205 = vdwg.mxu0
        %v2206 = vadd.f32 %v2149, %v2201
        %v2207 = vld [vmem:[#allocation3 + $0x4] sm:$0x1]
        %v2208 = vld [vmem:[%s5 + $0x28] sm:$0xf]
        %v2209 = vld [vmem:[%s5 + $0x2c] sm:$0xf]
        %v2212 = vunpack.c.l.b16 %v2208
        %v2213 = vunpack.c.l.b16 %v2209
        %v2214 = vpack.c.b16 %v2213, %v2212
        %v2217 = vsel %vm455, %v2207, 0
        %2219 = vmatprep.subr.bf16.mxu0 0
        %2220 = vmatpush1.bf16.msra.mxu0 %v2214
        %2221 = vmatprep.subr.bf16.mxu0 0
        %2222 = vmatpush1.bf16.msra.mxu0 0
        %2223 = vmatprep.subr.bf16.mxu0 0
        %2224 = vmatpush1.bf16.msra.mxu0 0
        %2225 = vmatprep.subr.bf16.mxu0 0
        %2226 = vmatpush1.bf16.msra.mxu0 0
        %2227 = vmatprep.subr.bf16.mxu0 0
        %2228 = vmatpush1.bf16.msra.mxu0 0
        %2229 = vmatprep.subr.bf16.mxu0 0
        %2230 = vmatpush1.bf16.msra.mxu0 0
        %2231 = vmatprep.subr.bf16.mxu0 0
        %2232 = vmatpush1.bf16.msra.mxu0 0
        %2233 = vmatprep.subr.bf16.mxu0 0
        %2234 = vmatpush1.bf16.msra.mxu0 0
        %2235 = vmatprep.subr.bf16.mxu0 0
        %2236 = vmatpush1.bf16.msra.mxu0 0
        %2237 = vmatprep.subr.bf16.mxu0 0
        %2238 = vmatpush1.bf16.msra.mxu0 0
        %2239 = vmatprep.subr.bf16.mxu0 0
        %2240 = vmatpush1.bf16.msra.mxu0 0
        %2241 = vmatprep.subr.bf16.mxu0 0
        %2242 = vmatpush1.bf16.msra.mxu0 0
        %2243 = vmatprep.subr.bf16.mxu0 0
        %2244 = vmatpush1.bf16.msra.mxu0 0
        %2245 = vmatprep.subr.bf16.mxu0 0
        %2246 = vmatpush1.bf16.msra.mxu0 0
        %2247 = vmatprep.subr.bf16.mxu0 0
        %2248 = vmatpush1.bf16.msra.mxu0 0
        %2249 = vmatprep.subr.bf16.mxu0 0
        %2250 = vmatpush1.bf16.msra.mxu0 0
        %2251 = vmatprep.mubr.bf16.mxu0 0
        %2252 = vmatmul.mubr.bf16.gmra.mrb[0].mxu0 %v2217
        %v2253 = vpop.f32.mrb[0].mxu0
        %v2254 = vadd.f32 0.0, %v2253
        %v2255 = vpop.f32.mrb[0].mxu0
        %v2256 = vpop.f32.mrb[0].mxu0
        %v2257 = vpop.f32.mrb[0].mxu0
        %2258 = vdwg.mxu0
        %v2259 = vadd.f32 %v2206, %v2254
        %v2260 = vld [vmem:[%s5 + $0x30] sm:$0xf]
        %v2261 = vld [vmem:[%s5 + $0x34] sm:$0xf]
        %v2263 = vunpack.c.l.b16 %v2207
        %v2264 = vpack.c.b16 %v2263, %v2263
        %v2266 = vshrl.u32 %v2264, 16
        %v2270 = vunpack.c.l.b16 %v2260
        %v2271 = vunpack.c.l.b16 %v2261
        %v2272 = vpack.c.b16 %v2271, %v2270
        %v2275 = vsel %vm455, %v2266, 0
        %2277 = vmatprep.subr.bf16.mxu0 0
        %2278 = vmatpush1.bf16.msra.mxu0 %v2272
        %2279 = vmatprep.subr.bf16.mxu0 0
        %2280 = vmatpush1.bf16.msra.mxu0 0
        %2281 = vmatprep.subr.bf16.mxu0 0
        %2282 = vmatpush1.bf16.msra.mxu0 0
        %2283 = vmatprep.subr.bf16.mxu0 0
        %2284 = vmatpush1.bf16.msra.mxu0 0
        %2285 = vmatprep.subr.bf16.mxu0 0
        %2286 = vmatpush1.bf16.msra.mxu0 0
        %2287 = vmatprep.subr.bf16.mxu0 0
        %2288 = vmatpush1.bf16.msra.mxu0 0
        %2289 = vmatprep.subr.bf16.mxu0 0
        %2290 = vmatpush1.bf16.msra.mxu0 0
        %2291 = vmatprep.subr.bf16.mxu0 0
        %2292 = vmatpush1.bf16.msra.mxu0 0
        %2293 = vmatprep.subr.bf16.mxu0 0
        %2294 = vmatpush1.bf16.msra.mxu0 0
        %2295 = vmatprep.subr.bf16.mxu0 0
        %2296 = vmatpush1.bf16.msra.mxu0 0
        %2297 = vmatprep.subr.bf16.mxu0 0
        %2298 = vmatpush1.bf16.msra.mxu0 0
        %2299 = vmatprep.subr.bf16.mxu0 0
        %2300 = vmatpush1.bf16.msra.mxu0 0
        %2301 = vmatprep.subr.bf16.mxu0 0
        %2302 = vmatpush1.bf16.msra.mxu0 0
        %2303 = vmatprep.subr.bf16.mxu0 0
        %2304 = vmatpush1.bf16.msra.mxu0 0
        %2305 = vmatprep.subr.bf16.mxu0 0
        %2306 = vmatpush1.bf16.msra.mxu0 0
        %2307 = vmatprep.subr.bf16.mxu0 0
        %2308 = vmatpush1.bf16.msra.mxu0 0
        %2309 = vmatprep.mubr.bf16.mxu0 0
        %2310 = vmatmul.mubr.bf16.gmra.mrb[0].mxu0 %v2275
        %v2311 = vpop.f32.mrb[0].mxu0
        %v2312 = vadd.f32 0.0, %v2311
        %v2313 = vpop.f32.mrb[0].mxu0
        %v2314 = vpop.f32.mrb[0].mxu0
        %v2315 = vpop.f32.mrb[0].mxu0
        %2316 = vdwg.mxu0
        %v2317 = vadd.f32 %v2259, %v2312
        %v2318 = vld [vmem:[#allocation3 + $0x4] sm:$0x2]
        %v2319 = vld [vmem:[%s5 + $0x38] sm:$0xf]
        %v2320 = vld [vmem:[%s5 + $0x3c] sm:$0xf]
        %v2322 = vunpack.c.l.b16 %v2318
        %v2323 = vpack.c.b16 %v2322, %v2322
        %v2324 = vrot.slane %v2323, 1
        %v2327 = vunpack.c.l.b16 %v2319
        %v2328 = vunpack.c.l.b16 %v2320
        %v2329 = vpack.c.b16 %v2328, %v2327
        %v2332 = vsel %vm455, %v2324, 0
        %2334 = vmatprep.subr.bf16.mxu0 0
        %2335 = vmatpush1.bf16.msra.mxu0 %v2329
        %2336 = vmatprep.subr.bf16.mxu0 0
        %2337 = vmatpush1.bf16.msra.mxu0 0
        %2338 = vmatprep.subr.bf16.mxu0 0
        %2339 = vmatpush1.bf16.msra.mxu0 0
        %2340 = vmatprep.subr.bf16.mxu0 0
        %2341 = vmatpush1.bf16.msra.mxu0 0
        %2342 = vmatprep.subr.bf16.mxu0 0
        %2343 = vmatpush1.bf16.msra.mxu0 0
        %2344 = vmatprep.subr.bf16.mxu0 0
        %2345 = vmatpush1.bf16.msra.mxu0 0
        %2346 = vmatprep.subr.bf16.mxu0 0
        %2347 = vmatpush1.bf16.msra.mxu0 0
        %2348 = vmatprep.subr.bf16.mxu0 0
        %2349 = vmatpush1.bf16.msra.mxu0 0
        %2350 = vmatprep.subr.bf16.mxu0 0
        %2351 = vmatpush1.bf16.msra.mxu0 0
        %2352 = vmatprep.subr.bf16.mxu0 0
        %2353 = vmatpush1.bf16.msra.mxu0 0
        %2354 = vmatprep.subr.bf16.mxu0 0
        %2355 = vmatpush1.bf16.msra.mxu0 0
        %2356 = vmatprep.subr.bf16.mxu0 0
        %2357 = vmatpush1.bf16.msra.mxu0 0
        %2358 = vmatprep.subr.bf16.mxu0 0
        %2359 = vmatpush1.bf16.msra.mxu0 0
        %2360 = vmatprep.subr.bf16.mxu0 0
        %2361 = vmatpush1.bf16.msra.mxu0 0
        %2362 = vmatprep.subr.bf16.mxu0 0
        %2363 = vmatpush1.bf16.msra.mxu0 0
        %2364 = vmatprep.subr.bf16.mxu0 0
        %2365 = vmatpush1.bf16.msra.mxu0 0
        %2366 = vmatprep.mubr.bf16.mxu0 0
        %2367 = vmatmul.mubr.bf16.gmra.mrb[0].mxu0 %v2332
        %v2368 = vpop.f32.mrb[0].mxu0
        %v2369 = vadd.f32 0.0, %v2368
        %v2370 = vpop.f32.mrb[0].mxu0
        %v2371 = vpop.f32.mrb[0].mxu0
        %v2372 = vpop.f32.mrb[0].mxu0
        %2373 = vdwg.mxu0
        %v2374 = vadd.f32 %v2317, %v2369
        %v2375 = vld [vmem:[%s5 + $0x40] sm:$0xf]
        %v2376 = vld [vmem:[%s5 + $0x44] sm:$0xf]
        %v2378 = vshrl.u32 %v2323, 16
        %v2380 = vrot.slane %v2378, 1
        %v2383 = vunpack.c.l.b16 %v2375
        %v2384 = vunpack.c.l.b16 %v2376
        %v2385 = vpack.c.b16 %v2384, %v2383
        %v2388 = vsel %vm455, %v2380, 0
        %2390 = vmatprep.subr.bf16.mxu0 0
        %2391 = vmatpush1.bf16.msra.mxu0 %v2385
        %2392 = vmatprep.subr.bf16.mxu0 0
        %2393 = vmatpush1.bf16.msra.mxu0 0
        %2394 = vmatprep.subr.bf16.mxu0 0
        %2395 = vmatpush1.bf16.msra.mxu0 0
        %2396 = vmatprep.subr.bf16.mxu0 0
        %2397 = vmatpush1.bf16.msra.mxu0 0
        %2398 = vmatprep.subr.bf16.mxu0 0
        %2399 = vmatpush1.bf16.msra.mxu0 0
        %2400 = vmatprep.subr.bf16.mxu0 0
        %2401 = vmatpush1.bf16.msra.mxu0 0
        %2402 = vmatprep.subr.bf16.mxu0 0
        %2403 = vmatpush1.bf16.msra.mxu0 0
        %2404 = vmatprep.subr.bf16.mxu0 0
        %2405 = vmatpush1.bf16.msra.mxu0 0
        %2406 = vmatprep.subr.bf16.mxu0 0
        %2407 = vmatpush1.bf16.msra.mxu0 0
        %2408 = vmatprep.subr.bf16.mxu0 0
        %2409 = vmatpush1.bf16.msra.mxu0 0
        %2410 = vmatprep.subr.bf16.mxu0 0
        %2411 = vmatpush1.bf16.msra.mxu0 0
        %2412 = vmatprep.subr.bf16.mxu0 0
        %2413 = vmatpush1.bf16.msra.mxu0 0
        %2414 = vmatprep.subr.bf16.mxu0 0
        %2415 = vmatpush1.bf16.msra.mxu0 0
        %2416 = vmatprep.subr.bf16.mxu0 0
        %2417 = vmatpush1.bf16.msra.mxu0 0
        %2418 = vmatprep.subr.bf16.mxu0 0
        %2419 = vmatpush1.bf16.msra.mxu0 0
        %2420 = vmatprep.subr.bf16.mxu0 0
        %2421 = vmatpush1.bf16.msra.mxu0 0
        %2422 = vmatprep.mubr.bf16.mxu0 0
        %2423 = vmatmul.mubr.bf16.gmra.mrb[0].mxu0 %v2388
        %v2424 = vpop.f32.mrb[0].mxu0
        %v2425 = vadd.f32 0.0, %v2424
        %v2426 = vpop.f32.mrb[0].mxu0
        %v2427 = vpop.f32.mrb[0].mxu0
        %v2428 = vpop.f32.mrb[0].mxu0
        %2429 = vdwg.mxu0
        %v2430 = vadd.f32 %v2374, %v2425
        %v2431 = vld [vmem:[#allocation3 + $0x4] sm:$0x4]
        %v2432 = vld [vmem:[%s5 + $0x48] sm:$0xf]
        %v2433 = vld [vmem:[%s5 + $0x4c] sm:$0xf]
        %v2435 = vunpack.c.l.b16 %v2431
        %v2436 = vpack.c.b16 %v2435, %v2435
        %v2437 = vrot.slane %v2436, 2
        %v2440 = vunpack.c.l.b16 %v2432
        %v2441 = vunpack.c.l.b16 %v2433
        %v2442 = vpack.c.b16 %v2441, %v2440
        %v2445 = vsel %vm455, %v2437, 0
        %2447 = vmatprep.subr.bf16.mxu0 0
        %2448 = vmatpush1.bf16.msra.mxu0 %v2442
        %2449 = vmatprep.subr.bf16.mxu0 0
        %2450 = vmatpush1.bf16.msra.mxu0 0
        %2451 = vmatprep.subr.bf16.mxu0 0
        %2452 = vmatpush1.bf16.msra.mxu0 0
        %2453 = vmatprep.subr.bf16.mxu0 0
        %2454 = vmatpush1.bf16.msra.mxu0 0
        %2455 = vmatprep.subr.bf16.mxu0 0
        %2456 = vmatpush1.bf16.msra.mxu0 0
        %2457 = vmatprep.subr.bf16.mxu0 0
        %2458 = vmatpush1.bf16.msra.mxu0 0
        %2459 = vmatprep.subr.bf16.mxu0 0
        %2460 = vmatpush1.bf16.msra.mxu0 0
        %2461 = vmatprep.subr.bf16.mxu0 0
        %2462 = vmatpush1.bf16.msra.mxu0 0
        %2463 = vmatprep.subr.bf16.mxu0 0
        %2464 = vmatpush1.bf16.msra.mxu0 0
        %2465 = vmatprep.subr.bf16.mxu0 0
        %2466 = vmatpush1.bf16.msra.mxu0 0
        %2467 = vmatprep.subr.bf16.mxu0 0
        %2468 = vmatpush1.bf16.msra.mxu0 0
        %2469 = vmatprep.subr.bf16.mxu0 0
        %2470 = vmatpush1.bf16.msra.mxu0 0
        %2471 = vmatprep.subr.bf16.mxu0 0
        %2472 = vmatpush1.bf16.msra.mxu0 0
        %2473 = vmatprep.subr.bf16.mxu0 0
        %2474 = vmatpush1.bf16.msra.mxu0 0
        %2475 = vmatprep.subr.bf16.mxu0 0
        %2476 = vmatpush1.bf16.msra.mxu0 0
        %2477 = vmatprep.subr.bf16.mxu0 0
        %2478 = vmatpush1.bf16.msra.mxu0 0
        %2479 = vmatprep.mubr.bf16.mxu0 0
        %2480 = vmatmul.mubr.bf16.gmra.mrb[0].mxu0 %v2445
        %v2481 = vpop.f32.mrb[0].mxu0
        %v2482 = vadd.f32 0.0, %v2481
        %v2483 = vpop.f32.mrb[0].mxu0
        %v2484 = vpop.f32.mrb[0].mxu0
        %v2485 = vpop.f32.mrb[0].mxu0
        %2486 = vdwg.mxu0
        %v2487 = vadd.f32 %v2430, %v2482
        %v2488 = vld [vmem:[#allocation3 + $0x8] sm:$0x1]
        %v2489 = vld [vmem:[%s5 + $0x50] sm:$0xf]
        %v2490 = vld [vmem:[%s5 + $0x54] sm:$0xf]
        %v2493 = vunpack.c.l.b16 %v2489
        %v2494 = vunpack.c.l.b16 %v2490
        %v2495 = vpack.c.b16 %v2494, %v2493
        %v2498 = vsel %vm455, %v2488, 0
        %2500 = vmatprep.subr.bf16.mxu0 0
        %2501 = vmatpush1.bf16.msra.mxu0 %v2495
        %2502 = vmatprep.subr.bf16.mxu0 0
        %2503 = vmatpush1.bf16.msra.mxu0 0
        %2504 = vmatprep.subr.bf16.mxu0 0
        %2505 = vmatpush1.bf16.msra.mxu0 0
        %2506 = vmatprep.subr.bf16.mxu0 0
        %2507 = vmatpush1.bf16.msra.mxu0 0
        %2508 = vmatprep.subr.bf16.mxu0 0
        %2509 = vmatpush1.bf16.msra.mxu0 0
        %2510 = vmatprep.subr.bf16.mxu0 0
        %2511 = vmatpush1.bf16.msra.mxu0 0
        %2512 = vmatprep.subr.bf16.mxu0 0
        %2513 = vmatpush1.bf16.msra.mxu0 0
        %2514 = vmatprep.subr.bf16.mxu0 0
        %2515 = vmatpush1.bf16.msra.mxu0 0
        %2516 = vmatprep.subr.bf16.mxu0 0
        %2517 = vmatpush1.bf16.msra.mxu0 0
        %2518 = vmatprep.subr.bf16.mxu0 0
        %2519 = vmatpush1.bf16.msra.mxu0 0
        %2520 = vmatprep.subr.bf16.mxu0 0
        %2521 = vmatpush1.bf16.msra.mxu0 0
        %2522 = vmatprep.subr.bf16.mxu0 0
        %2523 = vmatpush1.bf16.msra.mxu0 0
        %2524 = vmatprep.subr.bf16.mxu0 0
        %2525 = vmatpush1.bf16.msra.mxu0 0
        %2526 = vmatprep.subr.bf16.mxu0 0
        %2527 = vmatpush1.bf16.msra.mxu0 0
        %2528 = vmatprep.subr.bf16.mxu0 0
        %2529 = vmatpush1.bf16.msra.mxu0 0
        %2530 = vmatprep.subr.bf16.mxu0 0
        %2531 = vmatpush1.bf16.msra.mxu0 0
        %2532 = vmatprep.mubr.bf16.mxu0 0
        %2533 = vmatmul.mubr.bf16.gmra.mrb[0].mxu0 %v2498
        %v2534 = vpop.f32.mrb[0].mxu0
        %v2535 = vadd.f32 0.0, %v2534
        %v2536 = vpop.f32.mrb[0].mxu0
        %v2537 = vpop.f32.mrb[0].mxu0
        %v2538 = vpop.f32.mrb[0].mxu0
        %2539 = vdwg.mxu0
        %v2540 = vadd.f32 %v2487, %v2535
        %v2541 = vld [vmem:[%s5 + $0x58] sm:$0xf]
        %v2542 = vld [vmem:[%s5 + $0x5c] sm:$0xf]
        %v2544 = vunpack.c.l.b16 %v2488
        %v2545 = vpack.c.b16 %v2544, %v2544
        %v2547 = vshrl.u32 %v2545, 16
        %v2551 = vunpack.c.l.b16 %v2541
        %v2552 = vunpack.c.l.b16 %v2542
        %v2553 = vpack.c.b16 %v2552, %v2551
        %v2556 = vsel %vm455, %v2547, 0
        %2558 = vmatprep.subr.bf16.mxu0 0
        %2559 = vmatpush1.bf16.msra.mxu0 %v2553
        %2560 = vmatprep.subr.bf16.mxu0 0
        %2561 = vmatpush1.bf16.msra.mxu0 0
        %2562 = vmatprep.subr.bf16.mxu0 0
        %2563 = vmatpush1.bf16.msra.mxu0 0
        %2564 = vmatprep.subr.bf16.mxu0 0
        %2565 = vmatpush1.bf16.msra.mxu0 0
        %2566 = vmatprep.subr.bf16.mxu0 0
        %2567 = vmatpush1.bf16.msra.mxu0 0
        %2568 = vmatprep.subr.bf16.mxu0 0
        %2569 = vmatpush1.bf16.msra.mxu0 0
        %2570 = vmatprep.subr.bf16.mxu0 0
        %2571 = vmatpush1.bf16.msra.mxu0 0
        %2572 = vmatprep.subr.bf16.mxu0 0
        %2573 = vmatpush1.bf16.msra.mxu0 0
        %2574 = vmatprep.subr.bf16.mxu0 0
        %2575 = vmatpush1.bf16.msra.mxu0 0
        %2576 = vmatprep.subr.bf16.mxu0 0
        %2577 = vmatpush1.bf16.msra.mxu0 0
        %2578 = vmatprep.subr.bf16.mxu0 0
        %2579 = vmatpush1.bf16.msra.mxu0 0
        %2580 = vmatprep.subr.bf16.mxu0 0
        %2581 = vmatpush1.bf16.msra.mxu0 0
        %2582 = vmatprep.subr.bf16.mxu0 0
        %2583 = vmatpush1.bf16.msra.mxu0 0
        %2584 = vmatprep.subr.bf16.mxu0 0
        %2585 = vmatpush1.bf16.msra.mxu0 0
        %2586 = vmatprep.subr.bf16.mxu0 0
        %2587 = vmatpush1.bf16.msra.mxu0 0
        %2588 = vmatprep.subr.bf16.mxu0 0
        %2589 = vmatpush1.bf16.msra.mxu0 0
        %2590 = vmatprep.mubr.bf16.mxu0 0
        %2591 = vmatmul.mubr.bf16.gmra.mrb[0].mxu0 %v2556
        %v2592 = vpop.f32.mrb[0].mxu0
        %v2593 = vadd.f32 0.0, %v2592
        %v2594 = vpop.f32.mrb[0].mxu0
        %v2595 = vpop.f32.mrb[0].mxu0
        %v2596 = vpop.f32.mrb[0].mxu0
        %2597 = vdwg.mxu0
        %v2598 = vadd.f32 %v2540, %v2593
        %v2599 = vld [vmem:[#allocation3 + $0x8] sm:$0x2]
        %v2600 = vld [vmem:[%s5 + $0x60] sm:$0xf]
        %v2601 = vld [vmem:[%s5 + $0x64] sm:$0xf]
        %v2603 = vunpack.c.l.b16 %v2599
        %v2604 = vpack.c.b16 %v2603, %v2603
        %v2605 = vrot.slane %v2604, 1
        %v2608 = vunpack.c.l.b16 %v2600
        %v2609 = vunpack.c.l.b16 %v2601
        %v2610 = vpack.c.b16 %v2609, %v2608
        %v2613 = vsel %vm455, %v2605, 0
        %2615 = vmatprep.subr.bf16.mxu0 0
        %2616 = vmatpush1.bf16.msra.mxu0 %v2610
        %2617 = vmatprep.subr.bf16.mxu0 0
        %2618 = vmatpush1.bf16.msra.mxu0 0
        %2619 = vmatprep.subr.bf16.mxu0 0
        %2620 = vmatpush1.bf16.msra.mxu0 0
        %2621 = vmatprep.subr.bf16.mxu0 0
        %2622 = vmatpush1.bf16.msra.mxu0 0
        %2623 = vmatprep.subr.bf16.mxu0 0
        %2624 = vmatpush1.bf16.msra.mxu0 0
        %2625 = vmatprep.subr.bf16.mxu0 0
        %2626 = vmatpush1.bf16.msra.mxu0 0
        %2627 = vmatprep.subr.bf16.mxu0 0
        %2628 = vmatpush1.bf16.msra.mxu0 0
        %2629 = vmatprep.subr.bf16.mxu0 0
        %2630 = vmatpush1.bf16.msra.mxu0 0
        %2631 = vmatprep.subr.bf16.mxu0 0
        %2632 = vmatpush1.bf16.msra.mxu0 0
        %2633 = vmatprep.subr.bf16.mxu0 0
        %2634 = vmatpush1.bf16.msra.mxu0 0
        %2635 = vmatprep.subr.bf16.mxu0 0
        %2636 = vmatpush1.bf16.msra.mxu0 0
        %2637 = vmatprep.subr.bf16.mxu0 0
        %2638 = vmatpush1.bf16.msra.mxu0 0
        %2639 = vmatprep.subr.bf16.mxu0 0
        %2640 = vmatpush1.bf16.msra.mxu0 0
        %2641 = vmatprep.subr.bf16.mxu0 0
        %2642 = vmatpush1.bf16.msra.mxu0 0
        %2643 = vmatprep.subr.bf16.mxu0 0
        %2644 = vmatpush1.bf16.msra.mxu0 0
        %2645 = vmatprep.subr.bf16.mxu0 0
        %2646 = vmatpush1.bf16.msra.mxu0 0
        %2647 = vmatprep.mubr.bf16.mxu0 0
        %2648 = vmatmul.mubr.bf16.gmra.mrb[0].mxu0 %v2613
        %v2649 = vpop.f32.mrb[0].mxu0
        %v2650 = vadd.f32 0.0, %v2649
        %v2651 = vpop.f32.mrb[0].mxu0
        %v2652 = vpop.f32.mrb[0].mxu0
        %v2653 = vpop.f32.mrb[0].mxu0
        %2654 = vdwg.mxu0
        %v2655 = vadd.f32 %v2598, %v2650
        %v2656 = vld [vmem:[%s5 + $0x68] sm:$0xf]
        %v2657 = vld [vmem:[%s5 + $0x6c] sm:$0xf]
        %v2659 = vshrl.u32 %v2604, 16
        %v2661 = vrot.slane %v2659, 1
        %v2664 = vunpack.c.l.b16 %v2656
        %v2665 = vunpack.c.l.b16 %v2657
        %v2666 = vpack.c.b16 %v2665, %v2664
        %v2669 = vsel %vm455, %v2661, 0
        %2671 = vmatprep.subr.bf16.mxu0 0
        %2672 = vmatpush1.bf16.msra.mxu0 %v2666
        %2673 = vmatprep.subr.bf16.mxu0 0
        %2674 = vmatpush1.bf16.msra.mxu0 0
        %2675 = vmatprep.subr.bf16.mxu0 0
        %2676 = vmatpush1.bf16.msra.mxu0 0
        %2677 = vmatprep.subr.bf16.mxu0 0
        %2678 = vmatpush1.bf16.msra.mxu0 0
        %2679 = vmatprep.subr.bf16.mxu0 0
        %2680 = vmatpush1.bf16.msra.mxu0 0
        %2681 = vmatprep.subr.bf16.mxu0 0
        %2682 = vmatpush1.bf16.msra.mxu0 0
        %2683 = vmatprep.subr.bf16.mxu0 0
        %2684 = vmatpush1.bf16.msra.mxu0 0
        %2685 = vmatprep.subr.bf16.mxu0 0
        %2686 = vmatpush1.bf16.msra.mxu0 0
        %2687 = vmatprep.subr.bf16.mxu0 0
        %2688 = vmatpush1.bf16.msra.mxu0 0
        %2689 = vmatprep.subr.bf16.mxu0 0
        %2690 = vmatpush1.bf16.msra.mxu0 0
        %2691 = vmatprep.subr.bf16.mxu0 0
        %2692 = vmatpush1.bf16.msra.mxu0 0
        %2693 = vmatprep.subr.bf16.mxu0 0
        %2694 = vmatpush1.bf16.msra.mxu0 0
        %2695 = vmatprep.subr.bf16.mxu0 0
        %2696 = vmatpush1.bf16.msra.mxu0 0
        %2697 = vmatprep.subr.bf16.mxu0 0
        %2698 = vmatpush1.bf16.msra.mxu0 0
        %2699 = vmatprep.subr.bf16.mxu0 0
        %2700 = vmatpush1.bf16.msra.mxu0 0
        %2701 = vmatprep.subr.bf16.mxu0 0
        %2702 = vmatpush1.bf16.msra.mxu0 0
        %2703 = vmatprep.mubr.bf16.mxu0 0
        %2704 = vmatmul.mubr.bf16.gmra.mrb[0].mxu0 %v2669
        %v2705 = vpop.f32.mrb[0].mxu0
        %v2706 = vadd.f32 0.0, %v2705
        %v2707 = vpop.f32.mrb[0].mxu0
        %v2708 = vpop.f32.mrb[0].mxu0
        %v2709 = vpop.f32.mrb[0].mxu0
        %2710 = vdwg.mxu0
        %v2711 = vadd.f32 %v2655, %v2706
        %v2712 = vld [vmem:[#allocation3 + $0x8] sm:$0x4]
        %v2713 = vld [vmem:[%s5 + $0x70] sm:$0xf]
        %v2714 = vld [vmem:[%s5 + $0x74] sm:$0xf]
        %v2716 = vunpack.c.l.b16 %v2712
        %v2717 = vpack.c.b16 %v2716, %v2716
        %v2718 = vrot.slane %v2717, 2
        %v2721 = vunpack.c.l.b16 %v2713
        %v2722 = vunpack.c.l.b16 %v2714
        %v2723 = vpack.c.b16 %v2722, %v2721
        %v2726 = vsel %vm455, %v2718, 0
        %2728 = vmatprep.subr.bf16.mxu0 0
        %2729 = vmatpush1.bf16.msra.mxu0 %v2723
        %2730 = vmatprep.subr.bf16.mxu0 0
        %2731 = vmatpush1.bf16.msra.mxu0 0
        %2732 = vmatprep.subr.bf16.mxu0 0
        %2733 = vmatpush1.bf16.msra.mxu0 0
        %2734 = vmatprep.subr.bf16.mxu0 0
        %2735 = vmatpush1.bf16.msra.mxu0 0
        %2736 = vmatprep.subr.bf16.mxu0 0
        %2737 = vmatpush1.bf16.msra.mxu0 0
        %2738 = vmatprep.subr.bf16.mxu0 0
        %2739 = vmatpush1.bf16.msra.mxu0 0
        %2740 = vmatprep.subr.bf16.mxu0 0
        %2741 = vmatpush1.bf16.msra.mxu0 0
        %2742 = vmatprep.subr.bf16.mxu0 0
        %2743 = vmatpush1.bf16.msra.mxu0 0
        %2744 = vmatprep.subr.bf16.mxu0 0
        %2745 = vmatpush1.bf16.msra.mxu0 0
        %2746 = vmatprep.subr.bf16.mxu0 0
        %2747 = vmatpush1.bf16.msra.mxu0 0
        %2748 = vmatprep.subr.bf16.mxu0 0
        %2749 = vmatpush1.bf16.msra.mxu0 0
        %2750 = vmatprep.subr.bf16.mxu0 0
        %2751 = vmatpush1.bf16.msra.mxu0 0
        %2752 = vmatprep.subr.bf16.mxu0 0
        %2753 = vmatpush1.bf16.msra.mxu0 0
        %2754 = vmatprep.subr.bf16.mxu0 0
        %2755 = vmatpush1.bf16.msra.mxu0 0
        %2756 = vmatprep.subr.bf16.mxu0 0
        %2757 = vmatpush1.bf16.msra.mxu0 0
        %2758 = vmatprep.subr.bf16.mxu0 0
        %2759 = vmatpush1.bf16.msra.mxu0 0
        %2760 = vmatprep.mubr.bf16.mxu0 0
        %2761 = vmatmul.mubr.bf16.gmra.mrb[0].mxu0 %v2726
        %v2762 = vpop.f32.mrb[0].mxu0
        %v2763 = vadd.f32 0.0, %v2762
        %v2764 = vpop.f32.mrb[0].mxu0
        %v2765 = vpop.f32.mrb[0].mxu0
        %v2766 = vpop.f32.mrb[0].mxu0
        %2767 = vdwg.mxu0
        %v2768 = vadd.f32 %v2711, %v2763
        %v2769 = vld [vmem:[#allocation3 + $0xc] sm:$0x1]
        %v2770 = vld [vmem:[%s5 + $0x78] sm:$0xf]
        %v2771 = vld [vmem:[%s5 + $0x7c] sm:$0xf]
        %v2774 = vunpack.c.l.b16 %v2770
        %v2775 = vunpack.c.l.b16 %v2771
        %v2776 = vpack.c.b16 %v2775, %v2774
        %v2779 = vsel %vm455, %v2769, 0
        %2781 = vmatprep.subr.bf16.mxu0 0
        %2782 = vmatpush1.bf16.msra.mxu0 %v2776
        %2783 = vmatprep.subr.bf16.mxu0 0
        %2784 = vmatpush1.bf16.msra.mxu0 0
        %2785 = vmatprep.subr.bf16.mxu0 0
        %2786 = vmatpush1.bf16.msra.mxu0 0
        %2787 = vmatprep.subr.bf16.mxu0 0
        %2788 = vmatpush1.bf16.msra.mxu0 0
        %2789 = vmatprep.subr.bf16.mxu0 0
        %2790 = vmatpush1.bf16.msra.mxu0 0
        %2791 = vmatprep.subr.bf16.mxu0 0
        %2792 = vmatpush1.bf16.msra.mxu0 0
        %2793 = vmatprep.subr.bf16.mxu0 0
        %2794 = vmatpush1.bf16.msra.mxu0 0
        %2795 = vmatprep.subr.bf16.mxu0 0
        %2796 = vmatpush1.bf16.msra.mxu0 0
        %2797 = vmatprep.subr.bf16.mxu0 0
        %2798 = vmatpush1.bf16.msra.mxu0 0
        %2799 = vmatprep.subr.bf16.mxu0 0
        %2800 = vmatpush1.bf16.msra.mxu0 0
        %2801 = vmatprep.subr.bf16.mxu0 0
        %2802 = vmatpush1.bf16.msra.mxu0 0
        %2803 = vmatprep.subr.bf16.mxu0 0
        %2804 = vmatpush1.bf16.msra.mxu0 0
        %2805 = vmatprep.subr.bf16.mxu0 0
        %2806 = vmatpush1.bf16.msra.mxu0 0
        %2807 = vmatprep.subr.bf16.mxu0 0
        %2808 = vmatpush1.bf16.msra.mxu0 0
        %2809 = vmatprep.subr.bf16.mxu0 0
        %2810 = vmatpush1.bf16.msra.mxu0 0
        %2811 = vmatprep.subr.bf16.mxu0 0
        %2812 = vmatpush1.bf16.msra.mxu0 0
        %2813 = vmatprep.mubr.bf16.mxu0 0
        %2814 = vmatmul.mubr.bf16.gmra.mrb[0].mxu0 %v2779
        %v2815 = vpop.f32.mrb[0].mxu0
        %v2816 = vadd.f32 0.0, %v2815
        %v2817 = vpop.f32.mrb[0].mxu0
        %v2818 = vpop.f32.mrb[0].mxu0
        %v2819 = vpop.f32.mrb[0].mxu0
        %2820 = vdwg.mxu0
        %v2821 = vadd.f32 %v2768, %v2816
        %v2822 = vld [vmem:[%s5 + $0x80] sm:$0xf]
        %v2823 = vld [vmem:[%s5 + $0x84] sm:$0xf]
        %v2825 = vunpack.c.l.b16 %v2769
        %v2826 = vpack.c.b16 %v2825, %v2825
        %v2828 = vshrl.u32 %v2826, 16
        %v2832 = vunpack.c.l.b16 %v2822
        %v2833 = vunpack.c.l.b16 %v2823
        %v2834 = vpack.c.b16 %v2833, %v2832
        %v2837 = vsel %vm455, %v2828, 0
        %2839 = vmatprep.subr.bf16.mxu0 0
        %2840 = vmatpush1.bf16.msra.mxu0 %v2834
        %2841 = vmatprep.subr.bf16.mxu0 0
        %2842 = vmatpush1.bf16.msra.mxu0 0
        %2843 = vmatprep.subr.bf16.mxu0 0
        %2844 = vmatpush1.bf16.msra.mxu0 0
        %2845 = vmatprep.subr.bf16.mxu0 0
        %2846 = vmatpush1.bf16.msra.mxu0 0
        %2847 = vmatprep.subr.bf16.mxu0 0
        %2848 = vmatpush1.bf16.msra.mxu0 0
        %2849 = vmatprep.subr.bf16.mxu0 0
        %2850 = vmatpush1.bf16.msra.mxu0 0
        %2851 = vmatprep.subr.bf16.mxu0 0
        %2852 = vmatpush1.bf16.msra.mxu0 0
        %2853 = vmatprep.subr.bf16.mxu0 0
        %2854 = vmatpush1.bf16.msra.mxu0 0
        %2855 = vmatprep.subr.bf16.mxu0 0
        %2856 = vmatpush1.bf16.msra.mxu0 0
        %2857 = vmatprep.subr.bf16.mxu0 0
        %2858 = vmatpush1.bf16.msra.mxu0 0
        %2859 = vmatprep.subr.bf16.mxu0 0
        %2860 = vmatpush1.bf16.msra.mxu0 0
        %2861 = vmatprep.subr.bf16.mxu0 0
        %2862 = vmatpush1.bf16.msra.mxu0 0
        %2863 = vmatprep.subr.bf16.mxu0 0
        %2864 = vmatpush1.bf16.msra.mxu0 0
        %2865 = vmatprep.subr.bf16.mxu0 0
        %2866 = vmatpush1.bf16.msra.mxu0 0
        %2867 = vmatprep.subr.bf16.mxu0 0
        %2868 = vmatpush1.bf16.msra.mxu0 0
        %2869 = vmatprep.subr.bf16.mxu0 0
        %2870 = vmatpush1.bf16.msra.mxu0 0
        %2871 = vmatprep.mubr.bf16.mxu0 0
        %2872 = vmatmul.mubr.bf16.gmra.mrb[0].mxu0 %v2837
        %v2873 = vpop.f32.mrb[0].mxu0
        %v2874 = vadd.f32 0.0, %v2873
        %v2875 = vpop.f32.mrb[0].mxu0
        %v2876 = vpop.f32.mrb[0].mxu0
        %v2877 = vpop.f32.mrb[0].mxu0
        %2878 = vdwg.mxu0
        %v2879 = vadd.f32 %v2821, %v2874
        %v2880 = vld [vmem:[#allocation3 + $0xc] sm:$0x2]
        %v2881 = vld [vmem:[%s5 + $0x88] sm:$0xf]
        %v2882 = vld [vmem:[%s5 + $0x8c] sm:$0xf]
        %v2884 = vunpack.c.l.b16 %v2880
        %v2885 = vpack.c.b16 %v2884, %v2884
        %v2886 = vrot.slane %v2885, 1
        %v2889 = vunpack.c.l.b16 %v2881
        %v2890 = vunpack.c.l.b16 %v2882
        %v2891 = vpack.c.b16 %v2890, %v2889
        %v2894 = vsel %vm455, %v2886, 0
        %2896 = vmatprep.subr.bf16.mxu0 0
        %2897 = vmatpush1.bf16.msra.mxu0 %v2891
        %2898 = vmatprep.subr.bf16.mxu0 0
        %2899 = vmatpush1.bf16.msra.mxu0 0
        %2900 = vmatprep.subr.bf16.mxu0 0
        %2901 = vmatpush1.bf16.msra.mxu0 0
        %2902 = vmatprep.subr.bf16.mxu0 0
        %2903 = vmatpush1.bf16.msra.mxu0 0
        %2904 = vmatprep.subr.bf16.mxu0 0
        %2905 = vmatpush1.bf16.msra.mxu0 0
        %2906 = vmatprep.subr.bf16.mxu0 0
        %2907 = vmatpush1.bf16.msra.mxu0 0
        %2908 = vmatprep.subr.bf16.mxu0 0
        %2909 = vmatpush1.bf16.msra.mxu0 0
        %2910 = vmatprep.subr.bf16.mxu0 0
        %2911 = vmatpush1.bf16.msra.mxu0 0
        %2912 = vmatprep.subr.bf16.mxu0 0
        %2913 = vmatpush1.bf16.msra.mxu0 0
        %2914 = vmatprep.subr.bf16.mxu0 0
        %2915 = vmatpush1.bf16.msra.mxu0 0
        %2916 = vmatprep.subr.bf16.mxu0 0
        %2917 = vmatpush1.bf16.msra.mxu0 0
        %2918 = vmatprep.subr.bf16.mxu0 0
        %2919 = vmatpush1.bf16.msra.mxu0 0
        %2920 = vmatprep.subr.bf16.mxu0 0
        %2921 = vmatpush1.bf16.msra.mxu0 0
        %2922 = vmatprep.subr.bf16.mxu0 0
        %2923 = vmatpush1.bf16.msra.mxu0 0
        %2924 = vmatprep.subr.bf16.mxu0 0
        %2925 = vmatpush1.bf16.msra.mxu0 0
        %2926 = vmatprep.subr.bf16.mxu0 0
        %2927 = vmatpush1.bf16.msra.mxu0 0
        %2928 = vmatprep.mubr.bf16.mxu0 0
        %2929 = vmatmul.mubr.bf16.gmra.mrb[0].mxu0 %v2894
        %v2930 = vpop.f32.mrb[0].mxu0
        %v2931 = vadd.f32 0.0, %v2930
        %v2932 = vpop.f32.mrb[0].mxu0
        %v2933 = vpop.f32.mrb[0].mxu0
        %v2934 = vpop.f32.mrb[0].mxu0
        %2935 = vdwg.mxu0
        %v2936 = vadd.f32 %v2879, %v2931
        %v2937 = vld [vmem:[%s5 + $0x90] sm:$0xf]
        %v2938 = vld [vmem:[%s5 + $0x94] sm:$0xf]
        %v2940 = vshrl.u32 %v2885, 16
        %v2942 = vrot.slane %v2940, 1
        %v2945 = vunpack.c.l.b16 %v2937
        %v2946 = vunpack.c.l.b16 %v2938
        %v2947 = vpack.c.b16 %v2946, %v2945
        %v2950 = vsel %vm455, %v2942, 0
        %2952 = vmatprep.subr.bf16.mxu0 0
        %2953 = vmatpush1.bf16.msra.mxu0 %v2947
        %2954 = vmatprep.subr.bf16.mxu0 0
        %2955 = vmatpush1.bf16.msra.mxu0 0
        %2956 = vmatprep.subr.bf16.mxu0 0
        %2957 = vmatpush1.bf16.msra.mxu0 0
        %2958 = vmatprep.subr.bf16.mxu0 0
        %2959 = vmatpush1.bf16.msra.mxu0 0
        %2960 = vmatprep.subr.bf16.mxu0 0
        %2961 = vmatpush1.bf16.msra.mxu0 0
        %2962 = vmatprep.subr.bf16.mxu0 0
        %2963 = vmatpush1.bf16.msra.mxu0 0
        %2964 = vmatprep.subr.bf16.mxu0 0
        %2965 = vmatpush1.bf16.msra.mxu0 0
        %2966 = vmatprep.subr.bf16.mxu0 0
        %2967 = vmatpush1.bf16.msra.mxu0 0
        %2968 = vmatprep.subr.bf16.mxu0 0
        %2969 = vmatpush1.bf16.msra.mxu0 0
        %2970 = vmatprep.subr.bf16.mxu0 0
        %2971 = vmatpush1.bf16.msra.mxu0 0
        %2972 = vmatprep.subr.bf16.mxu0 0
        %2973 = vmatpush1.bf16.msra.mxu0 0
        %2974 = vmatprep.subr.bf16.mxu0 0
        %2975 = vmatpush1.bf16.msra.mxu0 0
        %2976 = vmatprep.subr.bf16.mxu0 0
        %2977 = vmatpush1.bf16.msra.mxu0 0
        %2978 = vmatprep.subr.bf16.mxu0 0
        %2979 = vmatpush1.bf16.msra.mxu0 0
        %2980 = vmatprep.subr.bf16.mxu0 0
        %2981 = vmatpush1.bf16.msra.mxu0 0
        %2982 = vmatprep.subr.bf16.mxu0 0
        %2983 = vmatpush1.bf16.msra.mxu0 0
        %2984 = vmatprep.mubr.bf16.mxu0 0
        %2985 = vmatmul.mubr.bf16.gmra.mrb[0].mxu0 %v2950
        %v2986 = vpop.f32.mrb[0].mxu0
        %v2987 = vadd.f32 0.0, %v2986
        %v2988 = vpop.f32.mrb[0].mxu0
        %v2989 = vpop.f32.mrb[0].mxu0
        %v2990 = vpop.f32.mrb[0].mxu0
        %2991 = vdwg.mxu0
        %v2992 = vadd.f32 %v2936, %v2987
        %v2993 = vld [vmem:[#allocation3 + $0xc] sm:$0x4]
        %v2994 = vld [vmem:[%s5 + $0x98] sm:$0xf]
        %v2995 = vld [vmem:[%s5 + $0x9c] sm:$0xf]
        %v2997 = vunpack.c.l.b16 %v2993
        %v2998 = vpack.c.b16 %v2997, %v2997
        %v2999 = vrot.slane %v2998, 2
        %v3002 = vunpack.c.l.b16 %v2994
        %v3003 = vunpack.c.l.b16 %v2995
        %v3004 = vpack.c.b16 %v3003, %v3002
        %v3007 = vsel %vm455, %v2999, 0
        %3009 = vmatprep.subr.bf16.mxu0 0
        %3010 = vmatpush1.bf16.msra.mxu0 %v3004
        %3011 = vmatprep.subr.bf16.mxu0 0
        %3012 = vmatpush1.bf16.msra.mxu0 0
        %3013 = vmatprep.subr.bf16.mxu0 0
        %3014 = vmatpush1.bf16.msra.mxu0 0
        %3015 = vmatprep.subr.bf16.mxu0 0
        %3016 = vmatpush1.bf16.msra.mxu0 0
        %3017 = vmatprep.subr.bf16.mxu0 0
        %3018 = vmatpush1.bf16.msra.mxu0 0
        %3019 = vmatprep.subr.bf16.mxu0 0
        %3020 = vmatpush1.bf16.msra.mxu0 0
        %3021 = vmatprep.subr.bf16.mxu0 0
        %3022 = vmatpush1.bf16.msra.mxu0 0
        %3023 = vmatprep.subr.bf16.mxu0 0
        %3024 = vmatpush1.bf16.msra.mxu0 0
        %3025 = vmatprep.subr.bf16.mxu0 0
        %3026 = vmatpush1.bf16.msra.mxu0 0
        %3027 = vmatprep.subr.bf16.mxu0 0
        %3028 = vmatpush1.bf16.msra.mxu0 0
        %3029 = vmatprep.subr.bf16.mxu0 0
        %3030 = vmatpush1.bf16.msra.mxu0 0
        %3031 = vmatprep.subr.bf16.mxu0 0
        %3032 = vmatpush1.bf16.msra.mxu0 0
        %3033 = vmatprep.subr.bf16.mxu0 0
        %3034 = vmatpush1.bf16.msra.mxu0 0
        %3035 = vmatprep.subr.bf16.mxu0 0
        %3036 = vmatpush1.bf16.msra.mxu0 0
        %3037 = vmatprep.subr.bf16.mxu0 0
        %3038 = vmatpush1.bf16.msra.mxu0 0
        %3039 = vmatprep.subr.bf16.mxu0 0
        %3040 = vmatpush1.bf16.msra.mxu0 0
        %3041 = vmatprep.mubr.bf16.mxu0 0
        %3042 = vmatmul.mubr.bf16.gmra.mrb[0].mxu0 %v3007
        %v3043 = vpop.f32.mrb[0].mxu0
        %v3044 = vadd.f32 0.0, %v3043
        %v3045 = vpop.f32.mrb[0].mxu0
        %v3046 = vpop.f32.mrb[0].mxu0
        %v3047 = vpop.f32.mrb[0].mxu0
        %3048 = vdwg.mxu0
        %v3049 = vadd.f32 %v2992, %v3044
        %v3050 = vld [vmem:[#allocation3 + $0x10] sm:$0x1]
        %v3051 = vld [vmem:[%s5 + $0xa0] sm:$0xf]
        %v3052 = vld [vmem:[%s5 + $0xa4] sm:$0xf]
        %v3055 = vunpack.c.l.b16 %v3051
        %v3056 = vunpack.c.l.b16 %v3052
        %v3057 = vpack.c.b16 %v3056, %v3055
        %v3060 = vsel %vm455, %v3050, 0
        %3062 = vmatprep.subr.bf16.mxu0 0
        %3063 = vmatpush1.bf16.msra.mxu0 %v3057
        %3064 = vmatprep.subr.bf16.mxu0 0
        %3065 = vmatpush1.bf16.msra.mxu0 0
        %3066 = vmatprep.subr.bf16.mxu0 0
        %3067 = vmatpush1.bf16.msra.mxu0 0
        %3068 = vmatprep.subr.bf16.mxu0 0
        %3069 = vmatpush1.bf16.msra.mxu0 0
        %3070 = vmatprep.subr.bf16.mxu0 0
        %3071 = vmatpush1.bf16.msra.mxu0 0
        %3072 = vmatprep.subr.bf16.mxu0 0
        %3073 = vmatpush1.bf16.msra.mxu0 0
        %3074 = vmatprep.subr.bf16.mxu0 0
        %3075 = vmatpush1.bf16.msra.mxu0 0
        %3076 = vmatprep.subr.bf16.mxu0 0
        %3077 = vmatpush1.bf16.msra.mxu0 0
        %3078 = vmatprep.subr.bf16.mxu0 0
        %3079 = vmatpush1.bf16.msra.mxu0 0
        %3080 = vmatprep.subr.bf16.mxu0 0
        %3081 = vmatpush1.bf16.msra.mxu0 0
        %3082 = vmatprep.subr.bf16.mxu0 0
        %3083 = vmatpush1.bf16.msra.mxu0 0
        %3084 = vmatprep.subr.bf16.mxu0 0
        %3085 = vmatpush1.bf16.msra.mxu0 0
        %3086 = vmatprep.subr.bf16.mxu0 0
        %3087 = vmatpush1.bf16.msra.mxu0 0
        %3088 = vmatprep.subr.bf16.mxu0 0
        %3089 = vmatpush1.bf16.msra.mxu0 0
        %3090 = vmatprep.subr.bf16.mxu0 0
        %3091 = vmatpush1.bf16.msra.mxu0 0
        %3092 = vmatprep.subr.bf16.mxu0 0
        %3093 = vmatpush1.bf16.msra.mxu0 0
        %3094 = vmatprep.mubr.bf16.mxu0 0
        %3095 = vmatmul.mubr.bf16.gmra.mrb[0].mxu0 %v3060
        %v3096 = vpop.f32.mrb[0].mxu0
        %v3097 = vadd.f32 0.0, %v3096
        %v3098 = vpop.f32.mrb[0].mxu0
        %v3099 = vpop.f32.mrb[0].mxu0
        %v3100 = vpop.f32.mrb[0].mxu0
        %3101 = vdwg.mxu0
        %v3102 = vadd.f32 %v3049, %v3097
        %v3103 = vld [vmem:[%s5 + $0xa8] sm:$0xf]
        %v3104 = vld [vmem:[%s5 + $0xac] sm:$0xf]
        %v3106 = vunpack.c.l.b16 %v3050
        %v3107 = vpack.c.b16 %v3106, %v3106
        %v3109 = vshrl.u32 %v3107, 16
        %v3113 = vunpack.c.l.b16 %v3103
        %v3114 = vunpack.c.l.b16 %v3104
        %v3115 = vpack.c.b16 %v3114, %v3113
        %v3118 = vsel %vm455, %v3109, 0
        %3120 = vmatprep.subr.bf16.mxu0 0
        %3121 = vmatpush1.bf16.msra.mxu0 %v3115
        %3122 = vmatprep.subr.bf16.mxu0 0
        %3123 = vmatpush1.bf16.msra.mxu0 0
        %3124 = vmatprep.subr.bf16.mxu0 0
        %3125 = vmatpush1.bf16.msra.mxu0 0
        %3126 = vmatprep.subr.bf16.mxu0 0
        %3127 = vmatpush1.bf16.msra.mxu0 0
        %3128 = vmatprep.subr.bf16.mxu0 0
        %3129 = vmatpush1.bf16.msra.mxu0 0
        %3130 = vmatprep.subr.bf16.mxu0 0
        %3131 = vmatpush1.bf16.msra.mxu0 0
        %3132 = vmatprep.subr.bf16.mxu0 0
        %3133 = vmatpush1.bf16.msra.mxu0 0
        %3134 = vmatprep.subr.bf16.mxu0 0
        %3135 = vmatpush1.bf16.msra.mxu0 0
        %3136 = vmatprep.subr.bf16.mxu0 0
        %3137 = vmatpush1.bf16.msra.mxu0 0
        %3138 = vmatprep.subr.bf16.mxu0 0
        %3139 = vmatpush1.bf16.msra.mxu0 0
        %3140 = vmatprep.subr.bf16.mxu0 0
        %3141 = vmatpush1.bf16.msra.mxu0 0
        %3142 = vmatprep.subr.bf16.mxu0 0
        %3143 = vmatpush1.bf16.msra.mxu0 0
        %3144 = vmatprep.subr.bf16.mxu0 0
        %3145 = vmatpush1.bf16.msra.mxu0 0
        %3146 = vmatprep.subr.bf16.mxu0 0
        %3147 = vmatpush1.bf16.msra.mxu0 0
        %3148 = vmatprep.subr.bf16.mxu0 0
        %3149 = vmatpush1.bf16.msra.mxu0 0
        %3150 = vmatprep.subr.bf16.mxu0 0
        %3151 = vmatpush1.bf16.msra.mxu0 0
        %3152 = vmatprep.mubr.bf16.mxu0 0
        %3153 = vmatmul.mubr.bf16.gmra.mrb[0].mxu0 %v3118
        %v3154 = vpop.f32.mrb[0].mxu0
        %v3155 = vadd.f32 0.0, %v3154
        %v3156 = vpop.f32.mrb[0].mxu0
        %v3157 = vpop.f32.mrb[0].mxu0
        %v3158 = vpop.f32.mrb[0].mxu0
        %3159 = vdwg.mxu0
        %v3160 = vadd.f32 %v3102, %v3155
        %v3161 = vld [vmem:[#allocation3 + $0x10] sm:$0x2]
        %v3162 = vld [vmem:[%s5 + $0xb0] sm:$0xf]
        %v3163 = vld [vmem:[%s5 + $0xb4] sm:$0xf]
        %v3165 = vunpack.c.l.b16 %v3161
        %v3166 = vpack.c.b16 %v3165, %v3165
        %v3167 = vrot.slane %v3166, 1
        %v3170 = vunpack.c.l.b16 %v3162
        %v3171 = vunpack.c.l.b16 %v3163
        %v3172 = vpack.c.b16 %v3171, %v3170
        %v3175 = vsel %vm455, %v3167, 0
        %3177 = vmatprep.subr.bf16.mxu0 0
        %3178 = vmatpush1.bf16.msra.mxu0 %v3172
        %3179 = vmatprep.subr.bf16.mxu0 0
        %3180 = vmatpush1.bf16.msra.mxu0 0
        %3181 = vmatprep.subr.bf16.mxu0 0
        %3182 = vmatpush1.bf16.msra.mxu0 0
        %3183 = vmatprep.subr.bf16.mxu0 0
        %3184 = vmatpush1.bf16.msra.mxu0 0
        %3185 = vmatprep.subr.bf16.mxu0 0
        %3186 = vmatpush1.bf16.msra.mxu0 0
        %3187 = vmatprep.subr.bf16.mxu0 0
        %3188 = vmatpush1.bf16.msra.mxu0 0
        %3189 = vmatprep.subr.bf16.mxu0 0
        %3190 = vmatpush1.bf16.msra.mxu0 0
        %3191 = vmatprep.subr.bf16.mxu0 0
        %3192 = vmatpush1.bf16.msra.mxu0 0
        %3193 = vmatprep.subr.bf16.mxu0 0
        %3194 = vmatpush1.bf16.msra.mxu0 0
        %3195 = vmatprep.subr.bf16.mxu0 0
        %3196 = vmatpush1.bf16.msra.mxu0 0
        %3197 = vmatprep.subr.bf16.mxu0 0
        %3198 = vmatpush1.bf16.msra.mxu0 0
        %3199 = vmatprep.subr.bf16.mxu0 0
        %3200 = vmatpush1.bf16.msra.mxu0 0
        %3201 = vmatprep.subr.bf16.mxu0 0
        %3202 = vmatpush1.bf16.msra.mxu0 0
        %3203 = vmatprep.subr.bf16.mxu0 0
        %3204 = vmatpush1.bf16.msra.mxu0 0
        %3205 = vmatprep.subr.bf16.mxu0 0
        %3206 = vmatpush1.bf16.msra.mxu0 0
        %3207 = vmatprep.subr.bf16.mxu0 0
        %3208 = vmatpush1.bf16.msra.mxu0 0
        %3209 = vmatprep.mubr.bf16.mxu0 0
        %3210 = vmatmul.mubr.bf16.gmra.mrb[0].mxu0 %v3175
        %v3211 = vpop.f32.mrb[0].mxu0
        %v3212 = vadd.f32 0.0, %v3211
        %v3213 = vpop.f32.mrb[0].mxu0
        %v3214 = vpop.f32.mrb[0].mxu0
        %v3215 = vpop.f32.mrb[0].mxu0
        %3216 = vdwg.mxu0
        %v3217 = vadd.f32 %v3160, %v3212
        %v3218 = vld [vmem:[%s5 + $0xb8] sm:$0xf]
        %v3219 = vld [vmem:[%s5 + $0xbc] sm:$0xf]
        %v3221 = vshrl.u32 %v3166, 16
        %v3223 = vrot.slane %v3221, 1
        %v3226 = vunpack.c.l.b16 %v3218
        %v3227 = vunpack.c.l.b16 %v3219
        %v3228 = vpack.c.b16 %v3227, %v3226
        %v3231 = vsel %vm455, %v3223, 0
        %3233 = vmatprep.subr.bf16.mxu0 0
        %3234 = vmatpush1.bf16.msra.mxu0 %v3228
        %3235 = vmatprep.subr.bf16.mxu0 0
        %3236 = vmatpush1.bf16.msra.mxu0 0
        %3237 = vmatprep.subr.bf16.mxu0 0
        %3238 = vmatpush1.bf16.msra.mxu0 0
        %3239 = vmatprep.subr.bf16.mxu0 0
        %3240 = vmatpush1.bf16.msra.mxu0 0
        %3241 = vmatprep.subr.bf16.mxu0 0
        %3242 = vmatpush1.bf16.msra.mxu0 0
        %3243 = vmatprep.subr.bf16.mxu0 0
        %3244 = vmatpush1.bf16.msra.mxu0 0
        %3245 = vmatprep.subr.bf16.mxu0 0
        %3246 = vmatpush1.bf16.msra.mxu0 0
        %3247 = vmatprep.subr.bf16.mxu0 0
        %3248 = vmatpush1.bf16.msra.mxu0 0
        %3249 = vmatprep.subr.bf16.mxu0 0
        %3250 = vmatpush1.bf16.msra.mxu0 0
        %3251 = vmatprep.subr.bf16.mxu0 0
        %3252 = vmatpush1.bf16.msra.mxu0 0
        %3253 = vmatprep.subr.bf16.mxu0 0
        %3254 = vmatpush1.bf16.msra.mxu0 0
        %3255 = vmatprep.subr.bf16.mxu0 0
        %3256 = vmatpush1.bf16.msra.mxu0 0
        %3257 = vmatprep.subr.bf16.mxu0 0
        %3258 = vmatpush1.bf16.msra.mxu0 0
        %3259 = vmatprep.subr.bf16.mxu0 0
        %3260 = vmatpush1.bf16.msra.mxu0 0
        %3261 = vmatprep.subr.bf16.mxu0 0
        %3262 = vmatpush1.bf16.msra.mxu0 0
        %3263 = vmatprep.subr.bf16.mxu0 0
        %3264 = vmatpush1.bf16.msra.mxu0 0
        %3265 = vmatprep.mubr.bf16.mxu0 0
        %3266 = vmatmul.mubr.bf16.gmra.mrb[0].mxu0 %v3231
        %v3267 = vpop.f32.mrb[0].mxu0
        %v3268 = vadd.f32 0.0, %v3267
        %v3269 = vpop.f32.mrb[0].mxu0
        %v3270 = vpop.f32.mrb[0].mxu0
        %v3271 = vpop.f32.mrb[0].mxu0
        %3272 = vdwg.mxu0
        %v3273 = vadd.f32 %v3217, %v3268
        %v3274 = vld [vmem:[#allocation3 + $0x10] sm:$0x4]
        %v3275 = vld [vmem:[%s5 + $0xc0] sm:$0xf]
        %v3276 = vld [vmem:[%s5 + $0xc4] sm:$0xf]
        %v3278 = vunpack.c.l.b16 %v3274
        %v3279 = vpack.c.b16 %v3278, %v3278
        %v3280 = vrot.slane %v3279, 2
        %v3283 = vunpack.c.l.b16 %v3275
        %v3284 = vunpack.c.l.b16 %v3276
        %v3285 = vpack.c.b16 %v3284, %v3283
        %v3288 = vsel %vm455, %v3280, 0
        %3290 = vmatprep.subr.bf16.mxu0 0
        %3291 = vmatpush1.bf16.msra.mxu0 %v3285
        %3292 = vmatprep.subr.bf16.mxu0 0
        %3293 = vmatpush1.bf16.msra.mxu0 0
        %3294 = vmatprep.subr.bf16.mxu0 0
        %3295 = vmatpush1.bf16.msra.mxu0 0
        %3296 = vmatprep.subr.bf16.mxu0 0
        %3297 = vmatpush1.bf16.msra.mxu0 0
        %3298 = vmatprep.subr.bf16.mxu0 0
        %3299 = vmatpush1.bf16.msra.mxu0 0
        %3300 = vmatprep.subr.bf16.mxu0 0
        %3301 = vmatpush1.bf16.msra.mxu0 0
        %3302 = vmatprep.subr.bf16.mxu0 0
        %3303 = vmatpush1.bf16.msra.mxu0 0
        %3304 = vmatprep.subr.bf16.mxu0 0
        %3305 = vmatpush1.bf16.msra.mxu0 0
        %3306 = vmatprep.subr.bf16.mxu0 0
        %3307 = vmatpush1.bf16.msra.mxu0 0
        %3308 = vmatprep.subr.bf16.mxu0 0
        %3309 = vmatpush1.bf16.msra.mxu0 0
        %3310 = vmatprep.subr.bf16.mxu0 0
        %3311 = vmatpush1.bf16.msra.mxu0 0
        %3312 = vmatprep.subr.bf16.mxu0 0
        %3313 = vmatpush1.bf16.msra.mxu0 0
        %3314 = vmatprep.subr.bf16.mxu0 0
        %3315 = vmatpush1.bf16.msra.mxu0 0
        %3316 = vmatprep.subr.bf16.mxu0 0
        %3317 = vmatpush1.bf16.msra.mxu0 0
        %3318 = vmatprep.subr.bf16.mxu0 0
        %3319 = vmatpush1.bf16.msra.mxu0 0
        %3320 = vmatprep.subr.bf16.mxu0 0
        %3321 = vmatpush1.bf16.msra.mxu0 0
        %3322 = vmatprep.mubr.bf16.mxu0 0
        %3323 = vmatmul.mubr.bf16.gmra.mrb[0].mxu0 %v3288
        %v3324 = vpop.f32.mrb[0].mxu0
        %v3325 = vadd.f32 0.0, %v3324
        %v3326 = vpop.f32.mrb[0].mxu0
        %v3327 = vpop.f32.mrb[0].mxu0
        %v3328 = vpop.f32.mrb[0].mxu0
        %3329 = vdwg.mxu0
        %v3330 = vadd.f32 %v3273, %v3325
        %v3331 = vld [vmem:[%s6] sm:$0x1]
        %v3332 = vadd.f32 %v3330, %v3331
        %v3333 = vmax.f32 %v3332, 0.0
        %v3334 = vpack.c.bf16 %v3333, %v3333
        %v3335 = vld [vmem:[%s7] sm:$0xf]
        %v3336 = vld [vmem:[%s7 + $0x4] sm:$0xf]
        %v3337 = vld [vmem:[%s7 + $0x8] sm:$0xf]
        %v3338 = vld [vmem:[%s7 + $0xc] sm:$0xf]
        %v3339 = vld [vmem:[%s7 + $0x10] sm:$0xf]
        %v3340 = vld [vmem:[%s7 + $0x14] sm:$0xf]
        %v3341 = vld [vmem:[%s7 + $0x18] sm:$0xf]
        %v3342 = vld [vmem:[%s7 + $0x1c] sm:$0xf]
        %v3343 = vld [vmem:[%s7 + $0x20] sm:$0xf]
        %v3344 = vld [vmem:[%s7 + $0x24] sm:$0xf]
        %v3345 = vld [vmem:[%s7 + $0x28] sm:$0xf]
        %v3346 = vld [vmem:[%s7 + $0x2c] sm:$0xf]
        %v3347 = vld [vmem:[%s7 + $0x30] sm:$0xf]
        %v3348 = vld [vmem:[%s7 + $0x34] sm:$0xf]
        %v3349 = vld [vmem:[%s7 + $0x38] sm:$0xf]
        %v3350 = vld [vmem:[%s8] sm:$0x1]
        %v3366 = vunpack.c.l.b16 %v3335
        %v3367 = vunpack.c.l.b16 %v3336
        %v3368 = vunpack.c.l.b16 %v3337
        %v3369 = vunpack.c.l.b16 %v3338
        %v3370 = vunpack.c.l.b16 %v3339
        %v3371 = vunpack.c.l.b16 %v3340
        %v3372 = vunpack.c.l.b16 %v3341
        %v3373 = vunpack.c.l.b16 %v3342
        %v3374 = vunpack.c.l.b16 %v3343
        %v3375 = vunpack.c.l.b16 %v3344
        %v3376 = vunpack.c.l.b16 %v3345
        %v3377 = vunpack.c.l.b16 %v3346
        %v3378 = vunpack.c.l.b16 %v3347
        %v3379 = vunpack.c.l.b16 %v3348
        %v3380 = vunpack.c.l.b16 %v3349
        %v3381 = vpack.c.b16 %v3367, %v3366
        %v3382 = vpack.c.b16 %v3369, %v3368
        %v3383 = vpack.c.b16 %v3371, %v3370
        %v3384 = vpack.c.b16 %v3373, %v3372
        %v3385 = vpack.c.b16 %v3375, %v3374
        %v3386 = vpack.c.b16 %v3377, %v3376
        %v3387 = vpack.c.b16 %v3379, %v3378
        %v3388 = vpack.c.b16 %v3380, %v3380
        %vm3396 = vcmask 982016
        %v3398 = vsel %vm3396, %v3334, 0
        %v3401 = vsel %vm1014, %v3388, 0
        %3403 = vmatprep.subr.bf16.mxu0 0
        %3404 = vmatpush1.bf16.msra.mxu0 %v3381
        %3405 = vmatprep.subr.bf16.mxu0 0
        %3406 = vmatpush1.bf16.msra.mxu0 %v3382
        %3407 = vmatprep.subr.bf16.mxu0 0
        %3408 = vmatpush1.bf16.msra.mxu0 %v3383
        %3409 = vmatprep.subr.bf16.mxu0 0
        %3410 = vmatpush1.bf16.msra.mxu0 %v3384
        %3411 = vmatprep.subr.bf16.mxu0 0
        %3412 = vmatpush1.bf16.msra.mxu0 %v3385
        %3413 = vmatprep.subr.bf16.mxu0 0
        %3414 = vmatpush1.bf16.msra.mxu0 %v3386
        %3415 = vmatprep.subr.bf16.mxu0 0
        %3416 = vmatpush1.bf16.msra.mxu0 %v3387
        %3417 = vmatprep.subr.bf16.mxu0 0
        %3418 = vmatpush1.bf16.msra.mxu0 %v3401
        %3419 = vmatprep.subr.bf16.mxu0 0
        %3420 = vmatpush1.bf16.msra.mxu0 0
        %3421 = vmatprep.subr.bf16.mxu0 0
        %3422 = vmatpush1.bf16.msra.mxu0 0
        %3423 = vmatprep.subr.bf16.mxu0 0
        %3424 = vmatpush1.bf16.msra.mxu0 0
        %3425 = vmatprep.subr.bf16.mxu0 0
        %3426 = vmatpush1.bf16.msra.mxu0 0
        %3427 = vmatprep.subr.bf16.mxu0 0
        %3428 = vmatpush1.bf16.msra.mxu0 0
        %3429 = vmatprep.subr.bf16.mxu0 0
        %3430 = vmatpush1.bf16.msra.mxu0 0
        %3431 = vmatprep.subr.bf16.mxu0 0
        %3432 = vmatpush1.bf16.msra.mxu0 0
        %3433 = vmatprep.subr.bf16.mxu0 0
        %3434 = vmatpush1.bf16.msra.mxu0 0
        %3435 = vmatprep.mubr.bf16.mxu0 0
        %3436 = vmatmul.mubr.bf16.gmra.mrb[0].mxu0 %v3398
        %v3437 = vpop.f32.mrb[0].mxu0
        %v3438 = vadd.f32 %v3350, %v3437
        %v3439 = vpop.f32.mrb[0].mxu0
        %v3440 = vpop.f32.mrb[0].mxu0
        %v3441 = vpop.f32.mrb[0].mxu0
        %3442 = vdwg.mxu0
        %v3443 = vmax.f32 %v3438, 0.0
        %v3444 = vpack.c.bf16 %v3443, %v3443
        %v3445 = vld [vmem:[%s9] sm:$0xf]
        %v3446 = vld [vmem:[%s9 + $0x4] sm:$0xf]
        %v3447 = vld [vmem:[%s9 + $0x8] sm:$0xf]
        %v3448 = vld [vmem:[%s9 + $0xc] sm:$0xf]
        %v3449 = vld [vmem:[%s9 + $0x10] sm:$0xf]
        %v3450 = vld [vmem:[%s9 + $0x14] sm:$0xf]
        %v3451 = vld [vmem:[%s9 + $0x18] sm:$0xf]
        %v3452 = vld [vmem:[%s9 + $0x1c] sm:$0xf]
        %v3453 = vld [vmem:[%s9 + $0x20] sm:$0xf]
        %v3454 = vld [vmem:[%s9 + $0x24] sm:$0xf]
        %v3455 = vld [vmem:[%s9 + $0x28] sm:$0x3]
        %v3456 = vld [vmem:[%s10] sm:$0x1]
        %v3468 = vunpack.c.l.b16 %v3445
        %v3469 = vunpack.c.l.b16 %v3446
        %v3470 = vunpack.c.l.b16 %v3447
        %v3471 = vunpack.c.l.b16 %v3448
        %v3472 = vunpack.c.l.b16 %v3449
        %v3473 = vunpack.c.l.b16 %v3450
        %v3474 = vunpack.c.l.b16 %v3451
        %v3475 = vunpack.c.l.b16 %v3452
        %v3476 = vunpack.c.l.b16 %v3453
        %v3477 = vunpack.c.l.b16 %v3454
        %v3478 = vunpack.c.l.b16 %v3455
        %v3479 = vpack.c.b16 %v3469, %v3468
        %v3480 = vpack.c.b16 %v3471, %v3470
        %v3481 = vpack.c.b16 %v3473, %v3472
        %v3482 = vpack.c.b16 %v3475, %v3474
        %v3483 = vpack.c.b16 %v3477, %v3476
        %v3484 = vpack.c.b16 %v3478, %v3478
        %vm3490 = vcmask 687104
        %v3492 = vsel %vm3490, %v3444, 0
        %vm3494 = vcmask 1041408
        %v3496 = vsel %vm3494, %v3484, 0
        %3498 = vmatprep.subr.bf16.mxu0 0
        %3499 = vmatpush1.bf16.msra.mxu0 %v3479
        %3500 = vmatprep.subr.bf16.mxu0 0
        %3501 = vmatpush1.bf16.msra.mxu0 %v3480
        %3502 = vmatprep.subr.bf16.mxu0 0
        %3503 = vmatpush1.bf16.msra.mxu0 %v3481
        %3504 = vmatprep.subr.bf16.mxu0 0
        %3505 = vmatpush1.bf16.msra.mxu0 %v3482
        %3506 = vmatprep.subr.bf16.mxu0 0
        %3507 = vmatpush1.bf16.msra.mxu0 %v3483
        %3508 = vmatprep.subr.bf16.mxu0 0
        %3509 = vmatpush1.bf16.msra.mxu0 %v3496
        %3510 = vmatprep.subr.bf16.mxu0 0
        %3511 = vmatpush1.bf16.msra.mxu0 0
        %3512 = vmatprep.subr.bf16.mxu0 0
        %3513 = vmatpush1.bf16.msra.mxu0 0
        %3514 = vmatprep.subr.bf16.mxu0 0
        %3515 = vmatpush1.bf16.msra.mxu0 0
        %3516 = vmatprep.subr.bf16.mxu0 0
        %3517 = vmatpush1.bf16.msra.mxu0 0
        %3518 = vmatprep.subr.bf16.mxu0 0
        %3519 = vmatpush1.bf16.msra.mxu0 0
        %3520 = vmatprep.subr.bf16.mxu0 0
        %3521 = vmatpush1.bf16.msra.mxu0 0
        %3522 = vmatprep.subr.bf16.mxu0 0
        %3523 = vmatpush1.bf16.msra.mxu0 0
        %3524 = vmatprep.subr.bf16.mxu0 0
        %3525 = vmatpush1.bf16.msra.mxu0 0
        %3526 = vmatprep.subr.bf16.mxu0 0
        %3527 = vmatpush1.bf16.msra.mxu0 0
        %3528 = vmatprep.subr.bf16.mxu0 0
        %3529 = vmatpush1.bf16.msra.mxu0 0
        %3530 = vmatprep.mubr.bf16.mxu0 0
        %3531 = vmatmul.mubr.bf16.gmra.mrb[0].mxu0 %v3492
        %v3532 = vpop.f32.mrb[0].mxu0
        %v3533 = vadd.f32 %v3456, %v3532
        %v3534 = vpop.f32.mrb[0].mxu0
        %v3535 = vpop.f32.mrb[0].mxu0
        %v3536 = vpop.f32.mrb[0].mxu0
        %3537 = vdwg.mxu0
        %vm3538 = vcmask 73728
        %3539 = vst.msk [vmem:[%s378] sm:$0x1] %vm3538, %v3533
        %s3540 = sand.u32 %s269, 1
        %s3541 = scalar_lea.sflag [#allocation5], %s3540
        %s3542 = sand.u32 %s269, 1
        %s3543 = scalar_lea.vmem [#allocation4], %s3542
        // Predicated region
        $region65: #{net_forward.1} parent=63 // pred_check
          %p3544 = pneg %p279
        $region66: #{net_forward.1} parent=63 // pred_check_branch
          %3546 = sbr.rel (%p3544) target = $region68
        $region67: #{net_forward.1} parent=63 // pred_region
          %s3548 = ssub.s32 16, 16
          %3549 = vsyncadd %s3541, %s3548
          %s3550 = smul.addr %s25, 16
          %s3551 = scalar_lea.hbm %s11, %s3550
          %s3553 = sshll.u32 %s3543, 4
          %s3554 = int_to_ptr.vmem [resolvable:$true] %s3553
          %3556 = dma.vmem_to_hbm [thread:$0]  %s3554, 16, %s3551, %s3541
        $region68: #{net_forward.1} parent=63 // pred_fallthru
          _
      $region64: #{net_forward.1} parent=5 // pred_fallthru
        _
      %p3557 = scmp.le.s32.totalorder 2, %s20
      // Predicated region
      $region69: #{net_forward.1} parent=5 // pred_check
        %p3558 = pneg %p3557
      $region70: #{net_forward.1} parent=5 // pred_check_branch
        %3560 = sbr.rel (%p3558) target = $region72
      $region71: #{net_forward.1} parent=5 // pred_region
        %s3561 = ssub.s32 %s20, 2
        // Predicated region
        $region73: #{net_forward.1} parent=71 // pred_check
          %p3562 = pneg %p285
        $region74: #{net_forward.1} parent=71 // pred_check_branch
          %3564 = sbr.rel (%p3562) target = $region76
        $region75: #{net_forward.1} parent=71 // pred_region
          %s3565 = sand.u32 %s270, 1
          %s3566 = scalar_lea.sflag [#allocation5], %s3565
          %s3567 = sand.u32 %s270, 1
          %s3568 = scalar_lea.vmem [#allocation4], %s3567
          %3569 = dma.done %s3566, 16
        $region76: #{net_forward.1} parent=71 // pred_fallthru
          _
      $region72: #{net_forward.1} parent=5 // pred_fallthru
        _
    $region6: #{net_forward.1} parent=1 // loop_footer
      %s24 = sadd.s32 1, %s20
    $region7: #{net_forward.1} parent=1 // loop_footer_branch
      %19 = sbr.rel target = $region3
    $region8: #{net_forward.1} parent=1 // loop_exit
      _
    %3570 = vsyncpa [#allocation5], 1
    %s3571 = scalar_lea.sflag [#allocation5], 1
    %3572 = vsyncpa %s3571, 1

</llo_original>
